<compile_context>
chip_gen: v6e
topology: v6e:2x2x1
jax: 0.10.0
libtpu: 0.0.40
codegen_flags: <defaults>
</compile_context>

<pallas_src>
import functools

import jax
import jax.numpy as jnp
from jax.experimental import pallas as pl
from jax.experimental.pallas import tpu as pltpu

_VMEM_LIMIT = 32 * 1024 * 1024   # safe on v5e/v6e/v7x, above v5e's 16 MiB default


# ---------------------------------------------------------------------------
# JAX glue: knn + neighbor gather (dynamic top-k / gather) and per-point
# pre-projections.  TODO(synk): top-k + index gather stay in plain JAX; no
# clean Pallas TPU gather here.
# ---------------------------------------------------------------------------
def knn_idx(xt, k):
    # xt: (B, N, C) channels-last.  Same pairwise formula as the PyTorch knn().
    inner = jnp.matmul(xt, jnp.swapaxes(xt, 1, 2))           # (B, N, N)
    sq = jnp.sum(xt * xt, axis=-1, keepdims=True)            # (B, N, 1)
    neg_dist = 2.0 * inner - sq - jnp.swapaxes(sq, 1, 2)     # -||xi - xj||^2
    return jax.lax.top_k(neg_dist, k)[1]                     # (B, N, k)


def gather_neighbors(feats, idx):
    # feats: (B, N, C); idx: (B, N, k)  ->  (B, k, N, C)   (K-major kernel layout)
    idx_t = jnp.transpose(idx, (0, 2, 1))                    # (B, k, N)
    return jax.vmap(lambda f, i: f[i])(feats, idx_t)


def _pick_tile(n, target):
    """Largest divisor of n that is <= target and a multiple of 8 (sublane)."""
    if n <= target:
        return n
    for t in range(target, 7, -1):
        if n % t == 0 and t % 8 == 0:
            return t
    return n


# ---------------------------------------------------------------------------
# Pallas kernels
# ---------------------------------------------------------------------------
def _lrelu(h):
    return jnp.maximum(h, 0.2 * h)           # LeakyReLU(0.2) without compare+select


def edge_conv2_kernel(nbr_ref, cen_ref, w2_ref, b2_ref, out_ref):
    # nbr_ref: (1, K, tN, C1) pre-projected neighbor features (scale folded in)
    # cen_ref: (1, tN, C1)    pre-projected center term (scale+bias folded in)
    K, tN, C1 = nbr_ref.shape[1], nbr_ref.shape[2], nbr_ref.shape[3]
    C2 = w2_ref.shape[1]
    h1 = _lrelu(nbr_ref[0] + cen_ref[0][None, :, :])          # (K, tN, C1)
    # One fused matmul for all K neighbors (M = K*tN) instead of K small ones.
    h2 = jnp.dot(h1.reshape(K * tN, C1), w2_ref[...],
                 preferred_element_type=jnp.float32) + b2_ref[...]
    h2 = _lrelu(h2).reshape(K, tN, C2)
    out_ref[0] = jnp.max(h2, axis=0)                          # max over neighbors


def edge_conv1_kernel(nbr_ref, cen_ref, out_ref):
    # Single-layer EdgeConv (conv5): layer-1 matmul is pre-projected outside,
    # so this is add + BN/LeakyReLU + neighbor max only.
    h = _lrelu(nbr_ref[0] + cen_ref[0][None, :, :])           # (K, tN, C)
    out_ref[0] = jnp.max(h, axis=0)


def head_max_kernel(x_ref, w6_ref, b6_ref, g_ref):
    # conv6 (192 -> 1024) + running global max over the N tiles (axis 1 = arbitrary).
    t = pl.program_id(1)

    @pl.when(t == 0)
    def _():
        g_ref[0] = jnp.full(g_ref.shape[1:], -jnp.inf, dtype=jnp.float32)

    h6 = jnp.dot(x_ref[0], w6_ref[...],
                 preferred_element_type=jnp.float32) + b6_ref[...]
    h6 = _lrelu(h6)                                           # (tN, 1024)
    g_ref[0] = jnp.maximum(g_ref[0], jnp.max(h6, axis=0, keepdims=True))


def head_mlp_kernel(x_ref, gb8_ref, w8_ref, w9_ref, b9_ref,
                    w10_ref, b10_ref, w11_ref, out_ref):
    # conv8..conv11 on one N tile.  gb8 = g @ W8[:1024] + b8 (per batch, hoisted out).
    x = x_ref[0]                                              # (tN, 192)
    h8 = jnp.dot(x, w8_ref[...], preferred_element_type=jnp.float32) + gb8_ref[0]
    h8 = _lrelu(h8)                                           # (tN, 256)
    # dropout dp1 == identity (eval mode)
    h9 = _lrelu(jnp.dot(h8, w9_ref[...], preferred_element_type=jnp.float32)
                + b9_ref[...])                                # (tN, 256)
    # dropout dp2 == identity (eval mode)
    h10 = _lrelu(jnp.dot(h9, w10_ref[...], preferred_element_type=jnp.float32)
                 + b10_ref[...])                              # (tN, 128)
    out_ref[0] = jnp.dot(h10, w11_ref[...],
                         preferred_element_type=jnp.float32)  # (tN, P_pad)


# ---------------------------------------------------------------------------
# pallas_call wrappers
# ---------------------------------------------------------------------------
def _edge_conv_call(nbr_proj, c_proj, w2, b2, tile):
    B, K, N, C1 = nbr_proj.shape
    tN = _pick_tile(N, tile)
    nt = N // tN
    if w2 is None:
        kernel, cout, extra, extra_specs = edge_conv1_kernel, C1, [], []
    else:
        kernel, cout = edge_conv2_kernel, w2.shape[1]
        extra = [w2, b2]
        extra_specs = [pl.BlockSpec(w2.shape, lambda b, t: (0, 0)),
                       pl.BlockSpec(b2.shape, lambda b, t: (0, 0))]
    return pl.pallas_call(
        kernel,
        out_shape=jax.ShapeDtypeStruct((B, N, cout), jnp.float32),
        grid=(B, nt),
        in_specs=[pl.BlockSpec((1, K, tN, C1), lambda b, t: (b, 0, t, 0)),
                  pl.BlockSpec((1, tN, C1), lambda b, t: (b, t, 0)),
                  *extra_specs],
        out_specs=pl.BlockSpec((1, tN, cout), lambda b, t: (b, t, 0)),
        compiler_params=pltpu.CompilerParams(
            dimension_semantics=("parallel", "parallel"),
            vmem_limit_bytes=_VMEM_LIMIT),
    )(nbr_proj, c_proj, *extra)


def edge_conv_block(feat, idx, w_top, w_diff, bias, w2, b2, tile):
    # feat: (B, N, Cin) channels-last point features.
    # Pre-projection (plain JAX, runs before the gather):
    #   [nbr-ctr, ctr] @ W == nbr @ W_top + ctr @ (W_bot - W_top)
    nbr_proj = gather_neighbors(jnp.einsum("bnc,cd->bnd", feat, w_top), idx)
    c_proj = jnp.einsum("bnc,cd->bnd", feat, w_diff) + bias
    return _edge_conv_call(nbr_proj, c_proj, w2, b2, tile)


def head_max(x123, w6, b6, tile):
    B, N, _ = x123.shape
    tN = _pick_tile(N, tile)
    nt = N // tN
    return pl.pallas_call(
        head_max_kernel,
        out_shape=jax.ShapeDtypeStruct((B, 1, 1024), jnp.float32),
        grid=(B, nt),
        in_specs=[pl.BlockSpec((1, tN, 192), lambda b, t: (b, t, 0)),
                  pl.BlockSpec(w6.shape, lambda b, t: (0, 0)),
                  pl.BlockSpec(b6.shape, lambda b, t: (0, 0))],
        out_specs=pl.BlockSpec((1, 1, 1024), lambda b, t: (b, 0, 0)),
        compiler_params=pltpu.CompilerParams(
            dimension_semantics=("parallel", "arbitrary"),
            vmem_limit_bytes=_VMEM_LIMIT),
    )(x123, w6, b6)


def head_mlp(x123, gb8, fp, tile):
    B, N, _ = x123.shape
    tN = _pick_tile(N, tile)
    nt = N // tN
    p_pad = fp["w11p"].shape[1]
    weights = [fp["w8p"], fp["w9"], fp["b9"], fp["w10"], fp["b10"], fp["w11p"]]
    return pl.pallas_call(
        head_mlp_kernel,
        out_shape=jax.ShapeDtypeStruct((B, N, p_pad), jnp.float32),
        grid=(B, nt),
        in_specs=[pl.BlockSpec((1, tN, 192), lambda b, t: (b, t, 0)),
                  pl.BlockSpec((1, 1, gb8.shape[-1]), lambda b, t: (b, 0, 0)),
                  *[pl.BlockSpec(w.shape, lambda b, t: (0, 0)) for w in weights]],
        out_specs=pl.BlockSpec((1, tN, p_pad), lambda b, t: (b, t, 0)),
        compiler_params=pltpu.CompilerParams(
            dimension_semantics=("parallel", "parallel"),
            vmem_limit_bytes=_VMEM_LIMIT),
    )(x123, gb8, *weights)


# ---------------------------------------------------------------------------
# Parameters (deterministic, synthetic; BN folded to scale/bias) + kernel fold
# ---------------------------------------------------------------------------
def init_params(key, num_channels=3, num_part=50):
    keys = iter(jax.random.split(key, 64))

    def conv_w(cin, cout):
        return (jax.random.normal(next(keys), (cin, cout), jnp.float32)
                / jnp.sqrt(jnp.float32(cin)))

    def bn_fold(c, eps=1e-5):
        gamma = 1.0 + 0.1 * jax.random.normal(next(keys), (1, c), jnp.float32)
        beta = 0.1 * jax.random.normal(next(keys), (1, c), jnp.float32)
        mean = jnp.zeros((1, c), jnp.float32)
        var = jnp.ones((1, c), jnp.float32)
        scale = gamma / jnp.sqrt(var + eps)
        bias = beta - mean * scale
        return scale, bias

    p = {}
    p["w1"] = conv_w(2 * num_channels, 64); p["s1"], p["b1"] = bn_fold(64)
    p["w2"] = conv_w(64, 64);               p["s2"], p["b2"] = bn_fold(64)
    p["w3"] = conv_w(128, 64);              p["s3"], p["b3"] = bn_fold(64)
    p["w4"] = conv_w(64, 64);               p["s4"], p["b4"] = bn_fold(64)
    p["w5"] = conv_w(128, 64);              p["s5"], p["b5"] = bn_fold(64)
    p["w6"] = conv_w(192, 1024);            p["s6"], p["b6"] = bn_fold(1024)
    # conv7 (label branch) is unused in the reference forward (l=None) -> omitted
    p["w8"] = conv_w(1216, 256);            p["s8"], p["b8"] = bn_fold(256)
    p["w9"] = conv_w(256, 256);             p["s9"], p["b9"] = bn_fold(256)
    p["w10"] = conv_w(256, 128);            p["s10"], p["b10"] = bn_fold(128)
    p["w11"] = conv_w(128, num_part)
    return p


def fold_params(p, num_channels):
    """Fold BN scale into weights and split edge-conv weights into top/diff halves."""
    C = num_channels
    f = {}
    # EdgeConv block 1 (conv1+conv2)
    f["e1_wtop"] = p["w1"][:C] * p["s1"]
    f["e1_wdiff"] = (p["w1"][C:] - p["w1"][:C]) * p["s1"]
    f["e1_b"] = p["b1"]
    f["e1_w2"] = p["w2"] * p["s2"]
    f["e1_b2"] = p["b2"]
    # EdgeConv block 2 (conv3+conv4)
    f["e2_wtop"] = p["w3"][:64] * p["s3"]
    f["e2_wdiff"] = (p["w3"][64:] - p["w3"][:64]) * p["s3"]
    f["e2_b"] = p["b3"]
    f["e2_w2"] = p["w4"] * p["s4"]
    f["e2_b2"] = p["b4"]
    # EdgeConv block 3 (conv5)
    f["e3_wtop"] = p["w5"][:64] * p["s5"]
    f["e3_wdiff"] = (p["w5"][64:] - p["w5"][:64]) * p["s5"]
    f["e3_b"] = p["b5"]
    # Head
    f["w6"] = p["w6"] * p["s6"];   f["b6"] = p["b6"]
    f["w8g"] = p["w8"][:1024] * p["s8"]     # rows for the global feature
    f["w8p"] = p["w8"][1024:] * p["s8"]     # rows for cat(x1,x2,x3)
    f["b8"] = p["b8"]
    f["w9"] = p["w9"] * p["s9"];   f["b9"] = p["b9"]
    f["w10"] = p["w10"] * p["s10"]; f["b10"] = p["b10"]
    num_part = p["w11"].shape[1]
    p_pad = ((num_part + 127) // 128) * 128          # lane-dense output stores
    f["w11p"] = jnp.zeros((p["w11"].shape[0], p_pad),
                          jnp.float32).at[:, :num_part].set(p["w11"])
    return f


# ---------------------------------------------------------------------------
# Full forward
# ---------------------------------------------------------------------------
@functools.partial(jax.jit, static_argnames=("k", "num_part", "tile"))
def dgcnn_partseg_forward(x, fp, k, num_part, tile=512):
    # x: (B, C, N) float32, same as the PyTorch input.
    x = x.astype(jnp.float32)
    xt = jnp.transpose(x, (0, 2, 1))                               # (B, N, C)

    idx = knn_idx(xt, k)
    x1 = edge_conv_block(xt, idx, fp["e1_wtop"], fp["e1_wdiff"], fp["e1_b"],
                         fp["e1_w2"], fp["e1_b2"], tile)           # (B, N, 64)
    idx = knn_idx(x1, k)
    x2 = edge_conv_block(x1, idx, fp["e2_wtop"], fp["e2_wdiff"], fp["e2_b"],
                         fp["e2_w2"], fp["e2_b2"], tile)           # (B, N, 64)
    idx = knn_idx(x2, k)
    x3 = edge_conv_block(x2, idx, fp["e3_wtop"], fp["e3_wdiff"], fp["e3_b"],
                         None, None, tile)                         # (B, N, 64)

    x123 = jnp.concatenate([x1, x2, x3], axis=-1)                  # (B, N, 192)
    g = head_max(x123, fp["w6"], fp["b6"], tile)                   # (B, 1, 1024)
    # Hoist the M=1 matmul g @ W8[:1024] out of the per-tile loop (per-batch bias).
    gb8 = jnp.einsum("bik,kd->bid", g, fp["w8g"]) + fp["b8"]       # (B, 1, 256)
    out = head_mlp(x123, gb8, fp, tile)                            # (B, N, P_pad)
    out = out[..., :num_part]
    return jnp.transpose(out, (0, 2, 1))                           # (B, num_part, N)


# ---------------------------------------------------------------------------
# Pure-JAX reference (eval-mode), for a sanity check in __main__
# ---------------------------------------------------------------------------
@functools.partial(jax.jit, static_argnames=("k",))
def _reference_forward(x, p, k):
    def bn_act(h, s, b):
        h = h * s + b
        return jnp.where(h > 0, h, 0.2 * h)

    def edge_block(feat_pts, layers):
        idx = knn_idx(feat_pts, k)
        nbr = jax.vmap(lambda f, i: f[i])(feat_pts, idx)            # (B, N, k, C)
        ctr = jnp.broadcast_to(feat_pts[:, :, None, :], nbr.shape)
        h = jnp.concatenate([nbr - ctr, ctr], axis=-1)              # (B, N, k, 2C)
        for (w, s, b) in layers:
            h = bn_act(jnp.einsum("bnkc,cd->bnkd", h, w), s, b)
        return jnp.max(h, axis=2)                                   # (B, N, Cout)

    xt = jnp.transpose(x.astype(jnp.float32), (0, 2, 1))
    x1 = edge_block(xt, [(p["w1"], p["s1"], p["b1"]), (p["w2"], p["s2"], p["b2"])])
    x2 = edge_block(x1, [(p["w3"], p["s3"], p["b3"]), (p["w4"], p["s4"], p["b4"])])
    x3 = edge_block(x2, [(p["w5"], p["s5"], p["b5"])])
    xcat = jnp.concatenate([x1, x2, x3], axis=-1)
    h6 = bn_act(jnp.einsum("bnc,cd->bnd", xcat, p["w6"]), p["s6"], p["b6"])
    g = jnp.max(h6, axis=1, keepdims=True)
    gcat = jnp.concatenate(
        [jnp.broadcast_to(g, (xcat.shape[0], xcat.shape[1], 1024)), xcat], axis=-1)
    h8 = bn_act(jnp.einsum("bnc,cd->bnd", gcat, p["w8"]), p["s8"], p["b8"])
    h9 = bn_act(jnp.einsum("bnc,cd->bnd", h8, p["w9"]), p["s9"], p["b9"])
    h10 = bn_act(jnp.einsum("bnc,cd->bnd", h9, p["w10"]), p["s10"], p["b10"])
    out = jnp.einsum("bnc,cd->bnd", h10, p["w11"])
    return jnp.transpose(out, (0, 2, 1))


if __name__ == "__main__":
    B, C, N, K = 2, 3, 64, 8                 # small synthetic shapes (N multiple of 8)
    NUM_PART = 50

    key = jax.random.PRNGKey(0)
    kx, kp = jax.random.split(key)
    x = jax.random.normal(kx, (B, C, N), jnp.float32)
    raw = init_params(kp, num_channels=C, num_part=NUM_PART)
    fp = fold_params(raw, num_channels=C)

    out = dgcnn_partseg_forward(x, fp, k=K, num_part=NUM_PART)
    out = jax.block_until_ready(out)

    assert out.shape == (B, NUM_PART, N), out.shape
    assert bool(jnp.all(jnp.isfinite(out)))

    ref = jax.block_until_ready(_reference_forward(x, raw, k=K))
    assert bool(jnp.allclose(out, ref, rtol=2e-2, atol=2e-2)), \
        float(jnp.max(jnp.abs(out - ref)))

    print("KERNEL_OK")
</pallas_src>

<mosaic_0001>
module attributes {stable_mosaic.version = 11 : i64} {
  func.func @edge_conv2_kernel(%arg0: i32, %arg1: i32, %arg2: memref<1x8x64x64xf32, #tpu.memory_space<vmem>>, %arg3: memref<1x64x64xf32, #tpu.memory_space<vmem>>, %arg4: memref<64x64xf32, #tpu.memory_space<vmem>>, %arg5: memref<1x64xf32, #tpu.memory_space<vmem>>, %arg6: memref<1x64x64xf32, #tpu.memory_space<vmem>>) attributes {dimension_semantics = [#tpu.dimension_semantics<parallel>, #tpu.dimension_semantics<parallel>], iteration_bounds = array<i64: 2, 1>, scalar_prefetch = 0 : i64, scratch_operands = 0 : i64, tpu.core_type = #tpu.core_type<tc>, window_params = [{transform_indices = @transform_0, window_bounds = array<i64: 1, 8, 64, 64>}, {transform_indices = @transform_1, window_bounds = array<i64: 1, 64, 64>}, {pipeline_mode = #tpu.pipeline_mode<synchronous>, transform_indices = @transform_2, window_bounds = array<i64: 64, 64>}, {pipeline_mode = #tpu.pipeline_mode<synchronous>, transform_indices = @transform_3, window_bounds = array<i64: 1, 64>}, {transform_indices = @transform_4, window_bounds = array<i64: 1, 64, 64>}]} {
    %c0 = arith.constant 0 : index
    %c0_0 = arith.constant 0 : index
    %c0_1 = arith.constant 0 : index
    %c0_2 = arith.constant 0 : index
    %0 = vector.load %arg2[%c0, %c0_0, %c0_1, %c0_2] : memref<1x8x64x64xf32, #tpu.memory_space<vmem>>, vector<1x8x64x64xf32>
    %1 = vector.shape_cast %0 : vector<1x8x64x64xf32> to vector<8x64x64xf32>
    %c0_3 = arith.constant 0 : index
    %c0_4 = arith.constant 0 : index
    %c0_5 = arith.constant 0 : index
    %2 = vector.load %arg3[%c0_3, %c0_4, %c0_5] : memref<1x64x64xf32, #tpu.memory_space<vmem>>, vector<1x64x64xf32>
    %3 = vector.shape_cast %2 : vector<1x64x64xf32> to vector<64x64xf32>
    %4 = vector.shape_cast %3 : vector<64x64xf32> to vector<1x64x64xf32>
    %5 = vector.broadcast %4 : vector<1x64x64xf32> to vector<8x64x64xf32>
    %6 = arith.addf %1, %5 : vector<8x64x64xf32>
    %cst = arith.constant 2.000000e-01 : f32
    %7 = vector.broadcast %cst : f32 to vector<8x64x64xf32>
    %8 = arith.mulf %7, %6 : vector<8x64x64xf32>
    %9 = arith.maximumf %6, %8 : vector<8x64x64xf32>
    %10 = vector.shape_cast %9 : vector<8x64x64xf32> to vector<512x64xf32>
    %c0_6 = arith.constant 0 : index
    %c0_7 = arith.constant 0 : index
    %11 = vector.load %arg4[%c0_6, %c0_7] : memref<64x64xf32, #tpu.memory_space<vmem>>, vector<64x64xf32>
    %cst_8 = arith.constant dense<0.000000e+00> : vector<512x64xf32>
    %12 = tpu.matmul %10, %11, %cst_8 {dimension_numbers = #tpu.dot_dimension_numbers<[1], [0], [0], [1], [0, 0, 1, 1], [], []>} : vector<512x64xf32>, vector<64x64xf32>, vector<512x64xf32> -> vector<512x64xf32>
    %c0_9 = arith.constant 0 : index
    %c0_10 = arith.constant 0 : index
    %13 = vector.load %arg5[%c0_9, %c0_10] : memref<1x64xf32, #tpu.memory_space<vmem>>, vector<1x64xf32>
    %14 = vector.broadcast %13 : vector<1x64xf32> to vector<512x64xf32>
    %15 = arith.addf %12, %14 : vector<512x64xf32>
    %cst_11 = arith.constant 2.000000e-01 : f32
    %16 = vector.broadcast %cst_11 : f32 to vector<512x64xf32>
    %17 = arith.mulf %16, %15 : vector<512x64xf32>
    %18 = arith.maximumf %15, %17 : vector<512x64xf32>
    %19 = vector.shape_cast %18 : vector<512x64xf32> to vector<8x64x64xf32>
    %cst_12 = arith.constant dense<0xFF800000> : vector<64x64xf32>
    %20 = vector.multi_reduction <maximumf>, %19, %cst_12 [0] : vector<8x64x64xf32> to vector<64x64xf32>
    %c0_13 = arith.constant 0 : index
    %c0_14 = arith.constant 0 : index
    %c0_15 = arith.constant 0 : index
    %21 = vector.load %arg6[%c0_13, %c0_14, %c0_15] : memref<1x64x64xf32, #tpu.memory_space<vmem>>, vector<1x64x64xf32>
    %22 = vector.shape_cast %21 : vector<1x64x64xf32> to vector<64x64xf32>
    %23 = vector.shape_cast %20 : vector<64x64xf32> to vector<1x64x64xf32>
    tpu.vector_store %arg6[%c0_13, %c0_14, %c0_15], %23 {strides = array<i32>} : memref<1x64x64xf32, #tpu.memory_space<vmem>>, vector<1x64x64xf32>,
    return
  }
  func.func @transform_0(%arg0: i32, %arg1: i32) -> (i32, i32, i32, i32) {
    %c0_i32 = arith.constant 0 : i32
    %c0_i32_0 = arith.constant 0 : i32
    %c0_i32_1 = arith.constant 0 : i32
    return %arg0, %c0_i32, %arg1, %c0_i32_0 : i32, i32, i32, i32
  }
  func.func @transform_1(%arg0: i32, %arg1: i32) -> (i32, i32, i32) {
    %c0_i32 = arith.constant 0 : i32
    %c0_i32_0 = arith.constant 0 : i32
    return %arg0, %arg1, %c0_i32 : i32, i32, i32
  }
  func.func @transform_2(%arg0: i32, %arg1: i32) -> (i32, i32) {
    %c0_i32 = arith.constant 0 : i32
    %c0_i32_0 = arith.constant 0 : i32
    %c0_i32_1 = arith.constant 0 : i32
    return %c0_i32, %c0_i32_0 : i32, i32
  }
  func.func @transform_3(%arg0: i32, %arg1: i32) -> (i32, i32) {
    %c0_i32 = arith.constant 0 : i32
    %c0_i32_0 = arith.constant 0 : i32
    %c0_i32_1 = arith.constant 0 : i32
    return %c0_i32, %c0_i32_0 : i32, i32
  }
  func.func @transform_4(%arg0: i32, %arg1: i32) -> (i32, i32, i32) {
    %c0_i32 = arith.constant 0 : i32
    %c0_i32_0 = arith.constant 0 : i32
    return %arg0, %arg1, %c0_i32 : i32, i32, i32
  }
}

module attributes {stable_mosaic.version = 11 : i64} {
  func.func @edge_conv1_kernel(%arg0: i32, %arg1: i32, %arg2: memref<1x8x64x64xf32, #tpu.memory_space<vmem>>, %arg3: memref<1x64x64xf32, #tpu.memory_space<vmem>>, %arg4: memref<1x64x64xf32, #tpu.memory_space<vmem>>) attributes {dimension_semantics = [#tpu.dimension_semantics<parallel>, #tpu.dimension_semantics<parallel>], iteration_bounds = array<i64: 2, 1>, scalar_prefetch = 0 : i64, scratch_operands = 0 : i64, tpu.core_type = #tpu.core_type<tc>, window_params = [{transform_indices = @transform_0, window_bounds = array<i64: 1, 8, 64, 64>}, {transform_indices = @transform_1, window_bounds = array<i64: 1, 64, 64>}, {transform_indices = @transform_2, window_bounds = array<i64: 1, 64, 64>}]} {
    %c0 = arith.constant 0 : index
    %c0_0 = arith.constant 0 : index
    %c0_1 = arith.constant 0 : index
    %c0_2 = arith.constant 0 : index
    %0 = vector.load %arg2[%c0, %c0_0, %c0_1, %c0_2] : memref<1x8x64x64xf32, #tpu.memory_space<vmem>>, vector<1x8x64x64xf32>
    %1 = vector.shape_cast %0 : vector<1x8x64x64xf32> to vector<8x64x64xf32>
    %c0_3 = arith.constant 0 : index
    %c0_4 = arith.constant 0 : index
    %c0_5 = arith.constant 0 : index
    %2 = vector.load %arg3[%c0_3, %c0_4, %c0_5] : memref<1x64x64xf32, #tpu.memory_space<vmem>>, vector<1x64x64xf32>
    %3 = vector.shape_cast %2 : vector<1x64x64xf32> to vector<64x64xf32>
    %4 = vector.shape_cast %3 : vector<64x64xf32> to vector<1x64x64xf32>
    %5 = vector.broadcast %4 : vector<1x64x64xf32> to vector<8x64x64xf32>
    %6 = arith.addf %1, %5 : vector<8x64x64xf32>
    %cst = arith.constant 2.000000e-01 : f32
    %7 = vector.broadcast %cst : f32 to vector<8x64x64xf32>
    %8 = arith.mulf %7, %6 : vector<8x64x64xf32>
    %9 = arith.maximumf %6, %8 : vector<8x64x64xf32>
    %cst_6 = arith.constant dense<0xFF800000> : vector<64x64xf32>
    %10 = vector.multi_reduction <maximumf>, %9, %cst_6 [0] : vector<8x64x64xf32> to vector<64x64xf32>
    %c0_7 = arith.constant 0 : index
    %c0_8 = arith.constant 0 : index
    %c0_9 = arith.constant 0 : index
    %11 = vector.load %arg4[%c0_7, %c0_8, %c0_9] : memref<1x64x64xf32, #tpu.memory_space<vmem>>, vector<1x64x64xf32>
    %12 = vector.shape_cast %11 : vector<1x64x64xf32> to vector<64x64xf32>
    %13 = vector.shape_cast %10 : vector<64x64xf32> to vector<1x64x64xf32>
    tpu.vector_store %arg4[%c0_7, %c0_8, %c0_9], %13 {strides = array<i32>} : memref<1x64x64xf32, #tpu.memory_space<vmem>>, vector<1x64x64xf32>,
    return
  }
  func.func @transform_0(%arg0: i32, %arg1: i32) -> (i32, i32, i32, i32) {
    %c0_i32 = arith.constant 0 : i32
    %c0_i32_0 = arith.constant 0 : i32
    %c0_i32_1 = arith.constant 0 : i32
    return %arg0, %c0_i32, %arg1, %c0_i32_0 : i32, i32, i32, i32
  }
  func.func @transform_1(%arg0: i32, %arg1: i32) -> (i32, i32, i32) {
    %c0_i32 = arith.constant 0 : i32
    %c0_i32_0 = arith.constant 0 : i32
    return %arg0, %arg1, %c0_i32 : i32, i32, i32
  }
  func.func @transform_2(%arg0: i32, %arg1: i32) -> (i32, i32, i32) {
    %c0_i32 = arith.constant 0 : i32
    %c0_i32_0 = arith.constant 0 : i32
    return %arg0, %arg1, %c0_i32 : i32, i32, i32
  }
}

module attributes {stable_mosaic.version = 11 : i64} {
  func.func @head_max_kernel(%arg0: i32, %arg1: i32, %arg2: memref<1x64x192xf32, #tpu.memory_space<vmem>>, %arg3: memref<192x1024xf32, #tpu.memory_space<vmem>>, %arg4: memref<1x1024xf32, #tpu.memory_space<vmem>>, %arg5: memref<1x1x1024xf32, #tpu.memory_space<vmem>>) attributes {dimension_semantics = [#tpu.dimension_semantics<parallel>, #tpu.dimension_semantics<arbitrary>], iteration_bounds = array<i64: 2, 1>, scalar_prefetch = 0 : i64, scratch_operands = 0 : i64, tpu.core_type = #tpu.core_type<tc>, window_params = [{transform_indices = @transform_0, window_bounds = array<i64: 1, 64, 192>}, {pipeline_mode = #tpu.pipeline_mode<synchronous>, transform_indices = @transform_1, window_bounds = array<i64: 192, 1024>}, {pipeline_mode = #tpu.pipeline_mode<synchronous>, transform_indices = @transform_2, window_bounds = array<i64: 1, 1024>}, {transform_indices = @transform_3, window_bounds = array<i64: 1, 1, 1024>}]} {
    %c0_i32 = arith.constant 0 : i32
    %0 = arith.cmpi eq, %arg1, %c0_i32 : i32
    %1 = arith.extui %0 : i1 to i32
    %c0_i32_0 = arith.constant 0 : i32
    %2 = arith.cmpi ne, %1, %c0_i32_0 : i32
    scf.if %2 {
      %cst_15 = arith.constant 0xFF800000 : f32
      %21 = vector.broadcast %cst_15 : f32 to vector<1x1024xf32>
      %c0_16 = arith.constant 0 : index
      %c0_17 = arith.constant 0 : index
      %c0_18 = arith.constant 0 : index
      %22 = vector.load %arg5[%c0_16, %c0_17, %c0_18] : memref<1x1x1024xf32, #tpu.memory_space<vmem>>, vector<1x1x1024xf32>
      %23 = vector.shape_cast %22 : vector<1x1x1024xf32> to vector<1x1024xf32>
      %24 = vector.shape_cast %21 : vector<1x1024xf32> to vector<1x1x1024xf32>
      tpu.vector_store %arg5[%c0_16, %c0_17, %c0_18], %24 {strides = array<i32>} : memref<1x1x1024xf32, #tpu.memory_space<vmem>>, vector<1x1x1024xf32>,
    } else {
    }
    %c0 = arith.constant 0 : index
    %c0_1 = arith.constant 0 : index
    %c0_2 = arith.constant 0 : index
    %3 = vector.load %arg2[%c0, %c0_1, %c0_2] : memref<1x64x192xf32, #tpu.memory_space<vmem>>, vector<1x64x192xf32>
    %4 = vector.shape_cast %3 : vector<1x64x192xf32> to vector<64x192xf32>
    %c0_3 = arith.constant 0 : index
    %c0_4 = arith.constant 0 : index
    %5 = vector.load %arg3[%c0_3, %c0_4] : memref<192x1024xf32, #tpu.memory_space<vmem>>, vector<192x1024xf32>
    %cst = arith.constant dense<0.000000e+00> : vector<64x1024xf32>
    %6 = tpu.matmul %4, %5, %cst {dimension_numbers = #tpu.dot_dimension_numbers<[1], [0], [0], [1], [0, 0, 1, 1], [], []>} : vector<64x192xf32>, vector<192x1024xf32>, vector<64x1024xf32> -> vector<64x1024xf32>
    %c0_5 = arith.constant 0 : index
    %c0_6 = arith.constant 0 : index
    %7 = vector.load %arg4[%c0_5, %c0_6] : memref<1x1024xf32, #tpu.memory_space<vmem>>, vector<1x1024xf32>
    %8 = vector.broadcast %7 : vector<1x1024xf32> to vector<64x1024xf32>
    %9 = arith.addf %6, %8 : vector<64x1024xf32>
    %cst_7 = arith.constant 2.000000e-01 : f32
    %10 = vector.broadcast %cst_7 : f32 to vector<64x1024xf32>
    %11 = arith.mulf %10, %9 : vector<64x1024xf32>
    %12 = arith.maximumf %9, %11 : vector<64x1024xf32>
    %c0_8 = arith.constant 0 : index
    %c0_9 = arith.constant 0 : index
    %c0_10 = arith.constant 0 : index
    %13 = vector.load %arg5[%c0_8, %c0_9, %c0_10] : memref<1x1x1024xf32, #tpu.memory_space<vmem>>, vector<1x1x1024xf32>
    %14 = vector.shape_cast %13 : vector<1x1x1024xf32> to vector<1x1024xf32>
    %cst_11 = arith.constant dense<0xFF800000> : vector<1024xf32>
    %15 = vector.multi_reduction <maximumf>, %12, %cst_11 [0] : vector<64x1024xf32> to vector<1024xf32>
    %16 = vector.shape_cast %15 : vector<1024xf32> to vector<1x1024xf32>
    %17 = arith.maximumf %14, %16 : vector<1x1024xf32>
    %c0_12 = arith.constant 0 : index
    %c0_13 = arith.constant 0 : index
    %c0_14 = arith.constant 0 : index
    %18 = vector.load %arg5[%c0_12, %c0_13, %c0_14] : memref<1x1x1024xf32, #tpu.memory_space<vmem>>, vector<1x1x1024xf32>
    %19 = vector.shape_cast %18 : vector<1x1x1024xf32> to vector<1x1024xf32>
    %20 = vector.shape_cast %17 : vector<1x1024xf32> to vector<1x1x1024xf32>
    tpu.vector_store %arg5[%c0_12, %c0_13, %c0_14], %20 {strides = array<i32>} : memref<1x1x1024xf32, #tpu.memory_space<vmem>>, vector<1x1x1024xf32>,
    return
  }
  func.func @transform_0(%arg0: i32, %arg1: i32) -> (i32, i32, i32) {
    %c0_i32 = arith.constant 0 : i32
    %c0_i32_0 = arith.constant 0 : i32
    return %arg0, %arg1, %c0_i32 : i32, i32, i32
  }
  func.func @transform_1(%arg0: i32, %arg1: i32) -> (i32, i32) {
    %c0_i32 = arith.constant 0 : i32
    %c0_i32_0 = arith.constant 0 : i32
    %c0_i32_1 = arith.constant 0 : i32
    return %c0_i32, %c0_i32_0 : i32, i32
  }
  func.func @transform_2(%arg0: i32, %arg1: i32) -> (i32, i32) {
    %c0_i32 = arith.constant 0 : i32
    %c0_i32_0 = arith.constant 0 : i32
    %c0_i32_1 = arith.constant 0 : i32
    return %c0_i32, %c0_i32_0 : i32, i32
  }
  func.func @transform_3(%arg0: i32, %arg1: i32) -> (i32, i32, i32) {
    %c0_i32 = arith.constant 0 : i32
    %c0_i32_0 = arith.constant 0 : i32
    %c0_i32_1 = arith.constant 0 : i32
    return %arg0, %c0_i32, %c0_i32_0 : i32, i32, i32
  }
}

module attributes {stable_mosaic.version = 11 : i64} {
  func.func @head_mlp_kernel(%arg0: i32, %arg1: i32, %arg2: memref<1x64x192xf32, #tpu.memory_space<vmem>>, %arg3: memref<1x1x256xf32, #tpu.memory_space<vmem>>, %arg4: memref<192x256xf32, #tpu.memory_space<vmem>>, %arg5: memref<256x256xf32, #tpu.memory_space<vmem>>, %arg6: memref<1x256xf32, #tpu.memory_space<vmem>>, %arg7: memref<256x128xf32, #tpu.memory_space<vmem>>, %arg8: memref<1x128xf32, #tpu.memory_space<vmem>>, %arg9: memref<128x128xf32, #tpu.memory_space<vmem>>, %arg10: memref<1x64x128xf32, #tpu.memory_space<vmem>>) attributes {dimension_semantics = [#tpu.dimension_semantics<parallel>, #tpu.dimension_semantics<parallel>], iteration_bounds = array<i64: 2, 1>, scalar_prefetch = 0 : i64, scratch_operands = 0 : i64, tpu.core_type = #tpu.core_type<tc>, window_params = [{transform_indices = @transform_0, window_bounds = array<i64: 1, 64, 192>}, {transform_indices = @transform_1, window_bounds = array<i64: 1, 1, 256>}, {pipeline_mode = #tpu.pipeline_mode<synchronous>, transform_indices = @transform_2, window_bounds = array<i64: 192, 256>}, {pipeline_mode = #tpu.pipeline_mode<synchronous>, transform_indices = @transform_3, window_bounds = array<i64: 256, 256>}, {pipeline_mode = #tpu.pipeline_mode<synchronous>, transform_indices = @transform_4, window_bounds = array<i64: 1, 256>}, {pipeline_mode = #tpu.pipeline_mode<synchronous>, transform_indices = @transform_5, window_bounds = array<i64: 256, 128>}, {pipeline_mode = #tpu.pipeline_mode<synchronous>, transform_indices = @transform_6, window_bounds = array<i64: 1, 128>}, {pipeline_mode = #tpu.pipeline_mode<synchronous>, transform_indices = @transform_7, window_bounds = array<i64: 128, 128>}, {transform_indices = @transform_8, window_bounds = array<i64: 1, 64, 128>}]} {
    %c0 = arith.constant 0 : index
    %c0_0 = arith.constant 0 : index
    %c0_1 = arith.constant 0 : index
    %0 = vector.load %arg2[%c0, %c0_0, %c0_1] : memref<1x64x192xf32, #tpu.memory_space<vmem>>, vector<1x64x192xf32>
    %1 = vector.shape_cast %0 : vector<1x64x192xf32> to vector<64x192xf32>
    %c0_2 = arith.constant 0 : index
    %c0_3 = arith.constant 0 : index
    %2 = vector.load %arg4[%c0_2, %c0_3] : memref<192x256xf32, #tpu.memory_space<vmem>>, vector<192x256xf32>
    %cst = arith.constant dense<0.000000e+00> : vector<64x256xf32>
    %3 = tpu.matmul %1, %2, %cst {dimension_numbers = #tpu.dot_dimension_numbers<[1], [0], [0], [1], [0, 0, 1, 1], [], []>} : vector<64x192xf32>, vector<192x256xf32>, vector<64x256xf32> -> vector<64x256xf32>
    %c0_4 = arith.constant 0 : index
    %c0_5 = arith.constant 0 : index
    %c0_6 = arith.constant 0 : index
    %4 = vector.load %arg3[%c0_4, %c0_5, %c0_6] : memref<1x1x256xf32, #tpu.memory_space<vmem>>, vector<1x1x256xf32>
    %5 = vector.shape_cast %4 : vector<1x1x256xf32> to vector<1x256xf32>
    %6 = vector.broadcast %5 : vector<1x256xf32> to vector<64x256xf32>
    %7 = arith.addf %3, %6 : vector<64x256xf32>
    %cst_7 = arith.constant 2.000000e-01 : f32
    %8 = vector.broadcast %cst_7 : f32 to vector<64x256xf32>
    %9 = arith.mulf %8, %7 : vector<64x256xf32>
    %10 = arith.maximumf %7, %9 : vector<64x256xf32>
    %c0_8 = arith.constant 0 : index
    %c0_9 = arith.constant 0 : index
    %11 = vector.load %arg5[%c0_8, %c0_9] : memref<256x256xf32, #tpu.memory_space<vmem>>, vector<256x256xf32>
    %cst_10 = arith.constant dense<0.000000e+00> : vector<64x256xf32>
    %12 = tpu.matmul %10, %11, %cst_10 {dimension_numbers = #tpu.dot_dimension_numbers<[1], [0], [0], [1], [0, 0, 1, 1], [], []>} : vector<64x256xf32>, vector<256x256xf32>, vector<64x256xf32> -> vector<64x256xf32>
    %c0_11 = arith.constant 0 : index
    %c0_12 = arith.constant 0 : index
    %13 = vector.load %arg6[%c0_11, %c0_12] : memref<1x256xf32, #tpu.memory_space<vmem>>, vector<1x256xf32>
    %14 = vector.broadcast %13 : vector<1x256xf32> to vector<64x256xf32>
    %15 = arith.addf %12, %14 : vector<64x256xf32>
    %cst_13 = arith.constant 2.000000e-01 : f32
    %16 = vector.broadcast %cst_13 : f32 to vector<64x256xf32>
    %17 = arith.mulf %16, %15 : vector<64x256xf32>
    %18 = arith.maximumf %15, %17 : vector<64x256xf32>
    %c0_14 = arith.constant 0 : index
    %c0_15 = arith.constant 0 : index
    %19 = vector.load %arg7[%c0_14, %c0_15] : memref<256x128xf32, #tpu.memory_space<vmem>>, vector<256x128xf32>
    %cst_16 = arith.constant dense<0.000000e+00> : vector<64x128xf32>
    %20 = tpu.matmul %18, %19, %cst_16 {dimension_numbers = #tpu.dot_dimension_numbers<[1], [0], [0], [1], [0, 0, 1, 1], [], []>} : vector<64x256xf32>, vector<256x128xf32>, vector<64x128xf32> -> vector<64x128xf32>
    %c0_17 = arith.constant 0 : index
    %c0_18 = arith.constant 0 : index
    %21 = vector.load %arg8[%c0_17, %c0_18] : memref<1x128xf32, #tpu.memory_space<vmem>>, vector<1x128xf32>
    %22 = vector.broadcast %21 : vector<1x128xf32> to vector<64x128xf32>
    %23 = arith.addf %20, %22 : vector<64x128xf32>
    %cst_19 = arith.constant 2.000000e-01 : f32
    %24 = vector.broadcast %cst_19 : f32 to vector<64x128xf32>
    %25 = arith.mulf %24, %23 : vector<64x128xf32>
    %26 = arith.maximumf %23, %25 : vector<64x128xf32>
    %c0_20 = arith.constant 0 : index
    %c0_21 = arith.constant 0 : index
    %27 = vector.load %arg9[%c0_20, %c0_21] : memref<128x128xf32, #tpu.memory_space<vmem>>, vector<128x128xf32>
    %cst_22 = arith.constant dense<0.000000e+00> : vector<64x128xf32>
    %28 = tpu.matmul %26, %27, %cst_22 {dimension_numbers = #tpu.dot_dimension_numbers<[1], [0], [0], [1], [0, 0, 1, 1], [], []>} : vector<64x128xf32>, vector<128x128xf32>, vector<64x128xf32> -> vector<64x128xf32>
    %c0_23 = arith.constant 0 : index
    %c0_24 = arith.constant 0 : index
    %c0_25 = arith.constant 0 : index
    %29 = vector.load %arg10[%c0_23, %c0_24, %c0_25] : memref<1x64x128xf32, #tpu.memory_space<vmem>>, vector<1x64x128xf32>
    %30 = vector.shape_cast %29 : vector<1x64x128xf32> to vector<64x128xf32>
    %31 = vector.shape_cast %28 : vector<64x128xf32> to vector<1x64x128xf32>
    tpu.vector_store %arg10[%c0_23, %c0_24, %c0_25], %31 {strides = array<i32>} : memref<1x64x128xf32, #tpu.memory_space<vmem>>, vector<1x64x128xf32>,
    return
  }
  func.func @transform_0(%arg0: i32, %arg1: i32) -> (i32, i32, i32) {
    %c0_i32 = arith.constant 0 : i32
    %c0_i32_0 = arith.constant 0 : i32
    return %arg0, %arg1, %c0_i32 : i32, i32, i32
  }
  func.func @transform_1(%arg0: i32, %arg1: i32) -> (i32, i32, i32) {
    %c0_i32 = arith.constant 0 : i32
    %c0_i32_0 = arith.constant 0 : i32
    %c0_i32_1 = arith.constant 0 : i32
    return %arg0, %c0_i32, %c0_i32_0 : i32, i32, i32
  }
  func.func @transform_2(%arg0: i32, %arg1: i32) -> (i32, i32) {
    %c0_i32 = arith.constant 0 : i32
    %c0_i32_0 = arith.constant 0 : i32
    %c0_i32_1 = arith.constant 0 : i32
    return %c0_i32, %c0_i32_0 : i32, i32
  }
  func.func @transform_3(%arg0: i32, %arg1: i32) -> (i32, i32) {
    %c0_i32 = arith.constant 0 : i32
    %c0_i32_0 = arith.constant 0 : i32
    %c0_i32_1 = arith.constant 0 : i32
    return %c0_i32, %c0_i32_0 : i32, i32
  }
  func.func @transform_4(%arg0: i32, %arg1: i32) -> (i32, i32) {
    %c0_i32 = arith.constant 0 : i32
    %c0_i32_0 = arith.constant 0 : i32
    %c0_i32_1 = arith.constant 0 : i32
    return %c0_i32, %c0_i32_0 : i32, i32
  }
  func.func @transform_5(%arg0: i32, %arg1: i32) -> (i32, i32) {
    %c0_i32 = arith.constant 0 : i32
    %c0_i32_0 = arith.constant 0 : i32
    %c0_i32_1 = arith.constant 0 : i32
    return %c0_i32, %c0_i32_0 : i32, i32
  }
  func.func @transform_6(%arg0: i32, %arg1: i32) -> (i32, i32) {
    %c0_i32 = arith.constant 0 : i32
    %c0_i32_0 = arith.constant 0 : i32
    %c0_i32_1 = arith.constant 0 : i32
    return %c0_i32, %c0_i32_0 : i32, i32
  }
  func.func @transform_7(%arg0: i32, %arg1: i32) -> (i32, i32) {
    %c0_i32 = arith.constant 0 : i32
    %c0_i32_0 = arith.constant 0 : i32
    %c0_i32_1 = arith.constant 0 : i32
    return %c0_i32, %c0_i32_0 : i32, i32
  }
  func.func @transform_8(%arg0: i32, %arg1: i32) -> (i32, i32, i32) {
    %c0_i32 = arith.constant 0 : i32
    %c0_i32_0 = arith.constant 0 : i32
    return %arg0, %arg1, %c0_i32 : i32, i32, i32
  }
}

</mosaic_0001>

<llo_original>
// kernel: dgcnn_partseg_forward.5
$region0: #{dgcnn_partseg_forward.5}
  #allocation0 [shape = 'u32[]', space=smem, size = 0x4, offset = 0x4, fixed_abs, tag = 'smem constant byte address 0x4 - core index']
  #allocation1 [shape = 'u32[144,128]{1,0:T(1,128)}', space=vmem, size = 0x12000, scoped, tag = 'internal scratch']
  %s0 = inlined_call_operand.vmem [shape: f32[2,8,64,64], index: 0, kind: input, shape index: {}]
  %s1 = inlined_call_operand.vmem [shape: f32[2,64,64], index: 1, kind: input, shape index: {}]
  %s2 = inlined_call_operand.vmem [shape: f32[64,64], index: 2, kind: input, shape index: {}]
  %s3 = inlined_call_operand.vmem [shape: f32[1,64], index: 3, kind: input, shape index: {}]
  %s4 = inlined_call_operand.vmem [shape: f32[2,64,64], index: 4, kind: output, shape index: {}]
  %s5 = sld [smem:[#allocation0]]
  $region49: #{dgcnn_partseg_forward.5} parent=0
    _
  %s7 = ssub.s32 1, %s5
  %s8 = scalar_select 0, %s7, %s5
  loop: start=0, step=1, limit=4
  $region2: #{dgcnn_partseg_forward.5} parent=0 // loop_pre_header
    _
  $region3: #{dgcnn_partseg_forward.5} parent=0 // loop_header
    %s10 = sphi 0, %s14
    %p11 = scmp.ge.s32.totalorder %s10, 4
    %s17 = sphi 0, %s29
    %s18 = sphi 0, %s25
    %s19 = sphi 0, %s17
    %s20 = sphi 0, %s18
    %s21 = sphi 0, %s19
    %s22 = sphi 0, %s20
    %s34 = sphi 0, %s36
    %s37 = sphi 0, %s34
    %s38 = sphi 0, %s37
    %s54 = sphi 0, %s38
    %s62 = sphi 0, %s64
    %s65 = sphi 0, %s62
    %s66 = sphi 0, %s65
    %s82 = sphi 0, %s66
    %s86 = sphi 0, %s86
    %s88 = sphi 0, %s86
    %s89 = sphi 0, %s88
    %s103 = sphi 0, %s89
    %s107 = sphi 0, %s107
    %s109 = sphi 0, %s107
    %s110 = sphi 0, %s109
    %s124 = sphi 0, %s110
    %s132 = sphi 0, %s134
    %s135 = sphi 0, %s132
    %s136 = sphi 0, %s135
    %s152 = sphi 0, %s136
  $region4: #{dgcnn_partseg_forward.5} parent=0 // loop_header_branch
    %13 = sbr.rel (%p11) target = $region8
  $region5: #{dgcnn_partseg_forward.5} parent=0 // loop_body
    %s15 = ssub.s32 %s10, 1
    %s16 = ssub.s32 %s10, 2
    %s23 = sadd.s32 1, %s18
    %p24 = scmp.ge.s32.totalorder %s23, 1
    %s25 = scalar_select %p24, 0, %s23
    %s26 = sadd.s32 1, %s17
    %s27 = scalar_select %p24, %s26, %s17
    %p28 = scmp.ge.s32.totalorder %s27, 2
    %s29 = scalar_select %p28, 0, %s27
    %s30 = ssub.s32 %s17, %s29
    %s31 = ssub.s32 %s18, %s25
    %s32 = sor.u32 %s30, %s31
    %p33 = scmp.eq.s32.totalorder %s32, 0
    %s35 = sadd.s32 %s34, 1
    %s36 = scalar_select %p33, %s34, %s35
    %p39 = pneg %p33
    %p40 = scmp.eq.s32.totalorder %s10, 1
    %p41 = por %p39, %p40
    %p42 = scmp.ne.s32.totalorder %s34, %s37
    %p43 = scmp.eq.s32.totalorder %s10, 0
    %p44 = por %p42, %p43
    %p45 = scmp.ne.s32.totalorder %s34, %s37
    %p46 = scmp.eq.s32.totalorder %s15, 1
    %p47 = por %p45, %p46
    %p48 = scmp.ne.s32.totalorder %s37, %s38
    %p49 = scmp.eq.s32.totalorder %s15, 0
    %p50 = por %p48, %p49
    %p51 = scmp.ne.s32.totalorder %s37, %s38
    %p52 = scmp.eq.s32.totalorder %s16, 1
    %p53 = por %p51, %p52
    %p55 = scmp.ne.s32.totalorder %s38, %s54
    %p56 = scmp.eq.s32.totalorder %s16, 0
    %p57 = por %p55, %p56
    %s58 = ssub.s32 %s17, %s29
    %s59 = ssub.s32 %s18, %s25
    %s60 = sor.u32 %s58, %s59
    %p61 = scmp.eq.s32.totalorder %s60, 0
    %s63 = sadd.s32 %s62, 1
    %s64 = scalar_select %p61, %s62, %s63
    %p67 = pneg %p61
    %p68 = scmp.eq.s32.totalorder %s10, 1
    %p69 = por %p67, %p68
    %p70 = scmp.ne.s32.totalorder %s62, %s65
    %p71 = scmp.eq.s32.totalorder %s10, 0
    %p72 = por %p70, %p71
    %p73 = scmp.ne.s32.totalorder %s62, %s65
    %p74 = scmp.eq.s32.totalorder %s15, 1
    %p75 = por %p73, %p74
    %p76 = scmp.ne.s32.totalorder %s65, %s66
    %p77 = scmp.eq.s32.totalorder %s15, 0
    %p78 = por %p76, %p77
    %p79 = scmp.ne.s32.totalorder %s65, %s66
    %p80 = scmp.eq.s32.totalorder %s16, 1
    %p81 = por %p79, %p80
    %p83 = scmp.ne.s32.totalorder %s66, %s82
    %p84 = scmp.eq.s32.totalorder %s16, 0
    %p85 = por %p83, %p84
    %s87 = sadd.s32 %s86, 1
    %p90 = scmp.eq.s32.totalorder %s10, 1
    %p91 = scmp.ne.s32.totalorder %s86, %s88
    %p92 = scmp.eq.s32.totalorder %s10, 0
    %p93 = por %p91, %p92
    %p94 = scmp.ne.s32.totalorder %s86, %s88
    %p95 = scmp.eq.s32.totalorder %s15, 1
    %p96 = por %p94, %p95
    %p97 = scmp.ne.s32.totalorder %s88, %s89
    %p98 = scmp.eq.s32.totalorder %s15, 0
    %p99 = por %p97, %p98
    %p100 = scmp.ne.s32.totalorder %s88, %s89
    %p101 = scmp.eq.s32.totalorder %s16, 1
    %p102 = por %p100, %p101
    %p104 = scmp.ne.s32.totalorder %s89, %s103
    %p105 = scmp.eq.s32.totalorder %s16, 0
    %p106 = por %p104, %p105
    %s108 = sadd.s32 %s107, 1
    %p111 = scmp.eq.s32.totalorder %s10, 1
    %p112 = scmp.ne.s32.totalorder %s107, %s109
    %p113 = scmp.eq.s32.totalorder %s10, 0
    %p114 = por %p112, %p113
    %p115 = scmp.ne.s32.totalorder %s107, %s109
    %p116 = scmp.eq.s32.totalorder %s15, 1
    %p117 = por %p115, %p116
    %p118 = scmp.ne.s32.totalorder %s109, %s110
    %p119 = scmp.eq.s32.totalorder %s15, 0
    %p120 = por %p118, %p119
    %p121 = scmp.ne.s32.totalorder %s109, %s110
    %p122 = scmp.eq.s32.totalorder %s16, 1
    %p123 = por %p121, %p122
    %p125 = scmp.ne.s32.totalorder %s110, %s124
    %p126 = scmp.eq.s32.totalorder %s16, 0
    %p127 = por %p125, %p126
    %s128 = ssub.s32 %s17, %s29
    %s129 = ssub.s32 %s18, %s25
    %s130 = sor.u32 %s128, %s129
    %p131 = scmp.eq.s32.totalorder %s130, 0
    %s133 = sadd.s32 %s132, 1
    %s134 = scalar_select %p131, %s132, %s133
    %p137 = pneg %p131
    %p138 = scmp.eq.s32.totalorder %s10, 1
    %p139 = por %p137, %p138
    %p140 = scmp.ne.s32.totalorder %s132, %s135
    %p141 = scmp.eq.s32.totalorder %s10, 0
    %p142 = por %p140, %p141
    %p143 = scmp.ne.s32.totalorder %s132, %s135
    %p144 = scmp.eq.s32.totalorder %s15, 1
    %p145 = por %p143, %p144
    %p146 = scmp.ne.s32.totalorder %s135, %s136
    %p147 = scmp.eq.s32.totalorder %s15, 0
    %p148 = por %p146, %p147
    %p149 = scmp.ne.s32.totalorder %s135, %s136
    %p150 = scmp.eq.s32.totalorder %s16, 1
    %p151 = por %p149, %p150
    %p153 = scmp.ne.s32.totalorder %s136, %s152
    %p154 = scmp.eq.s32.totalorder %s16, 0
    %p155 = por %p153, %p154
    %p156 = scmp.le.s32.totalorder 1, %s10
    %p157 = scmp.lt.s32.totalorder %s10, 3
    %p158 = pnand %p156, %p157
    %p159 = pneg %p158
    // Predicated region
    $region9: #{dgcnn_partseg_forward.5} parent=5 // pred_check
      _
    $region10: #{dgcnn_partseg_forward.5} parent=5 // pred_check_branch
      %161 = sbr.rel (%p158) target = $region12
    $region11: #{dgcnn_partseg_forward.5} parent=5 // pred_region
      %s162 = ssub.s32 %s10, 1
      // Predicated region
      $region13: #{dgcnn_partseg_forward.5} parent=11 // pred_check
        %p163 = pneg %p99
      $region14: #{dgcnn_partseg_forward.5} parent=11 // pred_check_branch
        %165 = sbr.rel (%p163) target = $region16
      $region15: #{dgcnn_partseg_forward.5} parent=11 // pred_region
        _
      $region16: #{dgcnn_partseg_forward.5} parent=11 // pred_fallthru
        _
      // Predicated region
      $region17: #{dgcnn_partseg_forward.5} parent=11 // pred_check
        %p166 = pneg %p120
      $region18: #{dgcnn_partseg_forward.5} parent=11 // pred_check_branch
        %168 = sbr.rel (%p166) target = $region20
      $region19: #{dgcnn_partseg_forward.5} parent=11 // pred_region
        _
      $region20: #{dgcnn_partseg_forward.5} parent=11 // pred_fallthru
        _
    $region12: #{dgcnn_partseg_forward.5} parent=5 // pred_fallthru
      _
    %p169 = scmp.lt.s32.totalorder %s10, 2
    // Predicated region
    $region21: #{dgcnn_partseg_forward.5} parent=5 // pred_check
      %p170 = pneg %p169
    $region22: #{dgcnn_partseg_forward.5} parent=5 // pred_check_branch
      %172 = sbr.rel (%p170) target = $region24
    $region23: #{dgcnn_partseg_forward.5} parent=5 // pred_region
      // Predicated region
      $region25: #{dgcnn_partseg_forward.5} parent=23 // pred_check
        %p173 = pneg %p44
      $region26: #{dgcnn_partseg_forward.5} parent=23 // pred_check_branch
        %175 = sbr.rel (%p173) target = $region28
      $region27: #{dgcnn_partseg_forward.5} parent=23 // pred_region
        %s176 = smul.u32 8, %s18
        %p177 = scmp.lt.s32.totalorder %s17, 1
        %s178 = scalar_select %p177, %s17, 1
        %p179 = scmp.lt.s32.totalorder %s176, 7
        %s180 = scalar_select %p179, %s176, 7
        %s181 = smul.addr %s178, 64
        %s182 = sadd.s32 %s180, %s181
        %s183 = smul.addr %s182, 8
        %s184 = scalar_lea.vmem %s0, %s183
        %s185 = smul.u32 8, %s18
      $region28: #{dgcnn_partseg_forward.5} parent=23 // pred_fallthru
        _
      // Predicated region
      $region29: #{dgcnn_partseg_forward.5} parent=23 // pred_check
        %p186 = pneg %p72
      $region30: #{dgcnn_partseg_forward.5} parent=23 // pred_check_branch
        %188 = sbr.rel (%p186) target = $region32
      $region31: #{dgcnn_partseg_forward.5} parent=23 // pred_region
        %s189 = smul.u32 8, %s18
        %p190 = scmp.lt.s32.totalorder %s17, 1
        %s191 = scalar_select %p190, %s17, 1
        %p192 = scmp.lt.s32.totalorder %s189, 7
        %s193 = scalar_select %p192, %s189, 7
        %s194 = smul.addr %s191, 8
        %s195 = sadd.s32 %s193, %s194
        %s196 = smul.addr %s195, 8
        %s197 = scalar_lea.vmem %s1, %s196
        %s198 = smul.u32 8, %s18
      $region32: #{dgcnn_partseg_forward.5} parent=23 // pred_fallthru
        _
    $region24: #{dgcnn_partseg_forward.5} parent=5 // pred_fallthru
      _
    %p199 = scmp.le.s32.totalorder 1, %s10
    %p200 = scmp.lt.s32.totalorder %s10, 3
    %p201 = pnand %p199, %p200
    %p202 = pneg %p201
    // Predicated region
    $region33: #{dgcnn_partseg_forward.5} parent=5 // pred_check
      _
    $region34: #{dgcnn_partseg_forward.5} parent=5 // pred_check_branch
      %204 = sbr.rel (%p201) target = $region36
    $region35: #{dgcnn_partseg_forward.5} parent=5 // pred_region
      %s205 = ssub.s32 %s10, 1
      %s206 = smul.u32 8, %s20
      %p207 = scmp.lt.s32.totalorder %s19, 1
      %s208 = scalar_select %p207, %s19, 1
      %p209 = scmp.lt.s32.totalorder %s206, 7
      %s210 = scalar_select %p209, %s206, 7
      %s211 = smul.addr %s208, 64
      %s212 = sadd.s32 %s210, %s211
      %s213 = smul.addr %s212, 8
      %s214 = scalar_lea.vmem %s0, %s213
      %p215 = pneg %p50
      %p216 = pneg %p47
      %s217 = smul.u32 8, %s20
      %p218 = scmp.lt.s32.totalorder %s19, 1
      %s219 = scalar_select %p218, %s19, 1
      %p220 = scmp.lt.s32.totalorder %s217, 7
      %s221 = scalar_select %p220, %s217, 7
      %s222 = smul.addr %s219, 8
      %s223 = sadd.s32 %s221, %s222
      %s224 = smul.addr %s223, 8
      %s225 = scalar_lea.vmem %s1, %s224
      %p226 = pneg %p78
      %p227 = pneg %p75
      %p228 = pneg %p99
      %p229 = pneg %p96
      %p230 = pneg %p120
      %p231 = pneg %p117
      %p232 = pneg %p148
      %p233 = pneg %p145
      %s234 = smul.u32 8, %s20
      %p235 = scmp.lt.s32.totalorder %s19, 1
      %s236 = scalar_select %p235, %s19, 1
      %p237 = scmp.lt.s32.totalorder %s234, 7
      %s238 = scalar_select %p237, %s234, 7
      %s239 = smul.addr %s236, 8
      %s240 = sadd.s32 %s238, %s239
      %s241 = smul.addr %s240, 8
      %s242 = scalar_lea.vmem %s4, %s241
      %s243 = smul.u32 8, %s20
      %p244 = scmp.lt.s32.totalorder %s19, 1
      %s245 = scalar_select %p244, %s19, 1
      %p246 = scmp.lt.s32.totalorder %s243, 7
      %s247 = scalar_select %p246, %s243, 7
      %s248 = smul.addr %s245, 64
      %s249 = sadd.s32 %s247, %s248
      %s250 = smul.addr %s249, 8
      %s251 = scalar_lea.vmem %s0, %s250
      %s252 = smul.u32 8, %s20
      %s253 = smul.u32 8, %s20
      %p254 = scmp.lt.s32.totalorder %s19, 1
      %s255 = scalar_select %p254, %s19, 1
      %p256 = scmp.lt.s32.totalorder %s253, 7
      %s257 = scalar_select %p256, %s253, 7
      %s258 = smul.addr %s255, 8
      %s259 = sadd.s32 %s257, %s258
      %s260 = smul.addr %s259, 8
      %s261 = scalar_lea.vmem %s1, %s260
      %s262 = smul.u32 8, %s20
      %s263 = smul.u32 8, %s20
      %p264 = scmp.lt.s32.totalorder %s19, 1
      %s265 = scalar_select %p264, %s19, 1
      %p266 = scmp.lt.s32.totalorder %s263, 7
      %s267 = scalar_select %p266, %s263, 7
      %s268 = smul.addr %s265, 8
      %s269 = sadd.s32 %s267, %s268
      %s270 = smul.addr %s269, 8
      %s271 = scalar_lea.vmem %s4, %s270
      %s272 = smul.u32 8, %s20
      %v273 = vld [vmem:[%s251] sm:$0xff]
      %v274 = vld [vmem:[%s251 + $0x8] sm:$0xff]
      %v275 = vld [vmem:[%s251 + $0x10] sm:$0xff]
      %v276 = vld [vmem:[%s251 + $0x18] sm:$0xff]
      %v277 = vld [vmem:[%s251 + $0x20] sm:$0xff]
      %v278 = vld [vmem:[%s251 + $0x28] sm:$0xff]
      %v279 = vld [vmem:[%s251 + $0x30] sm:$0xff]
      %v280 = vld [vmem:[%s251 + $0x38] sm:$0xff]
      %v281 = vld [vmem:[%s251 + $0x40] sm:$0xff]
      %v282 = vld [vmem:[%s251 + $0x48] sm:$0xff]
      %v283 = vld [vmem:[%s251 + $0x50] sm:$0xff]
      %v284 = vld [vmem:[%s251 + $0x58] sm:$0xff]
      %v285 = vld [vmem:[%s251 + $0x60] sm:$0xff]
      %v286 = vld [vmem:[%s251 + $0x68] sm:$0xff]
      %v287 = vld [vmem:[%s251 + $0x70] sm:$0xff]
      %v288 = vld [vmem:[%s251 + $0x78] sm:$0xff]
      %v289 = vld [vmem:[%s251 + $0x80] sm:$0xff]
      %v290 = vld [vmem:[%s251 + $0x88] sm:$0xff]
      %v291 = vld [vmem:[%s251 + $0x90] sm:$0xff]
      %v292 = vld [vmem:[%s251 + $0x98] sm:$0xff]
      %v293 = vld [vmem:[%s251 + $0xa0] sm:$0xff]
      %v294 = vld [vmem:[%s251 + $0xa8] sm:$0xff]
      %v295 = vld [vmem:[%s251 + $0xb0] sm:$0xff]
      %v296 = vld [vmem:[%s251 + $0xb8] sm:$0xff]
      %v297 = vld [vmem:[%s251 + $0xc0] sm:$0xff]
      %v298 = vld [vmem:[%s251 + $0xc8] sm:$0xff]
      %v299 = vld [vmem:[%s251 + $0xd0] sm:$0xff]
      %v300 = vld [vmem:[%s251 + $0xd8] sm:$0xff]
      %v301 = vld [vmem:[%s251 + $0xe0] sm:$0xff]
      %v302 = vld [vmem:[%s251 + $0xe8] sm:$0xff]
      %v303 = vld [vmem:[%s251 + $0xf0] sm:$0xff]
      %v304 = vld [vmem:[%s251 + $0xf8] sm:$0xff]
      %v305 = vld [vmem:[%s251 + $0x100] sm:$0xff]
      %v306 = vld [vmem:[%s251 + $0x108] sm:$0xff]
      %v307 = vld [vmem:[%s251 + $0x110] sm:$0xff]
      %v308 = vld [vmem:[%s251 + $0x118] sm:$0xff]
      %v309 = vld [vmem:[%s251 + $0x120] sm:$0xff]
      %v310 = vld [vmem:[%s251 + $0x128] sm:$0xff]
      %v311 = vld [vmem:[%s251 + $0x130] sm:$0xff]
      %v312 = vld [vmem:[%s251 + $0x138] sm:$0xff]
      %v313 = vld [vmem:[%s251 + $0x140] sm:$0xff]
      %v314 = vld [vmem:[%s251 + $0x148] sm:$0xff]
      %v315 = vld [vmem:[%s251 + $0x150] sm:$0xff]
      %v316 = vld [vmem:[%s251 + $0x158] sm:$0xff]
      %v317 = vld [vmem:[%s251 + $0x160] sm:$0xff]
      %v318 = vld [vmem:[%s251 + $0x168] sm:$0xff]
      %v319 = vld [vmem:[%s251 + $0x170] sm:$0xff]
      %v320 = vld [vmem:[%s251 + $0x178] sm:$0xff]
      %v321 = vld [vmem:[%s251 + $0x180] sm:$0xff]
      %v322 = vld [vmem:[%s251 + $0x188] sm:$0xff]
      %v323 = vld [vmem:[%s251 + $0x190] sm:$0xff]
      %v324 = vld [vmem:[%s251 + $0x198] sm:$0xff]
      %v325 = vld [vmem:[%s251 + $0x1a0] sm:$0xff]
      %v326 = vld [vmem:[%s251 + $0x1a8] sm:$0xff]
      %v327 = vld [vmem:[%s251 + $0x1b0] sm:$0xff]
      %v328 = vld [vmem:[%s251 + $0x1b8] sm:$0xff]
      %v329 = vld [vmem:[%s251 + $0x1c0] sm:$0xff]
      %v330 = vld [vmem:[%s251 + $0x1c8] sm:$0xff]
      %v331 = vld [vmem:[%s251 + $0x1d0] sm:$0xff]
      %v332 = vld [vmem:[%s251 + $0x1d8] sm:$0xff]
      %v333 = vld [vmem:[%s251 + $0x1e0] sm:$0xff]
      %v334 = vld [vmem:[%s251 + $0x1e8] sm:$0xff]
      %v335 = vld [vmem:[%s251 + $0x1f0] sm:$0xff]
      %v336 = vld [vmem:[%s251 + $0x1f8] sm:$0xff]
      %v337 = vld [vmem:[%s261] sm:$0xff]
      %v338 = vld [vmem:[%s261 + $0x8] sm:$0xff]
      %v339 = vld [vmem:[%s261 + $0x10] sm:$0xff]
      %v340 = vld [vmem:[%s261 + $0x18] sm:$0xff]
      %v341 = vld [vmem:[%s261 + $0x20] sm:$0xff]
      %v342 = vld [vmem:[%s261 + $0x28] sm:$0xff]
      %v343 = vld [vmem:[%s261 + $0x30] sm:$0xff]
      %v344 = vld [vmem:[%s261 + $0x38] sm:$0xff]
      %v345 = vadd.f32 %v273, %v337
      %v346 = vadd.f32 %v274, %v338
      %v347 = vadd.f32 %v275, %v339
      %v348 = vadd.f32 %v276, %v340
      %v349 = vadd.f32 %v277, %v341
      %v350 = vadd.f32 %v278, %v342
      %v351 = vadd.f32 %v279, %v343
      %v352 = vadd.f32 %v280, %v344
      %v353 = vadd.f32 %v281, %v337
      %v354 = vadd.f32 %v282, %v338
      %v355 = vadd.f32 %v283, %v339
      %v356 = vadd.f32 %v284, %v340
      %v357 = vadd.f32 %v285, %v341
      %v358 = vadd.f32 %v286, %v342
      %v359 = vadd.f32 %v287, %v343
      %v360 = vadd.f32 %v288, %v344
      %v361 = vadd.f32 %v289, %v337
      %v362 = vadd.f32 %v290, %v338
      %v363 = vadd.f32 %v291, %v339
      %v364 = vadd.f32 %v292, %v340
      %v365 = vadd.f32 %v293, %v341
      %v366 = vadd.f32 %v294, %v342
      %v367 = vadd.f32 %v295, %v343
      %v368 = vadd.f32 %v296, %v344
      %v369 = vadd.f32 %v297, %v337
      %v370 = vadd.f32 %v298, %v338
      %v371 = vadd.f32 %v299, %v339
      %v372 = vadd.f32 %v300, %v340
      %v373 = vadd.f32 %v301, %v341
      %v374 = vadd.f32 %v302, %v342
      %v375 = vadd.f32 %v303, %v343
      %v376 = vadd.f32 %v304, %v344
      %v377 = vadd.f32 %v305, %v337
      %v378 = vadd.f32 %v306, %v338
      %v379 = vadd.f32 %v307, %v339
      %v380 = vadd.f32 %v308, %v340
      %v381 = vadd.f32 %v309, %v341
      %v382 = vadd.f32 %v310, %v342
      %v383 = vadd.f32 %v311, %v343
      %v384 = vadd.f32 %v312, %v344
      %v385 = vadd.f32 %v313, %v337
      %v386 = vadd.f32 %v314, %v338
      %v387 = vadd.f32 %v315, %v339
      %v388 = vadd.f32 %v316, %v340
      %v389 = vadd.f32 %v317, %v341
      %v390 = vadd.f32 %v318, %v342
      %v391 = vadd.f32 %v319, %v343
      %v392 = vadd.f32 %v320, %v344
      %v393 = vadd.f32 %v321, %v337
      %v394 = vadd.f32 %v322, %v338
      %v395 = vadd.f32 %v323, %v339
      %v396 = vadd.f32 %v324, %v340
      %v397 = vadd.f32 %v325, %v341
      %v398 = vadd.f32 %v326, %v342
      %v399 = vadd.f32 %v327, %v343
      %v400 = vadd.f32 %v328, %v344
      %v401 = vadd.f32 %v329, %v337
      %v402 = vadd.f32 %v330, %v338
      %v403 = vadd.f32 %v331, %v339
      %v404 = vadd.f32 %v332, %v340
      %v405 = vadd.f32 %v333, %v341
      %v406 = vadd.f32 %v334, %v342
      %v407 = vadd.f32 %v335, %v343
      %v408 = vadd.f32 %v336, %v344
      %v409 = vmul.f32 %v345, 0.2
      %v410 = vmul.f32 %v346, 0.2
      %v411 = vmul.f32 %v347, 0.2
      %v412 = vmul.f32 %v348, 0.2
      %v413 = vmul.f32 %v349, 0.2
      %v414 = vmul.f32 %v350, 0.2
      %v415 = vmul.f32 %v351, 0.2
      %v416 = vmul.f32 %v352, 0.2
      %v417 = vmul.f32 %v353, 0.2
      %v418 = vmul.f32 %v354, 0.2
      %v419 = vmul.f32 %v355, 0.2
      %v420 = vmul.f32 %v356, 0.2
      %v421 = vmul.f32 %v357, 0.2
      %v422 = vmul.f32 %v358, 0.2
      %v423 = vmul.f32 %v359, 0.2
      %v424 = vmul.f32 %v360, 0.2
      %v425 = vmul.f32 %v361, 0.2
      %v426 = vmul.f32 %v362, 0.2
      %v427 = vmul.f32 %v363, 0.2
      %v428 = vmul.f32 %v364, 0.2
      %v429 = vmul.f32 %v365, 0.2
      %v430 = vmul.f32 %v366, 0.2
      %v431 = vmul.f32 %v367, 0.2
      %v432 = vmul.f32 %v368, 0.2
      %v433 = vmul.f32 %v369, 0.2
      %v434 = vmul.f32 %v370, 0.2
      %v435 = vmul.f32 %v371, 0.2
      %v436 = vmul.f32 %v372, 0.2
      %v437 = vmul.f32 %v373, 0.2
      %v438 = vmul.f32 %v374, 0.2
      %v439 = vmul.f32 %v375, 0.2
      %v440 = vmul.f32 %v376, 0.2
      %v441 = vmul.f32 %v377, 0.2
      %v442 = vmul.f32 %v378, 0.2
      %v443 = vmul.f32 %v379, 0.2
      %v444 = vmul.f32 %v380, 0.2
      %v445 = vmul.f32 %v381, 0.2
      %v446 = vmul.f32 %v382, 0.2
      %v447 = vmul.f32 %v383, 0.2
      %v448 = vmul.f32 %v384, 0.2
      %v449 = vmul.f32 %v385, 0.2
      %v450 = vmul.f32 %v386, 0.2
      %v451 = vmul.f32 %v387, 0.2
      %v452 = vmul.f32 %v388, 0.2
      %v453 = vmul.f32 %v389, 0.2
      %v454 = vmul.f32 %v390, 0.2
      %v455 = vmul.f32 %v391, 0.2
      %v456 = vmul.f32 %v392, 0.2
      %v457 = vmul.f32 %v393, 0.2
      %v458 = vmul.f32 %v394, 0.2
      %v459 = vmul.f32 %v395, 0.2
      %v460 = vmul.f32 %v396, 0.2
      %v461 = vmul.f32 %v397, 0.2
      %v462 = vmul.f32 %v398, 0.2
      %v463 = vmul.f32 %v399, 0.2
      %v464 = vmul.f32 %v400, 0.2
      %v465 = vmul.f32 %v401, 0.2
      %v466 = vmul.f32 %v402, 0.2
      %v467 = vmul.f32 %v403, 0.2
      %v468 = vmul.f32 %v404, 0.2
      %v469 = vmul.f32 %v405, 0.2
      %v470 = vmul.f32 %v406, 0.2
      %v471 = vmul.f32 %v407, 0.2
      %v472 = vmul.f32 %v408, 0.2
      %v473 = vmax.f32 %v345, %v409
      %v474 = vmax.f32 %v346, %v410
      %v475 = vmax.f32 %v347, %v411
      %v476 = vmax.f32 %v348, %v412
      %v477 = vmax.f32 %v349, %v413
      %v478 = vmax.f32 %v350, %v414
      %v479 = vmax.f32 %v351, %v415
      %v480 = vmax.f32 %v352, %v416
      %v481 = vmax.f32 %v353, %v417
      %v482 = vmax.f32 %v354, %v418
      %v483 = vmax.f32 %v355, %v419
      %v484 = vmax.f32 %v356, %v420
      %v485 = vmax.f32 %v357, %v421
      %v486 = vmax.f32 %v358, %v422
      %v487 = vmax.f32 %v359, %v423
      %v488 = vmax.f32 %v360, %v424
      %v489 = vmax.f32 %v361, %v425
      %v490 = vmax.f32 %v362, %v426
      %v491 = vmax.f32 %v363, %v427
      %v492 = vmax.f32 %v364, %v428
      %v493 = vmax.f32 %v365, %v429
      %v494 = vmax.f32 %v366, %v430
      %v495 = vmax.f32 %v367, %v431
      %v496 = vmax.f32 %v368, %v432
      %v497 = vmax.f32 %v369, %v433
      %v498 = vmax.f32 %v370, %v434
      %v499 = vmax.f32 %v371, %v435
      %v500 = vmax.f32 %v372, %v436
      %v501 = vmax.f32 %v373, %v437
      %v502 = vmax.f32 %v374, %v438
      %v503 = vmax.f32 %v375, %v439
      %v504 = vmax.f32 %v376, %v440
      %v505 = vmax.f32 %v377, %v441
      %v506 = vmax.f32 %v378, %v442
      %v507 = vmax.f32 %v379, %v443
      %v508 = vmax.f32 %v380, %v444
      %v509 = vmax.f32 %v381, %v445
      %v510 = vmax.f32 %v382, %v446
      %v511 = vmax.f32 %v383, %v447
      %v512 = vmax.f32 %v384, %v448
      %v513 = vmax.f32 %v385, %v449
      %v514 = vmax.f32 %v386, %v450
      %v515 = vmax.f32 %v387, %v451
      %v516 = vmax.f32 %v388, %v452
      %v517 = vmax.f32 %v389, %v453
      %v518 = vmax.f32 %v390, %v454
      %v519 = vmax.f32 %v391, %v455
      %v520 = vmax.f32 %v392, %v456
      %v521 = vmax.f32 %v393, %v457
      %v522 = vmax.f32 %v394, %v458
      %v523 = vmax.f32 %v395, %v459
      %v524 = vmax.f32 %v396, %v460
      %v525 = vmax.f32 %v397, %v461
      %v526 = vmax.f32 %v398, %v462
      %v527 = vmax.f32 %v399, %v463
      %v528 = vmax.f32 %v400, %v464
      %v529 = vmax.f32 %v401, %v465
      %v530 = vmax.f32 %v402, %v466
      %v531 = vmax.f32 %v403, %v467
      %v532 = vmax.f32 %v404, %v468
      %v533 = vmax.f32 %v405, %v469
      %v534 = vmax.f32 %v406, %v470
      %v535 = vmax.f32 %v407, %v471
      %v536 = vmax.f32 %v408, %v472
      %v537 = vld [vmem:[%s2] sm:$0xff]
      %v538 = vld [vmem:[%s2 + $0x8] sm:$0xff]
      %v539 = vld [vmem:[%s2 + $0x10] sm:$0xff]
      %v540 = vld [vmem:[%s2 + $0x18] sm:$0xff]
      %v541 = vld [vmem:[%s2 + $0x20] sm:$0xff]
      %v542 = vld [vmem:[%s2 + $0x28] sm:$0xff]
      %v543 = vld [vmem:[%s2 + $0x30] sm:$0xff]
      %v544 = vld [vmem:[%s2 + $0x38] sm:$0xff]
      %v545 = vld [vmem:[%s3] sm:$0x1]
      %v547 = vlaneseq
      %v548 = vshrl.u32 %v547, 7
      %v549 = vsub.s32 0, %v548
      %v550 = vrot.slane %v545, %v549
      %vm552 = vcmask 523264
      %v554 = vsel %vm552, %v473, 0
      %v557 = vsel %vm552, %v474, 0
      %v560 = vsel %vm552, %v475, 0
      %v563 = vsel %vm552, %v476, 0
      %v566 = vsel %vm552, %v477, 0
      %v569 = vsel %vm552, %v478, 0
      %v572 = vsel %vm552, %v479, 0
      %v575 = vsel %vm552, %v480, 0
      %v578 = vsel %vm552, %v481, 0
      %v581 = vsel %vm552, %v482, 0
      %v584 = vsel %vm552, %v483, 0
      %v587 = vsel %vm552, %v484, 0
      %v590 = vsel %vm552, %v485, 0
      %v593 = vsel %vm552, %v486, 0
      %v596 = vsel %vm552, %v487, 0
      %v599 = vsel %vm552, %v488, 0
      %v602 = vsel %vm552, %v489, 0
      %v605 = vsel %vm552, %v490, 0
      %v608 = vsel %vm552, %v491, 0
      %v611 = vsel %vm552, %v492, 0
      %v614 = vsel %vm552, %v493, 0
      %v617 = vsel %vm552, %v494, 0
      %v620 = vsel %vm552, %v495, 0
      %v623 = vsel %vm552, %v496, 0
      %v626 = vsel %vm552, %v497, 0
      %v629 = vsel %vm552, %v498, 0
      %v632 = vsel %vm552, %v499, 0
      %v635 = vsel %vm552, %v500, 0
      %v638 = vsel %vm552, %v501, 0
      %v641 = vsel %vm552, %v502, 0
      %v644 = vsel %vm552, %v503, 0
      %v647 = vsel %vm552, %v504, 0
      %v650 = vsel %vm552, %v505, 0
      %v653 = vsel %vm552, %v506, 0
      %v656 = vsel %vm552, %v507, 0
      %v659 = vsel %vm552, %v508, 0
      %v662 = vsel %vm552, %v509, 0
      %v665 = vsel %vm552, %v510, 0
      %v668 = vsel %vm552, %v511, 0
      %v671 = vsel %vm552, %v512, 0
      %v674 = vsel %vm552, %v513, 0
      %v677 = vsel %vm552, %v514, 0
      %v680 = vsel %vm552, %v515, 0
      %v683 = vsel %vm552, %v516, 0
      %v686 = vsel %vm552, %v517, 0
      %v689 = vsel %vm552, %v518, 0
      %v692 = vsel %vm552, %v519, 0
      %v695 = vsel %vm552, %v520, 0
      %v698 = vsel %vm552, %v521, 0
      %v701 = vsel %vm552, %v522, 0
      %v704 = vsel %vm552, %v523, 0
      %v707 = vsel %vm552, %v524, 0
      %v710 = vsel %vm552, %v525, 0
      %v713 = vsel %vm552, %v526, 0
      %v716 = vsel %vm552, %v527, 0
      %v719 = vsel %vm552, %v528, 0
      %v722 = vsel %vm552, %v529, 0
      %v725 = vsel %vm552, %v530, 0
      %v728 = vsel %vm552, %v531, 0
      %v731 = vsel %vm552, %v532, 0
      %v734 = vsel %vm552, %v533, 0
      %v737 = vsel %vm552, %v534, 0
      %v740 = vsel %vm552, %v535, 0
      %v743 = vsel %vm552, %v536, 0
      %745 = vmatprep.subr.mxu0 0.0
      %746 = vmatpush1.msra.mxu0 0.0
      %747 = vmatprep.subr.mxu0 0.0
      %748 = vmatpush1.msra.mxu0 0.0
      %749 = vmatprep.subr.mxu0 0.0
      %750 = vmatpush1.msra.mxu0 0.0
      %751 = vmatprep.subr.mxu0 0.0
      %752 = vmatpush1.msra.mxu0 0.0
      %753 = vmatprep.subr.mxu0 0.0
      %754 = vmatpush1.msra.mxu0 0.0
      %755 = vmatprep.subr.mxu0 0.0
      %756 = vmatpush1.msra.mxu0 0.0
      %757 = vmatprep.subr.mxu0 0.0
      %758 = vmatpush1.msra.mxu0 0.0
      %759 = vmatprep.subr.mxu0 0.0
      %760 = vmatpush1.msra.mxu0 0.0
      %761 = vmatprep.subr.mxu0 0.0
      %762 = vmatpush1.msra.mxu0 %v544
      %763 = vmatprep.subr.mxu0 0.0
      %764 = vmatpush1.msra.mxu0 %v543
      %765 = vmatprep.subr.mxu0 0.0
      %766 = vmatpush1.msra.mxu0 %v542
      %767 = vmatprep.subr.mxu0 0.0
      %768 = vmatpush1.msra.mxu0 %v541
      %769 = vmatprep.subr.mxu0 0.0
      %770 = vmatpush1.msra.mxu0 %v540
      %771 = vmatprep.subr.mxu0 0.0
      %772 = vmatpush1.msra.mxu0 %v539
      %773 = vmatprep.subr.mxu0 0.0
      %774 = vmatpush1.msra.mxu0 %v538
      %775 = vmatprep.subr.mxu0 0.0
      %776 = vmatpush1.msra.mxu0 %v537
      %777 = vmatprep.subr.mxu0 0.0
      %778 = vmatpush2.msra.mxu0 0.0
      %779 = vmatprep.subr.mxu0 0.0
      %780 = vmatpush2.msra.mxu0 0.0
      %781 = vmatprep.subr.mxu0 0.0
      %782 = vmatpush2.msra.mxu0 0.0
      %783 = vmatprep.subr.mxu0 0.0
      %784 = vmatpush2.msra.mxu0 0.0
      %785 = vmatprep.subr.mxu0 0.0
      %786 = vmatpush2.msra.mxu0 0.0
      %787 = vmatprep.subr.mxu0 0.0
      %788 = vmatpush2.msra.mxu0 0.0
      %789 = vmatprep.subr.mxu0 0.0
      %790 = vmatpush2.msra.mxu0 0.0
      %791 = vmatprep.subr.mxu0 0.0
      %792 = vmatpush2.msra.mxu0 0.0
      %793 = vmatprep.subr.mxu0 0.0
      %794 = vmatpush2.msra.mxu0 0.0
      %795 = vmatprep.subr.mxu0 0.0
      %796 = vmatpush2.msra.mxu0 0.0
      %797 = vmatprep.subr.mxu0 0.0
      %798 = vmatpush2.msra.mxu0 0.0
      %799 = vmatprep.subr.mxu0 0.0
      %800 = vmatpush2.msra.mxu0 0.0
      %801 = vmatprep.subr.mxu0 0.0
      %802 = vmatpush2.msra.mxu0 0.0
      %803 = vmatprep.subr.mxu0 0.0
      %804 = vmatpush2.msra.mxu0 0.0
      %805 = vmatprep.subr.mxu0 0.0
      %806 = vmatpush2.msra.mxu0 0.0
      %807 = vmatprep.subr.mxu0 0.0
      %808 = vmatpush2.msra.mxu0 0.0
      %809 = vmatprep.mubr.f32.mxu0 0.0
      %810 = vmatmul.mubr.f32.gmra.mxu0 %v554
      %v811 = vpop.f32.mrf.mxu0
      %v812 = vadd.f32 %v550, %v811
      %v813 = vpop.f32.mrf.mxu0
      %814 = vmatprep.mubr.f32.mxu0 0.0
      %815 = vmatmul.mubr.f32.gmra.mxu0 %v557
      %v816 = vpop.f32.mrf.mxu0
      %v817 = vadd.f32 %v550, %v816
      %v818 = vpop.f32.mrf.mxu0
      %819 = vmatprep.mubr.f32.mxu0 0.0
      %820 = vmatmul.mubr.f32.gmra.mxu0 %v560
      %v821 = vpop.f32.mrf.mxu0
      %v822 = vadd.f32 %v550, %v821
      %v823 = vpop.f32.mrf.mxu0
      %824 = vmatprep.mubr.f32.mxu0 0.0
      %825 = vmatmul.mubr.f32.gmra.mxu0 %v563
      %v826 = vpop.f32.mrf.mxu0
      %v827 = vadd.f32 %v550, %v826
      %v828 = vpop.f32.mrf.mxu0
      %829 = vmatprep.mubr.f32.mxu0 0.0
      %830 = vmatmul.mubr.f32.gmra.mxu0 %v566
      %v831 = vpop.f32.mrf.mxu0
      %v832 = vadd.f32 %v550, %v831
      %v833 = vpop.f32.mrf.mxu0
      %834 = vmatprep.mubr.f32.mxu0 0.0
      %835 = vmatmul.mubr.f32.gmra.mxu0 %v569
      %v836 = vpop.f32.mrf.mxu0
      %v837 = vadd.f32 %v550, %v836
      %v838 = vpop.f32.mrf.mxu0
      %839 = vmatprep.mubr.f32.mxu0 0.0
      %840 = vmatmul.mubr.f32.gmra.mxu0 %v572
      %v841 = vpop.f32.mrf.mxu0
      %v842 = vadd.f32 %v550, %v841
      %v843 = vpop.f32.mrf.mxu0
      %844 = vmatprep.mubr.f32.mxu0 0.0
      %845 = vmatmul.mubr.f32.gmra.mxu0 %v575
      %v846 = vpop.f32.mrf.mxu0
      %v847 = vadd.f32 %v550, %v846
      %v848 = vpop.f32.mrf.mxu0
      %849 = vmatprep.mubr.f32.mxu0 0.0
      %850 = vmatmul.mubr.f32.gmra.mxu0 %v578
      %v851 = vpop.f32.mrf.mxu0
      %v852 = vadd.f32 %v550, %v851
      %v853 = vpop.f32.mrf.mxu0
      %854 = vmatprep.mubr.f32.mxu0 0.0
      %855 = vmatmul.mubr.f32.gmra.mxu0 %v581
      %v856 = vpop.f32.mrf.mxu0
      %v857 = vadd.f32 %v550, %v856
      %v858 = vpop.f32.mrf.mxu0
      %859 = vmatprep.mubr.f32.mxu0 0.0
      %860 = vmatmul.mubr.f32.gmra.mxu0 %v584
      %v861 = vpop.f32.mrf.mxu0
      %v862 = vadd.f32 %v550, %v861
      %v863 = vpop.f32.mrf.mxu0
      %864 = vmatprep.mubr.f32.mxu0 0.0
      %865 = vmatmul.mubr.f32.gmra.mxu0 %v587
      %v866 = vpop.f32.mrf.mxu0
      %v867 = vadd.f32 %v550, %v866
      %v868 = vpop.f32.mrf.mxu0
      %869 = vmatprep.mubr.f32.mxu0 0.0
      %870 = vmatmul.mubr.f32.gmra.mxu0 %v590
      %v871 = vpop.f32.mrf.mxu0
      %v872 = vadd.f32 %v550, %v871
      %v873 = vpop.f32.mrf.mxu0
      %874 = vmatprep.mubr.f32.mxu0 0.0
      %875 = vmatmul.mubr.f32.gmra.mxu0 %v593
      %v876 = vpop.f32.mrf.mxu0
      %v877 = vadd.f32 %v550, %v876
      %v878 = vpop.f32.mrf.mxu0
      %879 = vmatprep.mubr.f32.mxu0 0.0
      %880 = vmatmul.mubr.f32.gmra.mxu0 %v596
      %v881 = vpop.f32.mrf.mxu0
      %v882 = vadd.f32 %v550, %v881
      %v883 = vpop.f32.mrf.mxu0
      %884 = vmatprep.mubr.f32.mxu0 0.0
      %885 = vmatmul.mubr.f32.gmra.mxu0 %v599
      %v886 = vpop.f32.mrf.mxu0
      %v887 = vadd.f32 %v550, %v886
      %v888 = vpop.f32.mrf.mxu0
      %889 = vmatprep.mubr.f32.mxu0 0.0
      %890 = vmatmul.mubr.f32.gmra.mxu0 %v602
      %v891 = vpop.f32.mrf.mxu0
      %v892 = vadd.f32 %v550, %v891
      %v893 = vpop.f32.mrf.mxu0
      %894 = vmatprep.mubr.f32.mxu0 0.0
      %895 = vmatmul.mubr.f32.gmra.mxu0 %v605
      %v896 = vpop.f32.mrf.mxu0
      %v897 = vadd.f32 %v550, %v896
      %v898 = vpop.f32.mrf.mxu0
      %899 = vmatprep.mubr.f32.mxu0 0.0
      %900 = vmatmul.mubr.f32.gmra.mxu0 %v608
      %v901 = vpop.f32.mrf.mxu0
      %v902 = vadd.f32 %v550, %v901
      %v903 = vpop.f32.mrf.mxu0
      %904 = vmatprep.mubr.f32.mxu0 0.0
      %905 = vmatmul.mubr.f32.gmra.mxu0 %v611
      %v906 = vpop.f32.mrf.mxu0
      %v907 = vadd.f32 %v550, %v906
      %v908 = vpop.f32.mrf.mxu0
      %909 = vmatprep.mubr.f32.mxu0 0.0
      %910 = vmatmul.mubr.f32.gmra.mxu0 %v614
      %v911 = vpop.f32.mrf.mxu0
      %v912 = vadd.f32 %v550, %v911
      %v913 = vpop.f32.mrf.mxu0
      %914 = vmatprep.mubr.f32.mxu0 0.0
      %915 = vmatmul.mubr.f32.gmra.mxu0 %v617
      %v916 = vpop.f32.mrf.mxu0
      %v917 = vadd.f32 %v550, %v916
      %v918 = vpop.f32.mrf.mxu0
      %919 = vmatprep.mubr.f32.mxu0 0.0
      %920 = vmatmul.mubr.f32.gmra.mxu0 %v620
      %v921 = vpop.f32.mrf.mxu0
      %v922 = vadd.f32 %v550, %v921
      %v923 = vpop.f32.mrf.mxu0
      %924 = vmatprep.mubr.f32.mxu0 0.0
      %925 = vmatmul.mubr.f32.gmra.mxu0 %v623
      %v926 = vpop.f32.mrf.mxu0
      %v927 = vadd.f32 %v550, %v926
      %v928 = vpop.f32.mrf.mxu0
      %929 = vmatprep.mubr.f32.mxu0 0.0
      %930 = vmatmul.mubr.f32.gmra.mxu0 %v626
      %v931 = vpop.f32.mrf.mxu0
      %v932 = vadd.f32 %v550, %v931
      %v933 = vpop.f32.mrf.mxu0
      %934 = vmatprep.mubr.f32.mxu0 0.0
      %935 = vmatmul.mubr.f32.gmra.mxu0 %v629
      %v936 = vpop.f32.mrf.mxu0
      %v937 = vadd.f32 %v550, %v936
      %v938 = vpop.f32.mrf.mxu0
      %939 = vmatprep.mubr.f32.mxu0 0.0
      %940 = vmatmul.mubr.f32.gmra.mxu0 %v632
      %v941 = vpop.f32.mrf.mxu0
      %v942 = vadd.f32 %v550, %v941
      %v943 = vpop.f32.mrf.mxu0
      %944 = vmatprep.mubr.f32.mxu0 0.0
      %945 = vmatmul.mubr.f32.gmra.mxu0 %v635
      %v946 = vpop.f32.mrf.mxu0
      %v947 = vadd.f32 %v550, %v946
      %v948 = vpop.f32.mrf.mxu0
      %949 = vmatprep.mubr.f32.mxu0 0.0
      %950 = vmatmul.mubr.f32.gmra.mxu0 %v638
      %v951 = vpop.f32.mrf.mxu0
      %v952 = vadd.f32 %v550, %v951
      %v953 = vpop.f32.mrf.mxu0
      %954 = vmatprep.mubr.f32.mxu0 0.0
      %955 = vmatmul.mubr.f32.gmra.mxu0 %v641
      %v956 = vpop.f32.mrf.mxu0
      %v957 = vadd.f32 %v550, %v956
      %v958 = vpop.f32.mrf.mxu0
      %959 = vmatprep.mubr.f32.mxu0 0.0
      %960 = vmatmul.mubr.f32.gmra.mxu0 %v644
      %v961 = vpop.f32.mrf.mxu0
      %v962 = vadd.f32 %v550, %v961
      %v963 = vpop.f32.mrf.mxu0
      %964 = vmatprep.mubr.f32.mxu0 0.0
      %965 = vmatmul.mubr.f32.gmra.mxu0 %v647
      %v966 = vpop.f32.mrf.mxu0
      %v967 = vadd.f32 %v550, %v966
      %v968 = vpop.f32.mrf.mxu0
      %969 = vmatprep.mubr.f32.mxu0 0.0
      %970 = vmatmul.mubr.f32.gmra.mxu0 %v650
      %v971 = vpop.f32.mrf.mxu0
      %v972 = vadd.f32 %v550, %v971
      %v973 = vpop.f32.mrf.mxu0
      %974 = vmatprep.mubr.f32.mxu0 0.0
      %975 = vmatmul.mubr.f32.gmra.mxu0 %v653
      %v976 = vpop.f32.mrf.mxu0
      %v977 = vadd.f32 %v550, %v976
      %v978 = vpop.f32.mrf.mxu0
      %979 = vmatprep.mubr.f32.mxu0 0.0
      %980 = vmatmul.mubr.f32.gmra.mxu0 %v656
      %v981 = vpop.f32.mrf.mxu0
      %v982 = vadd.f32 %v550, %v981
      %v983 = vpop.f32.mrf.mxu0
      %984 = vmatprep.mubr.f32.mxu0 0.0
      %985 = vmatmul.mubr.f32.gmra.mxu0 %v659
      %v986 = vpop.f32.mrf.mxu0
      %v987 = vadd.f32 %v550, %v986
      %v988 = vpop.f32.mrf.mxu0
      %989 = vmatprep.mubr.f32.mxu0 0.0
      %990 = vmatmul.mubr.f32.gmra.mxu0 %v662
      %v991 = vpop.f32.mrf.mxu0
      %v992 = vadd.f32 %v550, %v991
      %v993 = vpop.f32.mrf.mxu0
      %994 = vmatprep.mubr.f32.mxu0 0.0
      %995 = vmatmul.mubr.f32.gmra.mxu0 %v665
      %v996 = vpop.f32.mrf.mxu0
      %v997 = vadd.f32 %v550, %v996
      %v998 = vpop.f32.mrf.mxu0
      %999 = vmatprep.mubr.f32.mxu0 0.0
      %1000 = vmatmul.mubr.f32.gmra.mxu0 %v668
      %v1001 = vpop.f32.mrf.mxu0
      %v1002 = vadd.f32 %v550, %v1001
      %v1003 = vpop.f32.mrf.mxu0
      %1004 = vmatprep.mubr.f32.mxu0 0.0
      %1005 = vmatmul.mubr.f32.gmra.mxu0 %v671
      %v1006 = vpop.f32.mrf.mxu0
      %v1007 = vadd.f32 %v550, %v1006
      %v1008 = vpop.f32.mrf.mxu0
      %1009 = vmatprep.mubr.f32.mxu0 0.0
      %1010 = vmatmul.mubr.f32.gmra.mxu0 %v674
      %v1011 = vpop.f32.mrf.mxu0
      %v1012 = vadd.f32 %v550, %v1011
      %v1013 = vpop.f32.mrf.mxu0
      %1014 = vmatprep.mubr.f32.mxu0 0.0
      %1015 = vmatmul.mubr.f32.gmra.mxu0 %v677
      %v1016 = vpop.f32.mrf.mxu0
      %v1017 = vadd.f32 %v550, %v1016
      %v1018 = vpop.f32.mrf.mxu0
      %1019 = vmatprep.mubr.f32.mxu0 0.0
      %1020 = vmatmul.mubr.f32.gmra.mxu0 %v680
      %v1021 = vpop.f32.mrf.mxu0
      %v1022 = vadd.f32 %v550, %v1021
      %v1023 = vpop.f32.mrf.mxu0
      %1024 = vmatprep.mubr.f32.mxu0 0.0
      %1025 = vmatmul.mubr.f32.gmra.mxu0 %v683
      %v1026 = vpop.f32.mrf.mxu0
      %v1027 = vadd.f32 %v550, %v1026
      %v1028 = vpop.f32.mrf.mxu0
      %1029 = vmatprep.mubr.f32.mxu0 0.0
      %1030 = vmatmul.mubr.f32.gmra.mxu0 %v686
      %v1031 = vpop.f32.mrf.mxu0
      %v1032 = vadd.f32 %v550, %v1031
      %v1033 = vpop.f32.mrf.mxu0
      %1034 = vmatprep.mubr.f32.mxu0 0.0
      %1035 = vmatmul.mubr.f32.gmra.mxu0 %v689
      %v1036 = vpop.f32.mrf.mxu0
      %v1037 = vadd.f32 %v550, %v1036
      %v1038 = vpop.f32.mrf.mxu0
      %1039 = vmatprep.mubr.f32.mxu0 0.0
      %1040 = vmatmul.mubr.f32.gmra.mxu0 %v692
      %v1041 = vpop.f32.mrf.mxu0
      %v1042 = vadd.f32 %v550, %v1041
      %v1043 = vpop.f32.mrf.mxu0
      %1044 = vmatprep.mubr.f32.mxu0 0.0
      %1045 = vmatmul.mubr.f32.gmra.mxu0 %v695
      %v1046 = vpop.f32.mrf.mxu0
      %v1047 = vadd.f32 %v550, %v1046
      %v1048 = vpop.f32.mrf.mxu0
      %1049 = vmatprep.mubr.f32.mxu0 0.0
      %1050 = vmatmul.mubr.f32.gmra.mxu0 %v698
      %v1051 = vpop.f32.mrf.mxu0
      %v1052 = vadd.f32 %v550, %v1051
      %v1053 = vpop.f32.mrf.mxu0
      %1054 = vmatprep.mubr.f32.mxu0 0.0
      %1055 = vmatmul.mubr.f32.gmra.mxu0 %v701
      %v1056 = vpop.f32.mrf.mxu0
      %v1057 = vadd.f32 %v550, %v1056
      %v1058 = vpop.f32.mrf.mxu0
      %1059 = vmatprep.mubr.f32.mxu0 0.0
      %1060 = vmatmul.mubr.f32.gmra.mxu0 %v704
      %v1061 = vpop.f32.mrf.mxu0
      %v1062 = vadd.f32 %v550, %v1061
      %v1063 = vpop.f32.mrf.mxu0
      %1064 = vmatprep.mubr.f32.mxu0 0.0
      %1065 = vmatmul.mubr.f32.gmra.mxu0 %v707
      %v1066 = vpop.f32.mrf.mxu0
      %v1067 = vadd.f32 %v550, %v1066
      %v1068 = vpop.f32.mrf.mxu0
      %1069 = vmatprep.mubr.f32.mxu0 0.0
      %1070 = vmatmul.mubr.f32.gmra.mxu0 %v710
      %v1071 = vpop.f32.mrf.mxu0
      %v1072 = vadd.f32 %v550, %v1071
      %v1073 = vpop.f32.mrf.mxu0
      %1074 = vmatprep.mubr.f32.mxu0 0.0
      %1075 = vmatmul.mubr.f32.gmra.mxu0 %v713
      %v1076 = vpop.f32.mrf.mxu0
      %v1077 = vadd.f32 %v550, %v1076
      %v1078 = vpop.f32.mrf.mxu0
      %1079 = vmatprep.mubr.f32.mxu0 0.0
      %1080 = vmatmul.mubr.f32.gmra.mxu0 %v716
      %v1081 = vpop.f32.mrf.mxu0
      %v1082 = vadd.f32 %v550, %v1081
      %v1083 = vpop.f32.mrf.mxu0
      %1084 = vmatprep.mubr.f32.mxu0 0.0
      %1085 = vmatmul.mubr.f32.gmra.mxu0 %v719
      %v1086 = vpop.f32.mrf.mxu0
      %v1087 = vadd.f32 %v550, %v1086
      %v1088 = vpop.f32.mrf.mxu0
      %1089 = vmatprep.mubr.f32.mxu0 0.0
      %1090 = vmatmul.mubr.f32.gmra.mxu0 %v722
      %v1091 = vpop.f32.mrf.mxu0
      %v1092 = vadd.f32 %v550, %v1091
      %v1093 = vpop.f32.mrf.mxu0
      %1094 = vmatprep.mubr.f32.mxu0 0.0
      %1095 = vmatmul.mubr.f32.gmra.mxu0 %v725
      %v1096 = vpop.f32.mrf.mxu0
      %v1097 = vadd.f32 %v550, %v1096
      %v1098 = vpop.f32.mrf.mxu0
      %1099 = vmatprep.mubr.f32.mxu0 0.0
      %1100 = vmatmul.mubr.f32.gmra.mxu0 %v728
      %v1101 = vpop.f32.mrf.mxu0
      %v1102 = vadd.f32 %v550, %v1101
      %v1103 = vpop.f32.mrf.mxu0
      %1104 = vmatprep.mubr.f32.mxu0 0.0
      %1105 = vmatmul.mubr.f32.gmra.mxu0 %v731
      %v1106 = vpop.f32.mrf.mxu0
      %v1107 = vadd.f32 %v550, %v1106
      %v1108 = vpop.f32.mrf.mxu0
      %1109 = vmatprep.mubr.f32.mxu0 0.0
      %1110 = vmatmul.mubr.f32.gmra.mxu0 %v734
      %v1111 = vpop.f32.mrf.mxu0
      %v1112 = vadd.f32 %v550, %v1111
      %v1113 = vpop.f32.mrf.mxu0
      %1114 = vmatprep.mubr.f32.mxu0 0.0
      %1115 = vmatmul.mubr.f32.gmra.mxu0 %v737
      %v1116 = vpop.f32.mrf.mxu0
      %v1117 = vadd.f32 %v550, %v1116
      %v1118 = vpop.f32.mrf.mxu0
      %1119 = vmatprep.mubr.f32.mxu0 0.0
      %1120 = vmatmul.mubr.f32.gmra.mxu0 %v740
      %v1121 = vpop.f32.mrf.mxu0
      %v1122 = vadd.f32 %v550, %v1121
      %v1123 = vpop.f32.mrf.mxu0
      %1124 = vmatprep.mubr.f32.mxu0 0.0
      %1125 = vmatmul.mubr.f32.gmra.mxu0 %v743
      %v1126 = vpop.f32.mrf.mxu0
      %v1127 = vadd.f32 %v550, %v1126
      %v1128 = vpop.f32.mrf.mxu0
      %1129 = vdwg.mxu0
      %v1130 = vmul.f32 %v812, 0.2
      %v1131 = vmul.f32 %v817, 0.2
      %v1132 = vmul.f32 %v822, 0.2
      %v1133 = vmul.f32 %v827, 0.2
      %v1134 = vmul.f32 %v832, 0.2
      %v1135 = vmul.f32 %v837, 0.2
      %v1136 = vmul.f32 %v842, 0.2
      %v1137 = vmul.f32 %v847, 0.2
      %v1138 = vmul.f32 %v852, 0.2
      %v1139 = vmul.f32 %v857, 0.2
      %v1140 = vmul.f32 %v862, 0.2
      %v1141 = vmul.f32 %v867, 0.2
      %v1142 = vmul.f32 %v872, 0.2
      %v1143 = vmul.f32 %v877, 0.2
      %v1144 = vmul.f32 %v882, 0.2
      %v1145 = vmul.f32 %v887, 0.2
      %v1146 = vmul.f32 %v892, 0.2
      %v1147 = vmul.f32 %v897, 0.2
      %v1148 = vmul.f32 %v902, 0.2
      %v1149 = vmul.f32 %v907, 0.2
      %v1150 = vmul.f32 %v912, 0.2
      %v1151 = vmul.f32 %v917, 0.2
      %v1152 = vmul.f32 %v922, 0.2
      %v1153 = vmul.f32 %v927, 0.2
      %v1154 = vmul.f32 %v932, 0.2
      %v1155 = vmul.f32 %v937, 0.2
      %v1156 = vmul.f32 %v942, 0.2
      %v1157 = vmul.f32 %v947, 0.2
      %v1158 = vmul.f32 %v952, 0.2
      %v1159 = vmul.f32 %v957, 0.2
      %v1160 = vmul.f32 %v962, 0.2
      %v1161 = vmul.f32 %v967, 0.2
      %v1162 = vmul.f32 %v972, 0.2
      %v1163 = vmul.f32 %v977, 0.2
      %v1164 = vmul.f32 %v982, 0.2
      %v1165 = vmul.f32 %v987, 0.2
      %v1166 = vmul.f32 %v992, 0.2
      %v1167 = vmul.f32 %v997, 0.2
      %v1168 = vmul.f32 %v1002, 0.2
      %v1169 = vmul.f32 %v1007, 0.2
      %v1170 = vmul.f32 %v1012, 0.2
      %v1171 = vmul.f32 %v1017, 0.2
      %v1172 = vmul.f32 %v1022, 0.2
      %v1173 = vmul.f32 %v1027, 0.2
      %v1174 = vmul.f32 %v1032, 0.2
      %v1175 = vmul.f32 %v1037, 0.2
      %v1176 = vmul.f32 %v1042, 0.2
      %v1177 = vmul.f32 %v1047, 0.2
      %v1178 = vmul.f32 %v1052, 0.2
      %v1179 = vmul.f32 %v1057, 0.2
      %v1180 = vmul.f32 %v1062, 0.2
      %v1181 = vmul.f32 %v1067, 0.2
      %v1182 = vmul.f32 %v1072, 0.2
      %v1183 = vmul.f32 %v1077, 0.2
      %v1184 = vmul.f32 %v1082, 0.2
      %v1185 = vmul.f32 %v1087, 0.2
      %v1186 = vmul.f32 %v1092, 0.2
      %v1187 = vmul.f32 %v1097, 0.2
      %v1188 = vmul.f32 %v1102, 0.2
      %v1189 = vmul.f32 %v1107, 0.2
      %v1190 = vmul.f32 %v1112, 0.2
      %v1191 = vmul.f32 %v1117, 0.2
      %v1192 = vmul.f32 %v1122, 0.2
      %v1193 = vmul.f32 %v1127, 0.2
      %v1194 = vmax.f32 %v812, %v1130
      %v1195 = vmax.f32 %v817, %v1131
      %v1196 = vmax.f32 %v822, %v1132
      %v1197 = vmax.f32 %v827, %v1133
      %v1198 = vmax.f32 %v832, %v1134
      %v1199 = vmax.f32 %v837, %v1135
      %v1200 = vmax.f32 %v842, %v1136
      %v1201 = vmax.f32 %v847, %v1137
      %v1202 = vmax.f32 %v852, %v1138
      %v1203 = vmax.f32 %v857, %v1139
      %v1204 = vmax.f32 %v862, %v1140
      %v1205 = vmax.f32 %v867, %v1141
      %v1206 = vmax.f32 %v872, %v1142
      %v1207 = vmax.f32 %v877, %v1143
      %v1208 = vmax.f32 %v882, %v1144
      %v1209 = vmax.f32 %v887, %v1145
      %v1210 = vmax.f32 %v892, %v1146
      %v1211 = vmax.f32 %v897, %v1147
      %v1212 = vmax.f32 %v902, %v1148
      %v1213 = vmax.f32 %v907, %v1149
      %v1214 = vmax.f32 %v912, %v1150
      %v1215 = vmax.f32 %v917, %v1151
      %v1216 = vmax.f32 %v922, %v1152
      %v1217 = vmax.f32 %v927, %v1153
      %v1218 = vmax.f32 %v932, %v1154
      %v1219 = vmax.f32 %v937, %v1155
      %v1220 = vmax.f32 %v942, %v1156
      %v1221 = vmax.f32 %v947, %v1157
      %v1222 = vmax.f32 %v952, %v1158
      %v1223 = vmax.f32 %v957, %v1159
      %v1224 = vmax.f32 %v962, %v1160
      %v1225 = vmax.f32 %v967, %v1161
      %v1226 = vmax.f32 %v972, %v1162
      %v1227 = vmax.f32 %v977, %v1163
      %v1228 = vmax.f32 %v982, %v1164
      %v1229 = vmax.f32 %v987, %v1165
      %v1230 = vmax.f32 %v992, %v1166
      %v1231 = vmax.f32 %v997, %v1167
      %v1232 = vmax.f32 %v1002, %v1168
      %v1233 = vmax.f32 %v1007, %v1169
      %v1234 = vmax.f32 %v1012, %v1170
      %v1235 = vmax.f32 %v1017, %v1171
      %v1236 = vmax.f32 %v1022, %v1172
      %v1237 = vmax.f32 %v1027, %v1173
      %v1238 = vmax.f32 %v1032, %v1174
      %v1239 = vmax.f32 %v1037, %v1175
      %v1240 = vmax.f32 %v1042, %v1176
      %v1241 = vmax.f32 %v1047, %v1177
      %v1242 = vmax.f32 %v1052, %v1178
      %v1243 = vmax.f32 %v1057, %v1179
      %v1244 = vmax.f32 %v1062, %v1180
      %v1245 = vmax.f32 %v1067, %v1181
      %v1246 = vmax.f32 %v1072, %v1182
      %v1247 = vmax.f32 %v1077, %v1183
      %v1248 = vmax.f32 %v1082, %v1184
      %v1249 = vmax.f32 %v1087, %v1185
      %v1250 = vmax.f32 %v1092, %v1186
      %v1251 = vmax.f32 %v1097, %v1187
      %v1252 = vmax.f32 %v1102, %v1188
      %v1253 = vmax.f32 %v1107, %v1189
      %v1254 = vmax.f32 %v1112, %v1190
      %v1255 = vmax.f32 %v1117, %v1191
      %v1256 = vmax.f32 %v1122, %v1192
      %v1257 = vmax.f32 %v1127, %v1193
      %v1258 = vsel %vm552, %v1194, -inf
      %v1259 = vsel %vm552, %v1202, -inf
      %v1260 = vmax.f32 %v1258, %v1259
      %v1261 = vsel %vm552, %v1210, -inf
      %v1262 = vmax.f32 %v1260, %v1261
      %v1263 = vsel %vm552, %v1218, -inf
      %v1264 = vmax.f32 %v1262, %v1263
      %v1265 = vsel %vm552, %v1226, -inf
      %v1266 = vmax.f32 %v1264, %v1265
      %v1267 = vsel %vm552, %v1234, -inf
      %v1268 = vmax.f32 %v1266, %v1267
      %v1269 = vsel %vm552, %v1242, -inf
      %v1270 = vmax.f32 %v1268, %v1269
      %v1271 = vsel %vm552, %v1250, -inf
      %v1272 = vmax.f32 %v1270, %v1271
      %v1273 = vsel %vm552, %v1195, -inf
      %v1274 = vsel %vm552, %v1203, -inf
      %v1275 = vmax.f32 %v1273, %v1274
      %v1276 = vsel %vm552, %v1211, -inf
      %v1277 = vmax.f32 %v1275, %v1276
      %v1278 = vsel %vm552, %v1219, -inf
      %v1279 = vmax.f32 %v1277, %v1278
      %v1280 = vsel %vm552, %v1227, -inf
      %v1281 = vmax.f32 %v1279, %v1280
      %v1282 = vsel %vm552, %v1235, -inf
      %v1283 = vmax.f32 %v1281, %v1282
      %v1284 = vsel %vm552, %v1243, -inf
      %v1285 = vmax.f32 %v1283, %v1284
      %v1286 = vsel %vm552, %v1251, -inf
      %v1287 = vmax.f32 %v1285, %v1286
      %v1288 = vsel %vm552, %v1196, -inf
      %v1289 = vsel %vm552, %v1204, -inf
      %v1290 = vmax.f32 %v1288, %v1289
      %v1291 = vsel %vm552, %v1212, -inf
      %v1292 = vmax.f32 %v1290, %v1291
      %v1293 = vsel %vm552, %v1220, -inf
      %v1294 = vmax.f32 %v1292, %v1293
      %v1295 = vsel %vm552, %v1228, -inf
      %v1296 = vmax.f32 %v1294, %v1295
      %v1297 = vsel %vm552, %v1236, -inf
      %v1298 = vmax.f32 %v1296, %v1297
      %v1299 = vsel %vm552, %v1244, -inf
      %v1300 = vmax.f32 %v1298, %v1299
      %v1301 = vsel %vm552, %v1252, -inf
      %v1302 = vmax.f32 %v1300, %v1301
      %v1303 = vsel %vm552, %v1197, -inf
      %v1304 = vsel %vm552, %v1205, -inf
      %v1305 = vmax.f32 %v1303, %v1304
      %v1306 = vsel %vm552, %v1213, -inf
      %v1307 = vmax.f32 %v1305, %v1306
      %v1308 = vsel %vm552, %v1221, -inf
      %v1309 = vmax.f32 %v1307, %v1308
      %v1310 = vsel %vm552, %v1229, -inf
      %v1311 = vmax.f32 %v1309, %v1310
      %v1312 = vsel %vm552, %v1237, -inf
      %v1313 = vmax.f32 %v1311, %v1312
      %v1314 = vsel %vm552, %v1245, -inf
      %v1315 = vmax.f32 %v1313, %v1314
      %v1316 = vsel %vm552, %v1253, -inf
      %v1317 = vmax.f32 %v1315, %v1316
      %v1318 = vsel %vm552, %v1198, -inf
      %v1319 = vsel %vm552, %v1206, -inf
      %v1320 = vmax.f32 %v1318, %v1319
      %v1321 = vsel %vm552, %v1214, -inf
      %v1322 = vmax.f32 %v1320, %v1321
      %v1323 = vsel %vm552, %v1222, -inf
      %v1324 = vmax.f32 %v1322, %v1323
      %v1325 = vsel %vm552, %v1230, -inf
      %v1326 = vmax.f32 %v1324, %v1325
      %v1327 = vsel %vm552, %v1238, -inf
      %v1328 = vmax.f32 %v1326, %v1327
      %v1329 = vsel %vm552, %v1246, -inf
      %v1330 = vmax.f32 %v1328, %v1329
      %v1331 = vsel %vm552, %v1254, -inf
      %v1332 = vmax.f32 %v1330, %v1331
      %v1333 = vsel %vm552, %v1199, -inf
      %v1334 = vsel %vm552, %v1207, -inf
      %v1335 = vmax.f32 %v1333, %v1334
      %v1336 = vsel %vm552, %v1215, -inf
      %v1337 = vmax.f32 %v1335, %v1336
      %v1338 = vsel %vm552, %v1223, -inf
      %v1339 = vmax.f32 %v1337, %v1338
      %v1340 = vsel %vm552, %v1231, -inf
      %v1341 = vmax.f32 %v1339, %v1340
      %v1342 = vsel %vm552, %v1239, -inf
      %v1343 = vmax.f32 %v1341, %v1342
      %v1344 = vsel %vm552, %v1247, -inf
      %v1345 = vmax.f32 %v1343, %v1344
      %v1346 = vsel %vm552, %v1255, -inf
      %v1347 = vmax.f32 %v1345, %v1346
      %v1348 = vsel %vm552, %v1200, -inf
      %v1349 = vsel %vm552, %v1208, -inf
      %v1350 = vmax.f32 %v1348, %v1349
      %v1351 = vsel %vm552, %v1216, -inf
      %v1352 = vmax.f32 %v1350, %v1351
      %v1353 = vsel %vm552, %v1224, -inf
      %v1354 = vmax.f32 %v1352, %v1353
      %v1355 = vsel %vm552, %v1232, -inf
      %v1356 = vmax.f32 %v1354, %v1355
      %v1357 = vsel %vm552, %v1240, -inf
      %v1358 = vmax.f32 %v1356, %v1357
      %v1359 = vsel %vm552, %v1248, -inf
      %v1360 = vmax.f32 %v1358, %v1359
      %v1361 = vsel %vm552, %v1256, -inf
      %v1362 = vmax.f32 %v1360, %v1361
      %v1363 = vsel %vm552, %v1201, -inf
      %v1364 = vsel %vm552, %v1209, -inf
      %v1365 = vmax.f32 %v1363, %v1364
      %v1366 = vsel %vm552, %v1217, -inf
      %v1367 = vmax.f32 %v1365, %v1366
      %v1368 = vsel %vm552, %v1225, -inf
      %v1369 = vmax.f32 %v1367, %v1368
      %v1370 = vsel %vm552, %v1233, -inf
      %v1371 = vmax.f32 %v1369, %v1370
      %v1372 = vsel %vm552, %v1241, -inf
      %v1373 = vmax.f32 %v1371, %v1372
      %v1374 = vsel %vm552, %v1249, -inf
      %v1375 = vmax.f32 %v1373, %v1374
      %v1376 = vsel %vm552, %v1257, -inf
      %v1377 = vmax.f32 %v1375, %v1376
      %1378 = vst.msk [vmem:[%s271] sm:$0xff] %vm552, %v1272
      %1379 = vst.msk [vmem:[%s271 + $0x8] sm:$0xff] %vm552, %v1287
      %1380 = vst.msk [vmem:[%s271 + $0x10] sm:$0xff] %vm552, %v1302
      %1381 = vst.msk [vmem:[%s271 + $0x18] sm:$0xff] %vm552, %v1317
      %1382 = vst.msk [vmem:[%s271 + $0x20] sm:$0xff] %vm552, %v1332
      %1383 = vst.msk [vmem:[%s271 + $0x28] sm:$0xff] %vm552, %v1347
      %1384 = vst.msk [vmem:[%s271 + $0x30] sm:$0xff] %vm552, %v1362
      %1385 = vst.msk [vmem:[%s271 + $0x38] sm:$0xff] %vm552, %v1377
      %s1386 = smul.u32 8, %s20
      %p1387 = scmp.lt.s32.totalorder %s19, 1
      %s1388 = scalar_select %p1387, %s19, 1
      %p1389 = scmp.lt.s32.totalorder %s1386, 7
      %s1390 = scalar_select %p1389, %s1386, 7
      %s1391 = smul.addr %s1388, 8
      %s1392 = sadd.s32 %s1390, %s1391
      %s1393 = smul.addr %s1392, 8
      %s1394 = scalar_lea.vmem %s4, %s1393
      // Predicated region
      $region37: #{dgcnn_partseg_forward.5} parent=35 // pred_check
        %p1395 = pneg %p145
      $region38: #{dgcnn_partseg_forward.5} parent=35 // pred_check_branch
        %1397 = sbr.rel (%p1395) target = $region40
      $region39: #{dgcnn_partseg_forward.5} parent=35 // pred_region
        %s1398 = smul.u32 8, %s20
      $region40: #{dgcnn_partseg_forward.5} parent=35 // pred_fallthru
        _
    $region36: #{dgcnn_partseg_forward.5} parent=5 // pred_fallthru
      _
    %p1399 = scmp.le.s32.totalorder 2, %s10
    // Predicated region
    $region41: #{dgcnn_partseg_forward.5} parent=5 // pred_check
      %p1400 = pneg %p1399
    $region42: #{dgcnn_partseg_forward.5} parent=5 // pred_check_branch
      %1402 = sbr.rel (%p1400) target = $region44
    $region43: #{dgcnn_partseg_forward.5} parent=5 // pred_region
      %s1403 = ssub.s32 %s10, 2
      // Predicated region
      $region45: #{dgcnn_partseg_forward.5} parent=43 // pred_check
        %p1404 = pneg %p151
      $region46: #{dgcnn_partseg_forward.5} parent=43 // pred_check_branch
        %1406 = sbr.rel (%p1404) target = $region48
      $region47: #{dgcnn_partseg_forward.5} parent=43 // pred_region
        %s1407 = smul.u32 8, %s22
        %p1408 = scmp.lt.s32.totalorder %s21, 1
        %s1409 = scalar_select %p1408, %s21, 1
        %p1410 = scmp.lt.s32.totalorder %s1407, 7
        %s1411 = scalar_select %p1410, %s1407, 7
        %s1412 = smul.addr %s1409, 8
        %s1413 = sadd.s32 %s1411, %s1412
        %s1414 = smul.addr %s1413, 8
        %s1415 = scalar_lea.vmem %s4, %s1414
      $region48: #{dgcnn_partseg_forward.5} parent=43 // pred_fallthru
        _
    $region44: #{dgcnn_partseg_forward.5} parent=5 // pred_fallthru
      _
  $region6: #{dgcnn_partseg_forward.5} parent=0 // loop_footer
    %s14 = sadd.s32 1, %s10
  $region7: #{dgcnn_partseg_forward.5} parent=0 // loop_footer_branch
    %9 = sbr.rel target = $region3
  $region8: #{dgcnn_partseg_forward.5} parent=0 // loop_exit
    _

// kernel: dgcnn_partseg_forward.7
$region0: #{dgcnn_partseg_forward.7}
  #allocation0 [shape = 'u32[]', space=smem, size = 0x4, offset = 0x4, fixed_abs, tag = 'smem constant byte address 0x4 - core index']
  #allocation1 [shape = 'u32[144,128]{1,0:T(1,128)}', space=vmem, size = 0x12000, scoped, tag = 'internal scratch']
  %s0 = inlined_call_operand.vmem [shape: f32[2,8,64,64], index: 0, kind: input, shape index: {}]
  %s1 = inlined_call_operand.vmem [shape: f32[2,64,64], index: 1, kind: input, shape index: {}]
  %s2 = inlined_call_operand.vmem [shape: f32[2,64,64], index: 2, kind: output, shape index: {}]
  %s3 = sld [smem:[#allocation0]]
  $region41: #{dgcnn_partseg_forward.7} parent=0
    _
  %s5 = ssub.s32 1, %s3
  %s6 = scalar_select 0, %s5, %s3
  loop: start=0, step=1, limit=4
  $region2: #{dgcnn_partseg_forward.7} parent=0 // loop_pre_header
    _
  $region3: #{dgcnn_partseg_forward.7} parent=0 // loop_header
    %s8 = sphi 0, %s12
    %p9 = scmp.ge.s32.totalorder %s8, 4
    %s15 = sphi 0, %s27
    %s16 = sphi 0, %s23
    %s17 = sphi 0, %s15
    %s18 = sphi 0, %s16
    %s19 = sphi 0, %s17
    %s20 = sphi 0, %s18
    %s32 = sphi 0, %s34
    %s35 = sphi 0, %s32
    %s36 = sphi 0, %s35
    %s52 = sphi 0, %s36
    %s60 = sphi 0, %s62
    %s63 = sphi 0, %s60
    %s64 = sphi 0, %s63
    %s80 = sphi 0, %s64
    %s88 = sphi 0, %s90
    %s91 = sphi 0, %s88
    %s92 = sphi 0, %s91
    %s108 = sphi 0, %s92
  $region4: #{dgcnn_partseg_forward.7} parent=0 // loop_header_branch
    %11 = sbr.rel (%p9) target = $region8
  $region5: #{dgcnn_partseg_forward.7} parent=0 // loop_body
    %s13 = ssub.s32 %s8, 1
    %s14 = ssub.s32 %s8, 2
    %s21 = sadd.s32 1, %s16
    %p22 = scmp.ge.s32.totalorder %s21, 1
    %s23 = scalar_select %p22, 0, %s21
    %s24 = sadd.s32 1, %s15
    %s25 = scalar_select %p22, %s24, %s15
    %p26 = scmp.ge.s32.totalorder %s25, 2
    %s27 = scalar_select %p26, 0, %s25
    %s28 = ssub.s32 %s15, %s27
    %s29 = ssub.s32 %s16, %s23
    %s30 = sor.u32 %s28, %s29
    %p31 = scmp.eq.s32.totalorder %s30, 0
    %s33 = sadd.s32 %s32, 1
    %s34 = scalar_select %p31, %s32, %s33
    %p37 = pneg %p31
    %p38 = scmp.eq.s32.totalorder %s8, 1
    %p39 = por %p37, %p38
    %p40 = scmp.ne.s32.totalorder %s32, %s35
    %p41 = scmp.eq.s32.totalorder %s8, 0
    %p42 = por %p40, %p41
    %p43 = scmp.ne.s32.totalorder %s32, %s35
    %p44 = scmp.eq.s32.totalorder %s13, 1
    %p45 = por %p43, %p44
    %p46 = scmp.ne.s32.totalorder %s35, %s36
    %p47 = scmp.eq.s32.totalorder %s13, 0
    %p48 = por %p46, %p47
    %p49 = scmp.ne.s32.totalorder %s35, %s36
    %p50 = scmp.eq.s32.totalorder %s14, 1
    %p51 = por %p49, %p50
    %p53 = scmp.ne.s32.totalorder %s36, %s52
    %p54 = scmp.eq.s32.totalorder %s14, 0
    %p55 = por %p53, %p54
    %s56 = ssub.s32 %s15, %s27
    %s57 = ssub.s32 %s16, %s23
    %s58 = sor.u32 %s56, %s57
    %p59 = scmp.eq.s32.totalorder %s58, 0
    %s61 = sadd.s32 %s60, 1
    %s62 = scalar_select %p59, %s60, %s61
    %p65 = pneg %p59
    %p66 = scmp.eq.s32.totalorder %s8, 1
    %p67 = por %p65, %p66
    %p68 = scmp.ne.s32.totalorder %s60, %s63
    %p69 = scmp.eq.s32.totalorder %s8, 0
    %p70 = por %p68, %p69
    %p71 = scmp.ne.s32.totalorder %s60, %s63
    %p72 = scmp.eq.s32.totalorder %s13, 1
    %p73 = por %p71, %p72
    %p74 = scmp.ne.s32.totalorder %s63, %s64
    %p75 = scmp.eq.s32.totalorder %s13, 0
    %p76 = por %p74, %p75
    %p77 = scmp.ne.s32.totalorder %s63, %s64
    %p78 = scmp.eq.s32.totalorder %s14, 1
    %p79 = por %p77, %p78
    %p81 = scmp.ne.s32.totalorder %s64, %s80
    %p82 = scmp.eq.s32.totalorder %s14, 0
    %p83 = por %p81, %p82
    %s84 = ssub.s32 %s15, %s27
    %s85 = ssub.s32 %s16, %s23
    %s86 = sor.u32 %s84, %s85
    %p87 = scmp.eq.s32.totalorder %s86, 0
    %s89 = sadd.s32 %s88, 1
    %s90 = scalar_select %p87, %s88, %s89
    %p93 = pneg %p87
    %p94 = scmp.eq.s32.totalorder %s8, 1
    %p95 = por %p93, %p94
    %p96 = scmp.ne.s32.totalorder %s88, %s91
    %p97 = scmp.eq.s32.totalorder %s8, 0
    %p98 = por %p96, %p97
    %p99 = scmp.ne.s32.totalorder %s88, %s91
    %p100 = scmp.eq.s32.totalorder %s13, 1
    %p101 = por %p99, %p100
    %p102 = scmp.ne.s32.totalorder %s91, %s92
    %p103 = scmp.eq.s32.totalorder %s13, 0
    %p104 = por %p102, %p103
    %p105 = scmp.ne.s32.totalorder %s91, %s92
    %p106 = scmp.eq.s32.totalorder %s14, 1
    %p107 = por %p105, %p106
    %p109 = scmp.ne.s32.totalorder %s92, %s108
    %p110 = scmp.eq.s32.totalorder %s14, 0
    %p111 = por %p109, %p110
    %p112 = scmp.le.s32.totalorder 1, %s8
    %p113 = scmp.lt.s32.totalorder %s8, 3
    %p114 = pnand %p112, %p113
    %p115 = pneg %p114
    // Predicated region
    $region9: #{dgcnn_partseg_forward.7} parent=5 // pred_check
      _
    $region10: #{dgcnn_partseg_forward.7} parent=5 // pred_check_branch
      %117 = sbr.rel (%p114) target = $region12
    $region11: #{dgcnn_partseg_forward.7} parent=5 // pred_region
      %s118 = ssub.s32 %s8, 1
    $region12: #{dgcnn_partseg_forward.7} parent=5 // pred_fallthru
      _
    %p119 = scmp.lt.s32.totalorder %s8, 2
    // Predicated region
    $region13: #{dgcnn_partseg_forward.7} parent=5 // pred_check
      %p120 = pneg %p119
    $region14: #{dgcnn_partseg_forward.7} parent=5 // pred_check_branch
      %122 = sbr.rel (%p120) target = $region16
    $region15: #{dgcnn_partseg_forward.7} parent=5 // pred_region
      // Predicated region
      $region17: #{dgcnn_partseg_forward.7} parent=15 // pred_check
        %p123 = pneg %p42
      $region18: #{dgcnn_partseg_forward.7} parent=15 // pred_check_branch
        %125 = sbr.rel (%p123) target = $region20
      $region19: #{dgcnn_partseg_forward.7} parent=15 // pred_region
        %s126 = smul.u32 8, %s16
        %p127 = scmp.lt.s32.totalorder %s15, 1
        %s128 = scalar_select %p127, %s15, 1
        %p129 = scmp.lt.s32.totalorder %s126, 7
        %s130 = scalar_select %p129, %s126, 7
        %s131 = smul.addr %s128, 64
        %s132 = sadd.s32 %s130, %s131
        %s133 = smul.addr %s132, 8
        %s134 = scalar_lea.vmem %s0, %s133
        %s135 = smul.u32 8, %s16
      $region20: #{dgcnn_partseg_forward.7} parent=15 // pred_fallthru
        _
      // Predicated region
      $region21: #{dgcnn_partseg_forward.7} parent=15 // pred_check
        %p136 = pneg %p70
      $region22: #{dgcnn_partseg_forward.7} parent=15 // pred_check_branch
        %138 = sbr.rel (%p136) target = $region24
      $region23: #{dgcnn_partseg_forward.7} parent=15 // pred_region
        %s139 = smul.u32 8, %s16
        %p140 = scmp.lt.s32.totalorder %s15, 1
        %s141 = scalar_select %p140, %s15, 1
        %p142 = scmp.lt.s32.totalorder %s139, 7
        %s143 = scalar_select %p142, %s139, 7
        %s144 = smul.addr %s141, 8
        %s145 = sadd.s32 %s143, %s144
        %s146 = smul.addr %s145, 8
        %s147 = scalar_lea.vmem %s1, %s146
        %s148 = smul.u32 8, %s16
      $region24: #{dgcnn_partseg_forward.7} parent=15 // pred_fallthru
        _
    $region16: #{dgcnn_partseg_forward.7} parent=5 // pred_fallthru
      _
    %p149 = scmp.le.s32.totalorder 1, %s8
    %p150 = scmp.lt.s32.totalorder %s8, 3
    %p151 = pnand %p149, %p150
    %p152 = pneg %p151
    // Predicated region
    $region25: #{dgcnn_partseg_forward.7} parent=5 // pred_check
      _
    $region26: #{dgcnn_partseg_forward.7} parent=5 // pred_check_branch
      %154 = sbr.rel (%p151) target = $region28
    $region27: #{dgcnn_partseg_forward.7} parent=5 // pred_region
      %s155 = ssub.s32 %s8, 1
      %s156 = smul.u32 8, %s18
      %p157 = scmp.lt.s32.totalorder %s17, 1
      %s158 = scalar_select %p157, %s17, 1
      %p159 = scmp.lt.s32.totalorder %s156, 7
      %s160 = scalar_select %p159, %s156, 7
      %s161 = smul.addr %s158, 64
      %s162 = sadd.s32 %s160, %s161
      %s163 = smul.addr %s162, 8
      %s164 = scalar_lea.vmem %s0, %s163
      %p165 = pneg %p48
      %p166 = pneg %p45
      %s167 = smul.u32 8, %s18
      %p168 = scmp.lt.s32.totalorder %s17, 1
      %s169 = scalar_select %p168, %s17, 1
      %p170 = scmp.lt.s32.totalorder %s167, 7
      %s171 = scalar_select %p170, %s167, 7
      %s172 = smul.addr %s169, 8
      %s173 = sadd.s32 %s171, %s172
      %s174 = smul.addr %s173, 8
      %s175 = scalar_lea.vmem %s1, %s174
      %p176 = pneg %p76
      %p177 = pneg %p73
      %p178 = pneg %p104
      %p179 = pneg %p101
      %s180 = smul.u32 8, %s18
      %p181 = scmp.lt.s32.totalorder %s17, 1
      %s182 = scalar_select %p181, %s17, 1
      %p183 = scmp.lt.s32.totalorder %s180, 7
      %s184 = scalar_select %p183, %s180, 7
      %s185 = smul.addr %s182, 8
      %s186 = sadd.s32 %s184, %s185
      %s187 = smul.addr %s186, 8
      %s188 = scalar_lea.vmem %s2, %s187
      %s189 = smul.u32 8, %s18
      %p190 = scmp.lt.s32.totalorder %s17, 1
      %s191 = scalar_select %p190, %s17, 1
      %p192 = scmp.lt.s32.totalorder %s189, 7
      %s193 = scalar_select %p192, %s189, 7
      %s194 = smul.addr %s191, 64
      %s195 = sadd.s32 %s193, %s194
      %s196 = smul.addr %s195, 8
      %s197 = scalar_lea.vmem %s0, %s196
      %s198 = smul.u32 8, %s18
      %s199 = smul.u32 8, %s18
      %p200 = scmp.lt.s32.totalorder %s17, 1
      %s201 = scalar_select %p200, %s17, 1
      %p202 = scmp.lt.s32.totalorder %s199, 7
      %s203 = scalar_select %p202, %s199, 7
      %s204 = smul.addr %s201, 8
      %s205 = sadd.s32 %s203, %s204
      %s206 = smul.addr %s205, 8
      %s207 = scalar_lea.vmem %s1, %s206
      %s208 = smul.u32 8, %s18
      %s209 = smul.u32 8, %s18
      %p210 = scmp.lt.s32.totalorder %s17, 1
      %s211 = scalar_select %p210, %s17, 1
      %p212 = scmp.lt.s32.totalorder %s209, 7
      %s213 = scalar_select %p212, %s209, 7
      %s214 = smul.addr %s211, 8
      %s215 = sadd.s32 %s213, %s214
      %s216 = smul.addr %s215, 8
      %s217 = scalar_lea.vmem %s2, %s216
      %s218 = smul.u32 8, %s18
      %v219 = vld [vmem:[%s197] sm:$0xff]
      %v220 = vld [vmem:[%s197 + $0x8] sm:$0xff]
      %v221 = vld [vmem:[%s197 + $0x10] sm:$0xff]
      %v222 = vld [vmem:[%s197 + $0x18] sm:$0xff]
      %v223 = vld [vmem:[%s197 + $0x20] sm:$0xff]
      %v224 = vld [vmem:[%s197 + $0x28] sm:$0xff]
      %v225 = vld [vmem:[%s197 + $0x30] sm:$0xff]
      %v226 = vld [vmem:[%s197 + $0x38] sm:$0xff]
      %v227 = vld [vmem:[%s197 + $0x40] sm:$0xff]
      %v228 = vld [vmem:[%s197 + $0x48] sm:$0xff]
      %v229 = vld [vmem:[%s197 + $0x50] sm:$0xff]
      %v230 = vld [vmem:[%s197 + $0x58] sm:$0xff]
      %v231 = vld [vmem:[%s197 + $0x60] sm:$0xff]
      %v232 = vld [vmem:[%s197 + $0x68] sm:$0xff]
      %v233 = vld [vmem:[%s197 + $0x70] sm:$0xff]
      %v234 = vld [vmem:[%s197 + $0x78] sm:$0xff]
      %v235 = vld [vmem:[%s197 + $0x80] sm:$0xff]
      %v236 = vld [vmem:[%s197 + $0x88] sm:$0xff]
      %v237 = vld [vmem:[%s197 + $0x90] sm:$0xff]
      %v238 = vld [vmem:[%s197 + $0x98] sm:$0xff]
      %v239 = vld [vmem:[%s197 + $0xa0] sm:$0xff]
      %v240 = vld [vmem:[%s197 + $0xa8] sm:$0xff]
      %v241 = vld [vmem:[%s197 + $0xb0] sm:$0xff]
      %v242 = vld [vmem:[%s197 + $0xb8] sm:$0xff]
      %v243 = vld [vmem:[%s197 + $0xc0] sm:$0xff]
      %v244 = vld [vmem:[%s197 + $0xc8] sm:$0xff]
      %v245 = vld [vmem:[%s197 + $0xd0] sm:$0xff]
      %v246 = vld [vmem:[%s197 + $0xd8] sm:$0xff]
      %v247 = vld [vmem:[%s197 + $0xe0] sm:$0xff]
      %v248 = vld [vmem:[%s197 + $0xe8] sm:$0xff]
      %v249 = vld [vmem:[%s197 + $0xf0] sm:$0xff]
      %v250 = vld [vmem:[%s197 + $0xf8] sm:$0xff]
      %v251 = vld [vmem:[%s197 + $0x100] sm:$0xff]
      %v252 = vld [vmem:[%s197 + $0x108] sm:$0xff]
      %v253 = vld [vmem:[%s197 + $0x110] sm:$0xff]
      %v254 = vld [vmem:[%s197 + $0x118] sm:$0xff]
      %v255 = vld [vmem:[%s197 + $0x120] sm:$0xff]
      %v256 = vld [vmem:[%s197 + $0x128] sm:$0xff]
      %v257 = vld [vmem:[%s197 + $0x130] sm:$0xff]
      %v258 = vld [vmem:[%s197 + $0x138] sm:$0xff]
      %v259 = vld [vmem:[%s197 + $0x140] sm:$0xff]
      %v260 = vld [vmem:[%s197 + $0x148] sm:$0xff]
      %v261 = vld [vmem:[%s197 + $0x150] sm:$0xff]
      %v262 = vld [vmem:[%s197 + $0x158] sm:$0xff]
      %v263 = vld [vmem:[%s197 + $0x160] sm:$0xff]
      %v264 = vld [vmem:[%s197 + $0x168] sm:$0xff]
      %v265 = vld [vmem:[%s197 + $0x170] sm:$0xff]
      %v266 = vld [vmem:[%s197 + $0x178] sm:$0xff]
      %v267 = vld [vmem:[%s197 + $0x180] sm:$0xff]
      %v268 = vld [vmem:[%s197 + $0x188] sm:$0xff]
      %v269 = vld [vmem:[%s197 + $0x190] sm:$0xff]
      %v270 = vld [vmem:[%s197 + $0x198] sm:$0xff]
      %v271 = vld [vmem:[%s197 + $0x1a0] sm:$0xff]
      %v272 = vld [vmem:[%s197 + $0x1a8] sm:$0xff]
      %v273 = vld [vmem:[%s197 + $0x1b0] sm:$0xff]
      %v274 = vld [vmem:[%s197 + $0x1b8] sm:$0xff]
      %v275 = vld [vmem:[%s197 + $0x1c0] sm:$0xff]
      %v276 = vld [vmem:[%s197 + $0x1c8] sm:$0xff]
      %v277 = vld [vmem:[%s197 + $0x1d0] sm:$0xff]
      %v278 = vld [vmem:[%s197 + $0x1d8] sm:$0xff]
      %v279 = vld [vmem:[%s197 + $0x1e0] sm:$0xff]
      %v280 = vld [vmem:[%s197 + $0x1e8] sm:$0xff]
      %v281 = vld [vmem:[%s197 + $0x1f0] sm:$0xff]
      %v282 = vld [vmem:[%s197 + $0x1f8] sm:$0xff]
      %v283 = vld [vmem:[%s207] sm:$0xff]
      %v284 = vld [vmem:[%s207 + $0x8] sm:$0xff]
      %v285 = vld [vmem:[%s207 + $0x10] sm:$0xff]
      %v286 = vld [vmem:[%s207 + $0x18] sm:$0xff]
      %v287 = vld [vmem:[%s207 + $0x20] sm:$0xff]
      %v288 = vld [vmem:[%s207 + $0x28] sm:$0xff]
      %v289 = vld [vmem:[%s207 + $0x30] sm:$0xff]
      %v290 = vld [vmem:[%s207 + $0x38] sm:$0xff]
      %v291 = vadd.f32 %v219, %v283
      %v292 = vadd.f32 %v220, %v284
      %v293 = vadd.f32 %v221, %v285
      %v294 = vadd.f32 %v222, %v286
      %v295 = vadd.f32 %v223, %v287
      %v296 = vadd.f32 %v224, %v288
      %v297 = vadd.f32 %v225, %v289
      %v298 = vadd.f32 %v226, %v290
      %v299 = vadd.f32 %v227, %v283
      %v300 = vadd.f32 %v228, %v284
      %v301 = vadd.f32 %v229, %v285
      %v302 = vadd.f32 %v230, %v286
      %v303 = vadd.f32 %v231, %v287
      %v304 = vadd.f32 %v232, %v288
      %v305 = vadd.f32 %v233, %v289
      %v306 = vadd.f32 %v234, %v290
      %v307 = vadd.f32 %v235, %v283
      %v308 = vadd.f32 %v236, %v284
      %v309 = vadd.f32 %v237, %v285
      %v310 = vadd.f32 %v238, %v286
      %v311 = vadd.f32 %v239, %v287
      %v312 = vadd.f32 %v240, %v288
      %v313 = vadd.f32 %v241, %v289
      %v314 = vadd.f32 %v242, %v290
      %v315 = vadd.f32 %v243, %v283
      %v316 = vadd.f32 %v244, %v284
      %v317 = vadd.f32 %v245, %v285
      %v318 = vadd.f32 %v246, %v286
      %v319 = vadd.f32 %v247, %v287
      %v320 = vadd.f32 %v248, %v288
      %v321 = vadd.f32 %v249, %v289
      %v322 = vadd.f32 %v250, %v290
      %v323 = vadd.f32 %v251, %v283
      %v324 = vadd.f32 %v252, %v284
      %v325 = vadd.f32 %v253, %v285
      %v326 = vadd.f32 %v254, %v286
      %v327 = vadd.f32 %v255, %v287
      %v328 = vadd.f32 %v256, %v288
      %v329 = vadd.f32 %v257, %v289
      %v330 = vadd.f32 %v258, %v290
      %v331 = vadd.f32 %v259, %v283
      %v332 = vadd.f32 %v260, %v284
      %v333 = vadd.f32 %v261, %v285
      %v334 = vadd.f32 %v262, %v286
      %v335 = vadd.f32 %v263, %v287
      %v336 = vadd.f32 %v264, %v288
      %v337 = vadd.f32 %v265, %v289
      %v338 = vadd.f32 %v266, %v290
      %v339 = vadd.f32 %v267, %v283
      %v340 = vadd.f32 %v268, %v284
      %v341 = vadd.f32 %v269, %v285
      %v342 = vadd.f32 %v270, %v286
      %v343 = vadd.f32 %v271, %v287
      %v344 = vadd.f32 %v272, %v288
      %v345 = vadd.f32 %v273, %v289
      %v346 = vadd.f32 %v274, %v290
      %v347 = vadd.f32 %v275, %v283
      %v348 = vadd.f32 %v276, %v284
      %v349 = vadd.f32 %v277, %v285
      %v350 = vadd.f32 %v278, %v286
      %v351 = vadd.f32 %v279, %v287
      %v352 = vadd.f32 %v280, %v288
      %v353 = vadd.f32 %v281, %v289
      %v354 = vadd.f32 %v282, %v290
      %v355 = vmul.f32 %v291, 0.2
      %v356 = vmul.f32 %v292, 0.2
      %v357 = vmul.f32 %v293, 0.2
      %v358 = vmul.f32 %v294, 0.2
      %v359 = vmul.f32 %v295, 0.2
      %v360 = vmul.f32 %v296, 0.2
      %v361 = vmul.f32 %v297, 0.2
      %v362 = vmul.f32 %v298, 0.2
      %v363 = vmul.f32 %v299, 0.2
      %v364 = vmul.f32 %v300, 0.2
      %v365 = vmul.f32 %v301, 0.2
      %v366 = vmul.f32 %v302, 0.2
      %v367 = vmul.f32 %v303, 0.2
      %v368 = vmul.f32 %v304, 0.2
      %v369 = vmul.f32 %v305, 0.2
      %v370 = vmul.f32 %v306, 0.2
      %v371 = vmul.f32 %v307, 0.2
      %v372 = vmul.f32 %v308, 0.2
      %v373 = vmul.f32 %v309, 0.2
      %v374 = vmul.f32 %v310, 0.2
      %v375 = vmul.f32 %v311, 0.2
      %v376 = vmul.f32 %v312, 0.2
      %v377 = vmul.f32 %v313, 0.2
      %v378 = vmul.f32 %v314, 0.2
      %v379 = vmul.f32 %v315, 0.2
      %v380 = vmul.f32 %v316, 0.2
      %v381 = vmul.f32 %v317, 0.2
      %v382 = vmul.f32 %v318, 0.2
      %v383 = vmul.f32 %v319, 0.2
      %v384 = vmul.f32 %v320, 0.2
      %v385 = vmul.f32 %v321, 0.2
      %v386 = vmul.f32 %v322, 0.2
      %v387 = vmul.f32 %v323, 0.2
      %v388 = vmul.f32 %v324, 0.2
      %v389 = vmul.f32 %v325, 0.2
      %v390 = vmul.f32 %v326, 0.2
      %v391 = vmul.f32 %v327, 0.2
      %v392 = vmul.f32 %v328, 0.2
      %v393 = vmul.f32 %v329, 0.2
      %v394 = vmul.f32 %v330, 0.2
      %v395 = vmul.f32 %v331, 0.2
      %v396 = vmul.f32 %v332, 0.2
      %v397 = vmul.f32 %v333, 0.2
      %v398 = vmul.f32 %v334, 0.2
      %v399 = vmul.f32 %v335, 0.2
      %v400 = vmul.f32 %v336, 0.2
      %v401 = vmul.f32 %v337, 0.2
      %v402 = vmul.f32 %v338, 0.2
      %v403 = vmul.f32 %v339, 0.2
      %v404 = vmul.f32 %v340, 0.2
      %v405 = vmul.f32 %v341, 0.2
      %v406 = vmul.f32 %v342, 0.2
      %v407 = vmul.f32 %v343, 0.2
      %v408 = vmul.f32 %v344, 0.2
      %v409 = vmul.f32 %v345, 0.2
      %v410 = vmul.f32 %v346, 0.2
      %v411 = vmul.f32 %v347, 0.2
      %v412 = vmul.f32 %v348, 0.2
      %v413 = vmul.f32 %v349, 0.2
      %v414 = vmul.f32 %v350, 0.2
      %v415 = vmul.f32 %v351, 0.2
      %v416 = vmul.f32 %v352, 0.2
      %v417 = vmul.f32 %v353, 0.2
      %v418 = vmul.f32 %v354, 0.2
      %v419 = vmax.f32 %v291, %v355
      %v420 = vmax.f32 %v292, %v356
      %v421 = vmax.f32 %v293, %v357
      %v422 = vmax.f32 %v294, %v358
      %v423 = vmax.f32 %v295, %v359
      %v424 = vmax.f32 %v296, %v360
      %v425 = vmax.f32 %v297, %v361
      %v426 = vmax.f32 %v298, %v362
      %v427 = vmax.f32 %v299, %v363
      %v428 = vmax.f32 %v300, %v364
      %v429 = vmax.f32 %v301, %v365
      %v430 = vmax.f32 %v302, %v366
      %v431 = vmax.f32 %v303, %v367
      %v432 = vmax.f32 %v304, %v368
      %v433 = vmax.f32 %v305, %v369
      %v434 = vmax.f32 %v306, %v370
      %v435 = vmax.f32 %v307, %v371
      %v436 = vmax.f32 %v308, %v372
      %v437 = vmax.f32 %v309, %v373
      %v438 = vmax.f32 %v310, %v374
      %v439 = vmax.f32 %v311, %v375
      %v440 = vmax.f32 %v312, %v376
      %v441 = vmax.f32 %v313, %v377
      %v442 = vmax.f32 %v314, %v378
      %v443 = vmax.f32 %v315, %v379
      %v444 = vmax.f32 %v316, %v380
      %v445 = vmax.f32 %v317, %v381
      %v446 = vmax.f32 %v318, %v382
      %v447 = vmax.f32 %v319, %v383
      %v448 = vmax.f32 %v320, %v384
      %v449 = vmax.f32 %v321, %v385
      %v450 = vmax.f32 %v322, %v386
      %v451 = vmax.f32 %v323, %v387
      %v452 = vmax.f32 %v324, %v388
      %v453 = vmax.f32 %v325, %v389
      %v454 = vmax.f32 %v326, %v390
      %v455 = vmax.f32 %v327, %v391
      %v456 = vmax.f32 %v328, %v392
      %v457 = vmax.f32 %v329, %v393
      %v458 = vmax.f32 %v330, %v394
      %v459 = vmax.f32 %v331, %v395
      %v460 = vmax.f32 %v332, %v396
      %v461 = vmax.f32 %v333, %v397
      %v462 = vmax.f32 %v334, %v398
      %v463 = vmax.f32 %v335, %v399
      %v464 = vmax.f32 %v336, %v400
      %v465 = vmax.f32 %v337, %v401
      %v466 = vmax.f32 %v338, %v402
      %v467 = vmax.f32 %v339, %v403
      %v468 = vmax.f32 %v340, %v404
      %v469 = vmax.f32 %v341, %v405
      %v470 = vmax.f32 %v342, %v406
      %v471 = vmax.f32 %v343, %v407
      %v472 = vmax.f32 %v344, %v408
      %v473 = vmax.f32 %v345, %v409
      %v474 = vmax.f32 %v346, %v410
      %v475 = vmax.f32 %v347, %v411
      %v476 = vmax.f32 %v348, %v412
      %v477 = vmax.f32 %v349, %v413
      %v478 = vmax.f32 %v350, %v414
      %v479 = vmax.f32 %v351, %v415
      %v480 = vmax.f32 %v352, %v416
      %v481 = vmax.f32 %v353, %v417
      %v482 = vmax.f32 %v354, %v418
      %vm483 = vcmask 523264
      %v484 = vsel %vm483, %v419, -inf
      %v485 = vsel %vm483, %v427, -inf
      %v486 = vmax.f32 %v484, %v485
      %v487 = vsel %vm483, %v435, -inf
      %v488 = vmax.f32 %v486, %v487
      %v489 = vsel %vm483, %v443, -inf
      %v490 = vmax.f32 %v488, %v489
      %v491 = vsel %vm483, %v451, -inf
      %v492 = vmax.f32 %v490, %v491
      %v493 = vsel %vm483, %v459, -inf
      %v494 = vmax.f32 %v492, %v493
      %v495 = vsel %vm483, %v467, -inf
      %v496 = vmax.f32 %v494, %v495
      %v497 = vsel %vm483, %v475, -inf
      %v498 = vmax.f32 %v496, %v497
      %v499 = vsel %vm483, %v420, -inf
      %v500 = vsel %vm483, %v428, -inf
      %v501 = vmax.f32 %v499, %v500
      %v502 = vsel %vm483, %v436, -inf
      %v503 = vmax.f32 %v501, %v502
      %v504 = vsel %vm483, %v444, -inf
      %v505 = vmax.f32 %v503, %v504
      %v506 = vsel %vm483, %v452, -inf
      %v507 = vmax.f32 %v505, %v506
      %v508 = vsel %vm483, %v460, -inf
      %v509 = vmax.f32 %v507, %v508
      %v510 = vsel %vm483, %v468, -inf
      %v511 = vmax.f32 %v509, %v510
      %v512 = vsel %vm483, %v476, -inf
      %v513 = vmax.f32 %v511, %v512
      %v514 = vsel %vm483, %v421, -inf
      %v515 = vsel %vm483, %v429, -inf
      %v516 = vmax.f32 %v514, %v515
      %v517 = vsel %vm483, %v437, -inf
      %v518 = vmax.f32 %v516, %v517
      %v519 = vsel %vm483, %v445, -inf
      %v520 = vmax.f32 %v518, %v519
      %v521 = vsel %vm483, %v453, -inf
      %v522 = vmax.f32 %v520, %v521
      %v523 = vsel %vm483, %v461, -inf
      %v524 = vmax.f32 %v522, %v523
      %v525 = vsel %vm483, %v469, -inf
      %v526 = vmax.f32 %v524, %v525
      %v527 = vsel %vm483, %v477, -inf
      %v528 = vmax.f32 %v526, %v527
      %v529 = vsel %vm483, %v422, -inf
      %v530 = vsel %vm483, %v430, -inf
      %v531 = vmax.f32 %v529, %v530
      %v532 = vsel %vm483, %v438, -inf
      %v533 = vmax.f32 %v531, %v532
      %v534 = vsel %vm483, %v446, -inf
      %v535 = vmax.f32 %v533, %v534
      %v536 = vsel %vm483, %v454, -inf
      %v537 = vmax.f32 %v535, %v536
      %v538 = vsel %vm483, %v462, -inf
      %v539 = vmax.f32 %v537, %v538
      %v540 = vsel %vm483, %v470, -inf
      %v541 = vmax.f32 %v539, %v540
      %v542 = vsel %vm483, %v478, -inf
      %v543 = vmax.f32 %v541, %v542
      %v544 = vsel %vm483, %v423, -inf
      %v545 = vsel %vm483, %v431, -inf
      %v546 = vmax.f32 %v544, %v545
      %v547 = vsel %vm483, %v439, -inf
      %v548 = vmax.f32 %v546, %v547
      %v549 = vsel %vm483, %v447, -inf
      %v550 = vmax.f32 %v548, %v549
      %v551 = vsel %vm483, %v455, -inf
      %v552 = vmax.f32 %v550, %v551
      %v553 = vsel %vm483, %v463, -inf
      %v554 = vmax.f32 %v552, %v553
      %v555 = vsel %vm483, %v471, -inf
      %v556 = vmax.f32 %v554, %v555
      %v557 = vsel %vm483, %v479, -inf
      %v558 = vmax.f32 %v556, %v557
      %v559 = vsel %vm483, %v424, -inf
      %v560 = vsel %vm483, %v432, -inf
      %v561 = vmax.f32 %v559, %v560
      %v562 = vsel %vm483, %v440, -inf
      %v563 = vmax.f32 %v561, %v562
      %v564 = vsel %vm483, %v448, -inf
      %v565 = vmax.f32 %v563, %v564
      %v566 = vsel %vm483, %v456, -inf
      %v567 = vmax.f32 %v565, %v566
      %v568 = vsel %vm483, %v464, -inf
      %v569 = vmax.f32 %v567, %v568
      %v570 = vsel %vm483, %v472, -inf
      %v571 = vmax.f32 %v569, %v570
      %v572 = vsel %vm483, %v480, -inf
      %v573 = vmax.f32 %v571, %v572
      %v574 = vsel %vm483, %v425, -inf
      %v575 = vsel %vm483, %v433, -inf
      %v576 = vmax.f32 %v574, %v575
      %v577 = vsel %vm483, %v441, -inf
      %v578 = vmax.f32 %v576, %v577
      %v579 = vsel %vm483, %v449, -inf
      %v580 = vmax.f32 %v578, %v579
      %v581 = vsel %vm483, %v457, -inf
      %v582 = vmax.f32 %v580, %v581
      %v583 = vsel %vm483, %v465, -inf
      %v584 = vmax.f32 %v582, %v583
      %v585 = vsel %vm483, %v473, -inf
      %v586 = vmax.f32 %v584, %v585
      %v587 = vsel %vm483, %v481, -inf
      %v588 = vmax.f32 %v586, %v587
      %v589 = vsel %vm483, %v426, -inf
      %v590 = vsel %vm483, %v434, -inf
      %v591 = vmax.f32 %v589, %v590
      %v592 = vsel %vm483, %v442, -inf
      %v593 = vmax.f32 %v591, %v592
      %v594 = vsel %vm483, %v450, -inf
      %v595 = vmax.f32 %v593, %v594
      %v596 = vsel %vm483, %v458, -inf
      %v597 = vmax.f32 %v595, %v596
      %v598 = vsel %vm483, %v466, -inf
      %v599 = vmax.f32 %v597, %v598
      %v600 = vsel %vm483, %v474, -inf
      %v601 = vmax.f32 %v599, %v600
      %v602 = vsel %vm483, %v482, -inf
      %v603 = vmax.f32 %v601, %v602
      %604 = vst.msk [vmem:[%s217] sm:$0xff] %vm483, %v498
      %605 = vst.msk [vmem:[%s217 + $0x8] sm:$0xff] %vm483, %v513
      %606 = vst.msk [vmem:[%s217 + $0x10] sm:$0xff] %vm483, %v528
      %607 = vst.msk [vmem:[%s217 + $0x18] sm:$0xff] %vm483, %v543
      %608 = vst.msk [vmem:[%s217 + $0x20] sm:$0xff] %vm483, %v558
      %609 = vst.msk [vmem:[%s217 + $0x28] sm:$0xff] %vm483, %v573
      %610 = vst.msk [vmem:[%s217 + $0x30] sm:$0xff] %vm483, %v588
      %611 = vst.msk [vmem:[%s217 + $0x38] sm:$0xff] %vm483, %v603
      %s612 = smul.u32 8, %s18
      %p613 = scmp.lt.s32.totalorder %s17, 1
      %s614 = scalar_select %p613, %s17, 1
      %p615 = scmp.lt.s32.totalorder %s612, 7
      %s616 = scalar_select %p615, %s612, 7
      %s617 = smul.addr %s614, 8
      %s618 = sadd.s32 %s616, %s617
      %s619 = smul.addr %s618, 8
      %s620 = scalar_lea.vmem %s2, %s619
      // Predicated region
      $region29: #{dgcnn_partseg_forward.7} parent=27 // pred_check
        %p621 = pneg %p101
      $region30: #{dgcnn_partseg_forward.7} parent=27 // pred_check_branch
        %623 = sbr.rel (%p621) target = $region32
      $region31: #{dgcnn_partseg_forward.7} parent=27 // pred_region
        %s624 = smul.u32 8, %s18
      $region32: #{dgcnn_partseg_forward.7} parent=27 // pred_fallthru
        _
    $region28: #{dgcnn_partseg_forward.7} parent=5 // pred_fallthru
      _
    %p625 = scmp.le.s32.totalorder 2, %s8
    // Predicated region
    $region33: #{dgcnn_partseg_forward.7} parent=5 // pred_check
      %p626 = pneg %p625
    $region34: #{dgcnn_partseg_forward.7} parent=5 // pred_check_branch
      %628 = sbr.rel (%p626) target = $region36
    $region35: #{dgcnn_partseg_forward.7} parent=5 // pred_region
      %s629 = ssub.s32 %s8, 2
      // Predicated region
      $region37: #{dgcnn_partseg_forward.7} parent=35 // pred_check
        %p630 = pneg %p107
      $region38: #{dgcnn_partseg_forward.7} parent=35 // pred_check_branch
        %632 = sbr.rel (%p630) target = $region40
      $region39: #{dgcnn_partseg_forward.7} parent=35 // pred_region
        %s633 = smul.u32 8, %s20
        %p634 = scmp.lt.s32.totalorder %s19, 1
        %s635 = scalar_select %p634, %s19, 1
        %p636 = scmp.lt.s32.totalorder %s633, 7
        %s637 = scalar_select %p636, %s633, 7
        %s638 = smul.addr %s635, 8
        %s639 = sadd.s32 %s637, %s638
        %s640 = smul.addr %s639, 8
        %s641 = scalar_lea.vmem %s2, %s640
      $region40: #{dgcnn_partseg_forward.7} parent=35 // pred_fallthru
        _
    $region36: #{dgcnn_partseg_forward.7} parent=5 // pred_fallthru
      _
  $region6: #{dgcnn_partseg_forward.7} parent=0 // loop_footer
    %s12 = sadd.s32 1, %s8
  $region7: #{dgcnn_partseg_forward.7} parent=0 // loop_footer_branch
    %7 = sbr.rel target = $region3
  $region8: #{dgcnn_partseg_forward.7} parent=0 // loop_exit
    _

// kernel: dgcnn_partseg_forward.8
$region0: #{dgcnn_partseg_forward.8}
  #allocation0 [shape = 'u32[]', space=smem, size = 0x4, offset = 0x4, fixed_abs, tag = 'smem constant byte address 0x4 - core index']
  #allocation1 [shape = 'u32[144,128]{1,0:T(1,128)}', space=vmem, size = 0x12000, scoped, tag = 'internal scratch']
  %s0 = inlined_call_operand.vmem [shape: f32[2,64,192], index: 0, kind: input, shape index: {}]
  %s1 = inlined_call_operand.vmem [shape: f32[192,1024], index: 1, kind: input, shape index: {}]
  %s2 = inlined_call_operand.vmem [shape: f32[1,1024], index: 2, kind: input, shape index: {}]
  %s3 = inlined_call_operand.vmem [shape: f32[2,1,1024], index: 3, kind: output, shape index: {}]
  %s4 = sld [smem:[#allocation0]]
  $region49: #{dgcnn_partseg_forward.8} parent=0
    _
  %s6 = ssub.s32 1, %s4
  %s7 = scalar_select 0, %s6, %s4
  loop: start=0, step=1, limit=4
  $region2: #{dgcnn_partseg_forward.8} parent=0 // loop_pre_header
    _
  $region3: #{dgcnn_partseg_forward.8} parent=0 // loop_header
    %s9 = sphi 0, %s13
    %p10 = scmp.ge.s32.totalorder %s9, 4
    %s16 = sphi 0, %s28
    %s17 = sphi 0, %s24
    %s18 = sphi 0, %s16
    %s19 = sphi 0, %s17
    %s20 = sphi 0, %s18
    %s21 = sphi 0, %s19
    %s33 = sphi 0, %s35
    %s36 = sphi 0, %s33
    %s37 = sphi 0, %s36
    %s53 = sphi 0, %s37
    %s57 = sphi 0, %s57
    %s59 = sphi 0, %s57
    %s60 = sphi 0, %s59
    %s74 = sphi 0, %s60
    %s78 = sphi 0, %s78
    %s80 = sphi 0, %s78
    %s81 = sphi 0, %s80
    %s95 = sphi 0, %s81
    %s101 = sphi 0, %s103
    %s104 = sphi 0, %s101
    %s105 = sphi 0, %s104
    %s121 = sphi 0, %s105
  $region4: #{dgcnn_partseg_forward.8} parent=0 // loop_header_branch
    %12 = sbr.rel (%p10) target = $region8
  $region5: #{dgcnn_partseg_forward.8} parent=0 // loop_body
    %s14 = ssub.s32 %s9, 1
    %s15 = ssub.s32 %s9, 2
    %s22 = sadd.s32 1, %s17
    %p23 = scmp.ge.s32.totalorder %s22, 1
    %s24 = scalar_select %p23, 0, %s22
    %s25 = sadd.s32 1, %s16
    %s26 = scalar_select %p23, %s25, %s16
    %p27 = scmp.ge.s32.totalorder %s26, 2
    %s28 = scalar_select %p27, 0, %s26
    %s29 = ssub.s32 %s16, %s28
    %s30 = ssub.s32 %s17, %s24
    %s31 = sor.u32 %s29, %s30
    %p32 = scmp.eq.s32.totalorder %s31, 0
    %s34 = sadd.s32 %s33, 1
    %s35 = scalar_select %p32, %s33, %s34
    %p38 = pneg %p32
    %p39 = scmp.eq.s32.totalorder %s9, 1
    %p40 = por %p38, %p39
    %p41 = scmp.ne.s32.totalorder %s33, %s36
    %p42 = scmp.eq.s32.totalorder %s9, 0
    %p43 = por %p41, %p42
    %p44 = scmp.ne.s32.totalorder %s33, %s36
    %p45 = scmp.eq.s32.totalorder %s14, 1
    %p46 = por %p44, %p45
    %p47 = scmp.ne.s32.totalorder %s36, %s37
    %p48 = scmp.eq.s32.totalorder %s14, 0
    %p49 = por %p47, %p48
    %p50 = scmp.ne.s32.totalorder %s36, %s37
    %p51 = scmp.eq.s32.totalorder %s15, 1
    %p52 = por %p50, %p51
    %p54 = scmp.ne.s32.totalorder %s37, %s53
    %p55 = scmp.eq.s32.totalorder %s15, 0
    %p56 = por %p54, %p55
    %s58 = sadd.s32 %s57, 1
    %p61 = scmp.eq.s32.totalorder %s9, 1
    %p62 = scmp.ne.s32.totalorder %s57, %s59
    %p63 = scmp.eq.s32.totalorder %s9, 0
    %p64 = por %p62, %p63
    %p65 = scmp.ne.s32.totalorder %s57, %s59
    %p66 = scmp.eq.s32.totalorder %s14, 1
    %p67 = por %p65, %p66
    %p68 = scmp.ne.s32.totalorder %s59, %s60
    %p69 = scmp.eq.s32.totalorder %s14, 0
    %p70 = por %p68, %p69
    %p71 = scmp.ne.s32.totalorder %s59, %s60
    %p72 = scmp.eq.s32.totalorder %s15, 1
    %p73 = por %p71, %p72
    %p75 = scmp.ne.s32.totalorder %s60, %s74
    %p76 = scmp.eq.s32.totalorder %s15, 0
    %p77 = por %p75, %p76
    %s79 = sadd.s32 %s78, 1
    %p82 = scmp.eq.s32.totalorder %s9, 1
    %p83 = scmp.ne.s32.totalorder %s78, %s80
    %p84 = scmp.eq.s32.totalorder %s9, 0
    %p85 = por %p83, %p84
    %p86 = scmp.ne.s32.totalorder %s78, %s80
    %p87 = scmp.eq.s32.totalorder %s14, 1
    %p88 = por %p86, %p87
    %p89 = scmp.ne.s32.totalorder %s80, %s81
    %p90 = scmp.eq.s32.totalorder %s14, 0
    %p91 = por %p89, %p90
    %p92 = scmp.ne.s32.totalorder %s80, %s81
    %p93 = scmp.eq.s32.totalorder %s15, 1
    %p94 = por %p92, %p93
    %p96 = scmp.ne.s32.totalorder %s81, %s95
    %p97 = scmp.eq.s32.totalorder %s15, 0
    %p98 = por %p96, %p97
    %s99 = ssub.s32 %s16, %s28
    %p100 = scmp.eq.s32.totalorder %s99, 0
    %s102 = sadd.s32 %s101, 1
    %s103 = scalar_select %p100, %s101, %s102
    %p106 = pneg %p100
    %p107 = scmp.eq.s32.totalorder %s9, 1
    %p108 = por %p106, %p107
    %p109 = scmp.ne.s32.totalorder %s101, %s104
    %p110 = scmp.eq.s32.totalorder %s9, 0
    %p111 = por %p109, %p110
    %p112 = scmp.ne.s32.totalorder %s101, %s104
    %p113 = scmp.eq.s32.totalorder %s14, 1
    %p114 = por %p112, %p113
    %p115 = scmp.ne.s32.totalorder %s104, %s105
    %p116 = scmp.eq.s32.totalorder %s14, 0
    %p117 = por %p115, %p116
    %p118 = scmp.ne.s32.totalorder %s104, %s105
    %p119 = scmp.eq.s32.totalorder %s15, 1
    %p120 = por %p118, %p119
    %p122 = scmp.ne.s32.totalorder %s105, %s121
    %p123 = scmp.eq.s32.totalorder %s15, 0
    %p124 = por %p122, %p123
    %p125 = scmp.le.s32.totalorder 1, %s9
    %p126 = scmp.lt.s32.totalorder %s9, 3
    %p127 = pnand %p125, %p126
    %p128 = pneg %p127
    // Predicated region
    $region9: #{dgcnn_partseg_forward.8} parent=5 // pred_check
      _
    $region10: #{dgcnn_partseg_forward.8} parent=5 // pred_check_branch
      %130 = sbr.rel (%p127) target = $region12
    $region11: #{dgcnn_partseg_forward.8} parent=5 // pred_region
      %s131 = ssub.s32 %s9, 1
      // Predicated region
      $region13: #{dgcnn_partseg_forward.8} parent=11 // pred_check
        %p132 = pneg %p70
      $region14: #{dgcnn_partseg_forward.8} parent=11 // pred_check_branch
        %134 = sbr.rel (%p132) target = $region16
      $region15: #{dgcnn_partseg_forward.8} parent=11 // pred_region
        _
      $region16: #{dgcnn_partseg_forward.8} parent=11 // pred_fallthru
        _
      // Predicated region
      $region17: #{dgcnn_partseg_forward.8} parent=11 // pred_check
        %p135 = pneg %p91
      $region18: #{dgcnn_partseg_forward.8} parent=11 // pred_check_branch
        %137 = sbr.rel (%p135) target = $region20
      $region19: #{dgcnn_partseg_forward.8} parent=11 // pred_region
        _
      $region20: #{dgcnn_partseg_forward.8} parent=11 // pred_fallthru
        _
    $region12: #{dgcnn_partseg_forward.8} parent=5 // pred_fallthru
      _
    %p138 = scmp.lt.s32.totalorder %s9, 2
    // Predicated region
    $region21: #{dgcnn_partseg_forward.8} parent=5 // pred_check
      %p139 = pneg %p138
    $region22: #{dgcnn_partseg_forward.8} parent=5 // pred_check_branch
      %141 = sbr.rel (%p139) target = $region24
    $region23: #{dgcnn_partseg_forward.8} parent=5 // pred_region
      // Predicated region
      $region25: #{dgcnn_partseg_forward.8} parent=23 // pred_check
        %p142 = pneg %p43
      $region26: #{dgcnn_partseg_forward.8} parent=23 // pred_check_branch
        %144 = sbr.rel (%p142) target = $region28
      $region27: #{dgcnn_partseg_forward.8} parent=23 // pred_region
        %s145 = smul.u32 8, %s17
        %p146 = scmp.lt.s32.totalorder %s16, 1
        %s147 = scalar_select %p146, %s16, 1
        %p148 = scmp.lt.s32.totalorder %s145, 7
        %s149 = scalar_select %p148, %s145, 7
        %s150 = smul.addr %s149, 2
        %s151 = smul.addr %s147, 16
        %s152 = sadd.s32 %s150, %s151
        %s153 = smul.addr %s152, 8
        %s154 = scalar_lea.vmem %s0, %s153
        %s155 = smul.u32 8, %s17
      $region28: #{dgcnn_partseg_forward.8} parent=23 // pred_fallthru
        _
    $region24: #{dgcnn_partseg_forward.8} parent=5 // pred_fallthru
      _
    %p156 = scmp.le.s32.totalorder 1, %s9
    %p157 = scmp.lt.s32.totalorder %s9, 3
    %p158 = pnand %p156, %p157
    %p159 = pneg %p158
    // Predicated region
    $region29: #{dgcnn_partseg_forward.8} parent=5 // pred_check
      _
    $region30: #{dgcnn_partseg_forward.8} parent=5 // pred_check_branch
      %161 = sbr.rel (%p158) target = $region32
    $region31: #{dgcnn_partseg_forward.8} parent=5 // pred_region
      %s162 = ssub.s32 %s9, 1
      %s163 = smul.u32 8, %s19
      %p164 = scmp.lt.s32.totalorder %s18, 1
      %s165 = scalar_select %p164, %s18, 1
      %p166 = scmp.lt.s32.totalorder %s163, 7
      %s167 = scalar_select %p166, %s163, 7
      %s168 = smul.addr %s167, 2
      %s169 = smul.addr %s165, 16
      %s170 = sadd.s32 %s168, %s169
      %s171 = smul.addr %s170, 8
      %s172 = scalar_lea.vmem %s0, %s171
      %p173 = pneg %p49
      %p174 = pneg %p46
      %p175 = pneg %p70
      %p176 = pneg %p67
      %p177 = pneg %p91
      %p178 = pneg %p88
      %p179 = pneg %p117
      %p180 = pneg %p114
      %p181 = scmp.lt.s32.totalorder %s18, 1
      %s182 = scalar_select %p181, %s18, 1
      %s183 = smul.addr %s182, 8
      %s184 = scalar_lea.vmem %s3, %s183
      %s185 = smul.u32 8, %s19
      %p186 = scmp.lt.s32.totalorder %s18, 1
      %s187 = scalar_select %p186, %s18, 1
      %p188 = scmp.lt.s32.totalorder %s185, 7
      %s189 = scalar_select %p188, %s185, 7
      %s190 = smul.addr %s189, 2
      %s191 = smul.addr %s187, 16
      %s192 = sadd.s32 %s190, %s191
      %s193 = smul.addr %s192, 8
      %s194 = scalar_lea.vmem %s0, %s193
      %s195 = smul.u32 8, %s19
      %p196 = scmp.lt.s32.totalorder %s18, 1
      %s197 = scalar_select %p196, %s18, 1
      %s198 = smul.addr %s197, 8
      %s199 = scalar_lea.vmem %s3, %s198
      %p200 = scmp.eq.s32.totalorder %s19, 0
      // Predicated region
      $region33: #{dgcnn_partseg_forward.8} parent=31 // pred_check
        %p201 = pneg %p200
      $region34: #{dgcnn_partseg_forward.8} parent=31 // pred_check_branch
        %203 = sbr.rel (%p201) target = $region36
      $region35: #{dgcnn_partseg_forward.8} parent=31 // pred_region
        %204 = vst [vmem:[%s199] sm:$0xff] -inf
      $region36: #{dgcnn_partseg_forward.8} parent=31 // pred_fallthru
        _
      %v205 = vld [vmem:[%s194] sm:$0xff]
      %v206 = vld [vmem:[%s194 + $0x8] sm:$0xff]
      %v207 = vld [vmem:[%s194 + $0x10] sm:$0xff]
      %v208 = vld [vmem:[%s194 + $0x18] sm:$0xff]
      %v209 = vld [vmem:[%s194 + $0x20] sm:$0xff]
      %v210 = vld [vmem:[%s194 + $0x28] sm:$0xff]
      %v211 = vld [vmem:[%s194 + $0x30] sm:$0xff]
      %v212 = vld [vmem:[%s194 + $0x38] sm:$0xff]
      %v213 = vld [vmem:[%s194 + $0x40] sm:$0xff]
      %v214 = vld [vmem:[%s194 + $0x48] sm:$0xff]
      %v215 = vld [vmem:[%s194 + $0x50] sm:$0xff]
      %v216 = vld [vmem:[%s194 + $0x58] sm:$0xff]
      %v217 = vld [vmem:[%s194 + $0x60] sm:$0xff]
      %v218 = vld [vmem:[%s194 + $0x68] sm:$0xff]
      %v219 = vld [vmem:[%s194 + $0x70] sm:$0xff]
      %v220 = vld [vmem:[%s194 + $0x78] sm:$0xff]
      %v221 = vld [vmem:[%s1] sm:$0xff]
      %v222 = vld [vmem:[%s1 + $0x8] sm:$0xff]
      %v223 = vld [vmem:[%s1 + $0x10] sm:$0xff]
      %v224 = vld [vmem:[%s1 + $0x18] sm:$0xff]
      %v225 = vld [vmem:[%s1 + $0x20] sm:$0xff]
      %v226 = vld [vmem:[%s1 + $0x28] sm:$0xff]
      %v227 = vld [vmem:[%s1 + $0x30] sm:$0xff]
      %v228 = vld [vmem:[%s1 + $0x38] sm:$0xff]
      %v229 = vld [vmem:[%s1 + $0x40] sm:$0xff]
      %v230 = vld [vmem:[%s1 + $0x48] sm:$0xff]
      %v231 = vld [vmem:[%s1 + $0x50] sm:$0xff]
      %v232 = vld [vmem:[%s1 + $0x58] sm:$0xff]
      %v233 = vld [vmem:[%s1 + $0x60] sm:$0xff]
      %v234 = vld [vmem:[%s1 + $0x68] sm:$0xff]
      %v235 = vld [vmem:[%s1 + $0x70] sm:$0xff]
      %v236 = vld [vmem:[%s1 + $0x78] sm:$0xff]
      %v237 = vld [vmem:[%s1 + $0x80] sm:$0xff]
      %v238 = vld [vmem:[%s1 + $0x88] sm:$0xff]
      %v239 = vld [vmem:[%s1 + $0x90] sm:$0xff]
      %v240 = vld [vmem:[%s1 + $0x98] sm:$0xff]
      %v241 = vld [vmem:[%s1 + $0xa0] sm:$0xff]
      %v242 = vld [vmem:[%s1 + $0xa8] sm:$0xff]
      %v243 = vld [vmem:[%s1 + $0xb0] sm:$0xff]
      %v244 = vld [vmem:[%s1 + $0xb8] sm:$0xff]
      %v245 = vld [vmem:[%s1 + $0xc0] sm:$0xff]
      %v246 = vld [vmem:[%s1 + $0xc8] sm:$0xff]
      %v247 = vld [vmem:[%s1 + $0xd0] sm:$0xff]
      %v248 = vld [vmem:[%s1 + $0xd8] sm:$0xff]
      %v249 = vld [vmem:[%s1 + $0xe0] sm:$0xff]
      %v250 = vld [vmem:[%s1 + $0xe8] sm:$0xff]
      %v251 = vld [vmem:[%s1 + $0xf0] sm:$0xff]
      %v252 = vld [vmem:[%s1 + $0xf8] sm:$0xff]
      %v253 = vld [vmem:[%s1 + $0x100] sm:$0xff]
      %v254 = vld [vmem:[%s1 + $0x108] sm:$0xff]
      %v255 = vld [vmem:[%s1 + $0x110] sm:$0xff]
      %v256 = vld [vmem:[%s1 + $0x118] sm:$0xff]
      %v257 = vld [vmem:[%s1 + $0x120] sm:$0xff]
      %v258 = vld [vmem:[%s1 + $0x128] sm:$0xff]
      %v259 = vld [vmem:[%s1 + $0x130] sm:$0xff]
      %v260 = vld [vmem:[%s1 + $0x138] sm:$0xff]
      %v261 = vld [vmem:[%s1 + $0x140] sm:$0xff]
      %v262 = vld [vmem:[%s1 + $0x148] sm:$0xff]
      %v263 = vld [vmem:[%s1 + $0x150] sm:$0xff]
      %v264 = vld [vmem:[%s1 + $0x158] sm:$0xff]
      %v265 = vld [vmem:[%s1 + $0x160] sm:$0xff]
      %v266 = vld [vmem:[%s1 + $0x168] sm:$0xff]
      %v267 = vld [vmem:[%s1 + $0x170] sm:$0xff]
      %v268 = vld [vmem:[%s1 + $0x178] sm:$0xff]
      %v269 = vld [vmem:[%s1 + $0x180] sm:$0xff]
      %v270 = vld [vmem:[%s1 + $0x188] sm:$0xff]
      %v271 = vld [vmem:[%s1 + $0x190] sm:$0xff]
      %v272 = vld [vmem:[%s1 + $0x198] sm:$0xff]
      %v273 = vld [vmem:[%s1 + $0x1a0] sm:$0xff]
      %v274 = vld [vmem:[%s1 + $0x1a8] sm:$0xff]
      %v275 = vld [vmem:[%s1 + $0x1b0] sm:$0xff]
      %v276 = vld [vmem:[%s1 + $0x1b8] sm:$0xff]
      %v277 = vld [vmem:[%s1 + $0x1c0] sm:$0xff]
      %v278 = vld [vmem:[%s1 + $0x1c8] sm:$0xff]
      %v279 = vld [vmem:[%s1 + $0x1d0] sm:$0xff]
      %v280 = vld [vmem:[%s1 + $0x1d8] sm:$0xff]
      %v281 = vld [vmem:[%s1 + $0x1e0] sm:$0xff]
      %v282 = vld [vmem:[%s1 + $0x1e8] sm:$0xff]
      %v283 = vld [vmem:[%s1 + $0x1f0] sm:$0xff]
      %v284 = vld [vmem:[%s1 + $0x1f8] sm:$0xff]
      %v285 = vld [vmem:[%s1 + $0x200] sm:$0xff]
      %v286 = vld [vmem:[%s1 + $0x208] sm:$0xff]
      %v287 = vld [vmem:[%s1 + $0x210] sm:$0xff]
      %v288 = vld [vmem:[%s1 + $0x218] sm:$0xff]
      %v289 = vld [vmem:[%s1 + $0x220] sm:$0xff]
      %v290 = vld [vmem:[%s1 + $0x228] sm:$0xff]
      %v291 = vld [vmem:[%s1 + $0x230] sm:$0xff]
      %v292 = vld [vmem:[%s1 + $0x238] sm:$0xff]
      %v293 = vld [vmem:[%s1 + $0x240] sm:$0xff]
      %v294 = vld [vmem:[%s1 + $0x248] sm:$0xff]
      %v295 = vld [vmem:[%s1 + $0x250] sm:$0xff]
      %v296 = vld [vmem:[%s1 + $0x258] sm:$0xff]
      %v297 = vld [vmem:[%s1 + $0x260] sm:$0xff]
      %v298 = vld [vmem:[%s1 + $0x268] sm:$0xff]
      %v299 = vld [vmem:[%s1 + $0x270] sm:$0xff]
      %v300 = vld [vmem:[%s1 + $0x278] sm:$0xff]
      %v301 = vld [vmem:[%s1 + $0x280] sm:$0xff]
      %v302 = vld [vmem:[%s1 + $0x288] sm:$0xff]
      %v303 = vld [vmem:[%s1 + $0x290] sm:$0xff]
      %v304 = vld [vmem:[%s1 + $0x298] sm:$0xff]
      %v305 = vld [vmem:[%s1 + $0x2a0] sm:$0xff]
      %v306 = vld [vmem:[%s1 + $0x2a8] sm:$0xff]
      %v307 = vld [vmem:[%s1 + $0x2b0] sm:$0xff]
      %v308 = vld [vmem:[%s1 + $0x2b8] sm:$0xff]
      %v309 = vld [vmem:[%s1 + $0x2c0] sm:$0xff]
      %v310 = vld [vmem:[%s1 + $0x2c8] sm:$0xff]
      %v311 = vld [vmem:[%s1 + $0x2d0] sm:$0xff]
      %v312 = vld [vmem:[%s1 + $0x2d8] sm:$0xff]
      %v313 = vld [vmem:[%s1 + $0x2e0] sm:$0xff]
      %v314 = vld [vmem:[%s1 + $0x2e8] sm:$0xff]
      %v315 = vld [vmem:[%s1 + $0x2f0] sm:$0xff]
      %v316 = vld [vmem:[%s1 + $0x2f8] sm:$0xff]
      %v317 = vld [vmem:[%s1 + $0x300] sm:$0xff]
      %v318 = vld [vmem:[%s1 + $0x308] sm:$0xff]
      %v319 = vld [vmem:[%s1 + $0x310] sm:$0xff]
      %v320 = vld [vmem:[%s1 + $0x318] sm:$0xff]
      %v321 = vld [vmem:[%s1 + $0x320] sm:$0xff]
      %v322 = vld [vmem:[%s1 + $0x328] sm:$0xff]
      %v323 = vld [vmem:[%s1 + $0x330] sm:$0xff]
      %v324 = vld [vmem:[%s1 + $0x338] sm:$0xff]
      %v325 = vld [vmem:[%s1 + $0x340] sm:$0xff]
      %v326 = vld [vmem:[%s1 + $0x348] sm:$0xff]
      %v327 = vld [vmem:[%s1 + $0x350] sm:$0xff]
      %v328 = vld [vmem:[%s1 + $0x358] sm:$0xff]
      %v329 = vld [vmem:[%s1 + $0x360] sm:$0xff]
      %v330 = vld [vmem:[%s1 + $0x368] sm:$0xff]
      %v331 = vld [vmem:[%s1 + $0x370] sm:$0xff]
      %v332 = vld [vmem:[%s1 + $0x378] sm:$0xff]
      %v333 = vld [vmem:[%s1 + $0x380] sm:$0xff]
      %v334 = vld [vmem:[%s1 + $0x388] sm:$0xff]
      %v335 = vld [vmem:[%s1 + $0x390] sm:$0xff]
      %v336 = vld [vmem:[%s1 + $0x398] sm:$0xff]
      %v337 = vld [vmem:[%s1 + $0x3a0] sm:$0xff]
      %v338 = vld [vmem:[%s1 + $0x3a8] sm:$0xff]
      %v339 = vld [vmem:[%s1 + $0x3b0] sm:$0xff]
      %v340 = vld [vmem:[%s1 + $0x3b8] sm:$0xff]
      %v341 = vld [vmem:[%s1 + $0x3c0] sm:$0xff]
      %v342 = vld [vmem:[%s1 + $0x3c8] sm:$0xff]
      %v343 = vld [vmem:[%s1 + $0x3d0] sm:$0xff]
      %v344 = vld [vmem:[%s1 + $0x3d8] sm:$0xff]
      %v345 = vld [vmem:[%s1 + $0x3e0] sm:$0xff]
      %v346 = vld [vmem:[%s1 + $0x3e8] sm:$0xff]
      %v347 = vld [vmem:[%s1 + $0x3f0] sm:$0xff]
      %v348 = vld [vmem:[%s1 + $0x3f8] sm:$0xff]
      %v349 = vld [vmem:[%s1 + $0x400] sm:$0xff]
      %v350 = vld [vmem:[%s1 + $0x408] sm:$0xff]
      %v351 = vld [vmem:[%s1 + $0x410] sm:$0xff]
      %v352 = vld [vmem:[%s1 + $0x418] sm:$0xff]
      %v353 = vld [vmem:[%s1 + $0x420] sm:$0xff]
      %v354 = vld [vmem:[%s1 + $0x428] sm:$0xff]
      %v355 = vld [vmem:[%s1 + $0x430] sm:$0xff]
      %v356 = vld [vmem:[%s1 + $0x438] sm:$0xff]
      %v357 = vld [vmem:[%s1 + $0x440] sm:$0xff]
      %v358 = vld [vmem:[%s1 + $0x448] sm:$0xff]
      %v359 = vld [vmem:[%s1 + $0x450] sm:$0xff]
      %v360 = vld [vmem:[%s1 + $0x458] sm:$0xff]
      %v361 = vld [vmem:[%s1 + $0x460] sm:$0xff]
      %v362 = vld [vmem:[%s1 + $0x468] sm:$0xff]
      %v363 = vld [vmem:[%s1 + $0x470] sm:$0xff]
      %v364 = vld [vmem:[%s1 + $0x478] sm:$0xff]
      %v365 = vld [vmem:[%s1 + $0x480] sm:$0xff]
      %v366 = vld [vmem:[%s1 + $0x488] sm:$0xff]
      %v367 = vld [vmem:[%s1 + $0x490] sm:$0xff]
      %v368 = vld [vmem:[%s1 + $0x498] sm:$0xff]
      %v369 = vld [vmem:[%s1 + $0x4a0] sm:$0xff]
      %v370 = vld [vmem:[%s1 + $0x4a8] sm:$0xff]
      %v371 = vld [vmem:[%s1 + $0x4b0] sm:$0xff]
      %v372 = vld [vmem:[%s1 + $0x4b8] sm:$0xff]
      %v373 = vld [vmem:[%s1 + $0x4c0] sm:$0xff]
      %v374 = vld [vmem:[%s1 + $0x4c8] sm:$0xff]
      %v375 = vld [vmem:[%s1 + $0x4d0] sm:$0xff]
      %v376 = vld [vmem:[%s1 + $0x4d8] sm:$0xff]
      %v377 = vld [vmem:[%s1 + $0x4e0] sm:$0xff]
      %v378 = vld [vmem:[%s1 + $0x4e8] sm:$0xff]
      %v379 = vld [vmem:[%s1 + $0x4f0] sm:$0xff]
      %v380 = vld [vmem:[%s1 + $0x4f8] sm:$0xff]
      %v381 = vld [vmem:[%s1 + $0x500] sm:$0xff]
      %v382 = vld [vmem:[%s1 + $0x508] sm:$0xff]
      %v383 = vld [vmem:[%s1 + $0x510] sm:$0xff]
      %v384 = vld [vmem:[%s1 + $0x518] sm:$0xff]
      %v385 = vld [vmem:[%s1 + $0x520] sm:$0xff]
      %v386 = vld [vmem:[%s1 + $0x528] sm:$0xff]
      %v387 = vld [vmem:[%s1 + $0x530] sm:$0xff]
      %v388 = vld [vmem:[%s1 + $0x538] sm:$0xff]
      %v389 = vld [vmem:[%s1 + $0x540] sm:$0xff]
      %v390 = vld [vmem:[%s1 + $0x548] sm:$0xff]
      %v391 = vld [vmem:[%s1 + $0x550] sm:$0xff]
      %v392 = vld [vmem:[%s1 + $0x558] sm:$0xff]
      %v393 = vld [vmem:[%s1 + $0x560] sm:$0xff]
      %v394 = vld [vmem:[%s1 + $0x568] sm:$0xff]
      %v395 = vld [vmem:[%s1 + $0x570] sm:$0xff]
      %v396 = vld [vmem:[%s1 + $0x578] sm:$0xff]
      %v397 = vld [vmem:[%s1 + $0x580] sm:$0xff]
      %v398 = vld [vmem:[%s1 + $0x588] sm:$0xff]
      %v399 = vld [vmem:[%s1 + $0x590] sm:$0xff]
      %v400 = vld [vmem:[%s1 + $0x598] sm:$0xff]
      %v401 = vld [vmem:[%s1 + $0x5a0] sm:$0xff]
      %v402 = vld [vmem:[%s1 + $0x5a8] sm:$0xff]
      %v403 = vld [vmem:[%s1 + $0x5b0] sm:$0xff]
      %v404 = vld [vmem:[%s1 + $0x5b8] sm:$0xff]
      %v405 = vld [vmem:[%s1 + $0x5c0] sm:$0xff]
      %v406 = vld [vmem:[%s1 + $0x5c8] sm:$0xff]
      %v407 = vld [vmem:[%s1 + $0x5d0] sm:$0xff]
      %v408 = vld [vmem:[%s1 + $0x5d8] sm:$0xff]
      %v409 = vld [vmem:[%s1 + $0x5e0] sm:$0xff]
      %v410 = vld [vmem:[%s1 + $0x5e8] sm:$0xff]
      %v411 = vld [vmem:[%s1 + $0x5f0] sm:$0xff]
      %v412 = vld [vmem:[%s1 + $0x5f8] sm:$0xff]
      %v413 = vld [vmem:[%s2] sm:$0xff]
      %v415 = vlaneseq
      %v416 = vshrl.u32 %v415, 7
      %v417 = vsub.s32 0, %v416
      %v418 = vrot.slane %v413, %v417
      %v419 = vlaneseq
      %v420 = vshrl.u32 %v419, 7
      %v421 = vsub.s32 1, %v420
      %v422 = vrot.slane %v413, %v421
      %v423 = vlaneseq
      %v424 = vshrl.u32 %v423, 7
      %v425 = vsub.s32 2, %v424
      %v426 = vrot.slane %v413, %v425
      %v427 = vlaneseq
      %v428 = vshrl.u32 %v427, 7
      %v429 = vsub.s32 3, %v428
      %v430 = vrot.slane %v413, %v429
      %v431 = vlaneseq
      %v432 = vshrl.u32 %v431, 7
      %v433 = vsub.s32 4, %v432
      %v434 = vrot.slane %v413, %v433
      %v435 = vlaneseq
      %v436 = vshrl.u32 %v435, 7
      %v437 = vsub.s32 5, %v436
      %v438 = vrot.slane %v413, %v437
      %v439 = vlaneseq
      %v440 = vshrl.u32 %v439, 7
      %v441 = vsub.s32 6, %v440
      %v442 = vrot.slane %v413, %v441
      %v443 = vlaneseq
      %v444 = vshrl.u32 %v443, 7
      %v445 = vsub.s32 7, %v444
      %v446 = vrot.slane %v413, %v445
      %vm455 = vcmask 523264
      %v457 = vsel %vm455, %v206, 0
      %v460 = vsel %vm455, %v208, 0
      %v463 = vsel %vm455, %v210, 0
      %v466 = vsel %vm455, %v212, 0
      %v469 = vsel %vm455, %v214, 0
      %v472 = vsel %vm455, %v216, 0
      %v475 = vsel %vm455, %v218, 0
      %v478 = vsel %vm455, %v220, 0
      %480 = vmatprep.subr.mxu0 %v342
      %481 = vmatpush1.msra.mxu0 %v341
      %482 = vmatprep.subr.mxu0 %v334
      %483 = vmatpush1.msra.mxu0 %v333
      %484 = vmatprep.subr.mxu0 %v326
      %485 = vmatpush1.msra.mxu0 %v325
      %486 = vmatprep.subr.mxu0 %v318
      %487 = vmatpush1.msra.mxu0 %v317
      %488 = vmatprep.subr.mxu0 %v310
      %489 = vmatpush1.msra.mxu0 %v309
      %490 = vmatprep.subr.mxu0 %v302
      %491 = vmatpush1.msra.mxu0 %v301
      %492 = vmatprep.subr.mxu0 %v294
      %493 = vmatpush1.msra.mxu0 %v293
      %494 = vmatprep.subr.mxu0 %v286
      %495 = vmatpush1.msra.mxu0 %v285
      %496 = vmatprep.subr.mxu0 %v278
      %497 = vmatpush1.msra.mxu0 %v277
      %498 = vmatprep.subr.mxu0 %v270
      %499 = vmatpush1.msra.mxu0 %v269
      %500 = vmatprep.subr.mxu0 %v262
      %501 = vmatpush1.msra.mxu0 %v261
      %502 = vmatprep.subr.mxu0 %v254
      %503 = vmatpush1.msra.mxu0 %v253
      %504 = vmatprep.subr.mxu0 %v246
      %505 = vmatpush1.msra.mxu0 %v245
      %506 = vmatprep.subr.mxu0 %v238
      %507 = vmatpush1.msra.mxu0 %v237
      %508 = vmatprep.subr.mxu0 %v230
      %509 = vmatpush1.msra.mxu0 %v229
      %510 = vmatprep.subr.mxu0 %v222
      %511 = vmatpush1.msra.mxu0 %v221
      %512 = vmatprep.subr.mxu0 0.0
      %513 = vmatpush2.msra.mxu0 0.0
      %514 = vmatprep.subr.mxu0 0.0
      %515 = vmatpush2.msra.mxu0 0.0
      %516 = vmatprep.subr.mxu0 0.0
      %517 = vmatpush2.msra.mxu0 0.0
      %518 = vmatprep.subr.mxu0 0.0
      %519 = vmatpush2.msra.mxu0 0.0
      %520 = vmatprep.subr.mxu0 0.0
      %521 = vmatpush2.msra.mxu0 0.0
      %522 = vmatprep.subr.mxu0 0.0
      %523 = vmatpush2.msra.mxu0 0.0
      %524 = vmatprep.subr.mxu0 0.0
      %525 = vmatpush2.msra.mxu0 0.0
      %526 = vmatprep.subr.mxu0 0.0
      %527 = vmatpush2.msra.mxu0 0.0
      %528 = vmatprep.subr.mxu0 %v406
      %529 = vmatpush2.msra.mxu0 %v405
      %530 = vmatprep.subr.mxu0 %v398
      %531 = vmatpush2.msra.mxu0 %v397
      %532 = vmatprep.subr.mxu0 %v390
      %533 = vmatpush2.msra.mxu0 %v389
      %534 = vmatprep.subr.mxu0 %v382
      %535 = vmatpush2.msra.mxu0 %v381
      %536 = vmatprep.subr.mxu0 %v374
      %537 = vmatpush2.msra.mxu0 %v373
      %538 = vmatprep.subr.mxu0 %v366
      %539 = vmatpush2.msra.mxu0 %v365
      %540 = vmatprep.subr.mxu0 %v358
      %541 = vmatpush2.msra.mxu0 %v357
      %542 = vmatprep.subr.mxu0 %v350
      %543 = vmatpush2.msra.mxu0 %v349
      %544 = vmatprep.mubr.f32.mxu0 %v457
      %545 = vmatmul.mubr.f32.gmra.mxu0 %v205
      %v546 = vpop.f32.mrf.mxu0
      %v547 = vadd.f32 %v418, %v546
      %v548 = vpop.f32.mrf.mxu0
      %v549 = vadd.f32 %v422, %v548
      %550 = vmatprep.mubr.f32.mxu0 %v460
      %551 = vmatmul.mubr.f32.gmra.mxu0 %v207
      %v552 = vpop.f32.mrf.mxu0
      %v553 = vadd.f32 %v418, %v552
      %v554 = vpop.f32.mrf.mxu0
      %v555 = vadd.f32 %v422, %v554
      %556 = vmatprep.mubr.f32.mxu0 %v463
      %557 = vmatmul.mubr.f32.gmra.mxu0 %v209
      %v558 = vpop.f32.mrf.mxu0
      %v559 = vadd.f32 %v418, %v558
      %v560 = vpop.f32.mrf.mxu0
      %v561 = vadd.f32 %v422, %v560
      %562 = vmatprep.mubr.f32.mxu0 %v466
      %563 = vmatmul.mubr.f32.gmra.mxu0 %v211
      %v564 = vpop.f32.mrf.mxu0
      %v565 = vadd.f32 %v418, %v564
      %v566 = vpop.f32.mrf.mxu0
      %v567 = vadd.f32 %v422, %v566
      %568 = vmatprep.mubr.f32.mxu0 %v469
      %569 = vmatmul.mubr.f32.gmra.mxu0 %v213
      %v570 = vpop.f32.mrf.mxu0
      %v571 = vadd.f32 %v418, %v570
      %v572 = vpop.f32.mrf.mxu0
      %v573 = vadd.f32 %v422, %v572
      %574 = vmatprep.mubr.f32.mxu0 %v472
      %575 = vmatmul.mubr.f32.gmra.mxu0 %v215
      %v576 = vpop.f32.mrf.mxu0
      %v577 = vadd.f32 %v418, %v576
      %v578 = vpop.f32.mrf.mxu0
      %v579 = vadd.f32 %v422, %v578
      %580 = vmatprep.mubr.f32.mxu0 %v475
      %581 = vmatmul.mubr.f32.gmra.mxu0 %v217
      %v582 = vpop.f32.mrf.mxu0
      %v583 = vadd.f32 %v418, %v582
      %v584 = vpop.f32.mrf.mxu0
      %v585 = vadd.f32 %v422, %v584
      %586 = vmatprep.mubr.f32.mxu0 %v478
      %587 = vmatmul.mubr.f32.gmra.mxu0 %v219
      %v588 = vpop.f32.mrf.mxu0
      %v589 = vadd.f32 %v418, %v588
      %v590 = vpop.f32.mrf.mxu0
      %v591 = vadd.f32 %v422, %v590
      %592 = vdwg.mxu0
      %593 = vmatprep.subr.mxu0 %v344
      %594 = vmatpush1.msra.mxu0 %v343
      %595 = vmatprep.subr.mxu0 %v336
      %596 = vmatpush1.msra.mxu0 %v335
      %597 = vmatprep.subr.mxu0 %v328
      %598 = vmatpush1.msra.mxu0 %v327
      %599 = vmatprep.subr.mxu0 %v320
      %600 = vmatpush1.msra.mxu0 %v319
      %601 = vmatprep.subr.mxu0 %v312
      %602 = vmatpush1.msra.mxu0 %v311
      %603 = vmatprep.subr.mxu0 %v304
      %604 = vmatpush1.msra.mxu0 %v303
      %605 = vmatprep.subr.mxu0 %v296
      %606 = vmatpush1.msra.mxu0 %v295
      %607 = vmatprep.subr.mxu0 %v288
      %608 = vmatpush1.msra.mxu0 %v287
      %609 = vmatprep.subr.mxu0 %v280
      %610 = vmatpush1.msra.mxu0 %v279
      %611 = vmatprep.subr.mxu0 %v272
      %612 = vmatpush1.msra.mxu0 %v271
      %613 = vmatprep.subr.mxu0 %v264
      %614 = vmatpush1.msra.mxu0 %v263
      %615 = vmatprep.subr.mxu0 %v256
      %616 = vmatpush1.msra.mxu0 %v255
      %617 = vmatprep.subr.mxu0 %v248
      %618 = vmatpush1.msra.mxu0 %v247
      %619 = vmatprep.subr.mxu0 %v240
      %620 = vmatpush1.msra.mxu0 %v239
      %621 = vmatprep.subr.mxu0 %v232
      %622 = vmatpush1.msra.mxu0 %v231
      %623 = vmatprep.subr.mxu0 %v224
      %624 = vmatpush1.msra.mxu0 %v223
      %625 = vmatprep.subr.mxu0 0.0
      %626 = vmatpush2.msra.mxu0 0.0
      %627 = vmatprep.subr.mxu0 0.0
      %628 = vmatpush2.msra.mxu0 0.0
      %629 = vmatprep.subr.mxu0 0.0
      %630 = vmatpush2.msra.mxu0 0.0
      %631 = vmatprep.subr.mxu0 0.0
      %632 = vmatpush2.msra.mxu0 0.0
      %633 = vmatprep.subr.mxu0 0.0
      %634 = vmatpush2.msra.mxu0 0.0
      %635 = vmatprep.subr.mxu0 0.0
      %636 = vmatpush2.msra.mxu0 0.0
      %637 = vmatprep.subr.mxu0 0.0
      %638 = vmatpush2.msra.mxu0 0.0
      %639 = vmatprep.subr.mxu0 0.0
      %640 = vmatpush2.msra.mxu0 0.0
      %641 = vmatprep.subr.mxu0 %v408
      %642 = vmatpush2.msra.mxu0 %v407
      %643 = vmatprep.subr.mxu0 %v400
      %644 = vmatpush2.msra.mxu0 %v399
      %645 = vmatprep.subr.mxu0 %v392
      %646 = vmatpush2.msra.mxu0 %v391
      %647 = vmatprep.subr.mxu0 %v384
      %648 = vmatpush2.msra.mxu0 %v383
      %649 = vmatprep.subr.mxu0 %v376
      %650 = vmatpush2.msra.mxu0 %v375
      %651 = vmatprep.subr.mxu0 %v368
      %652 = vmatpush2.msra.mxu0 %v367
      %653 = vmatprep.subr.mxu0 %v360
      %654 = vmatpush2.msra.mxu0 %v359
      %655 = vmatprep.subr.mxu0 %v352
      %656 = vmatpush2.msra.mxu0 %v351
      %657 = vmatprep.mubr.f32.mxu0 %v457
      %658 = vmatmul.mubr.f32.gmra.mxu0 %v205
      %v659 = vpop.f32.mrf.mxu0
      %v660 = vadd.f32 %v426, %v659
      %v661 = vpop.f32.mrf.mxu0
      %v662 = vadd.f32 %v430, %v661
      %663 = vmatprep.mubr.f32.mxu0 %v460
      %664 = vmatmul.mubr.f32.gmra.mxu0 %v207
      %v665 = vpop.f32.mrf.mxu0
      %v666 = vadd.f32 %v426, %v665
      %v667 = vpop.f32.mrf.mxu0
      %v668 = vadd.f32 %v430, %v667
      %669 = vmatprep.mubr.f32.mxu0 %v463
      %670 = vmatmul.mubr.f32.gmra.mxu0 %v209
      %v671 = vpop.f32.mrf.mxu0
      %v672 = vadd.f32 %v426, %v671
      %v673 = vpop.f32.mrf.mxu0
      %v674 = vadd.f32 %v430, %v673
      %675 = vmatprep.mubr.f32.mxu0 %v466
      %676 = vmatmul.mubr.f32.gmra.mxu0 %v211
      %v677 = vpop.f32.mrf.mxu0
      %v678 = vadd.f32 %v426, %v677
      %v679 = vpop.f32.mrf.mxu0
      %v680 = vadd.f32 %v430, %v679
      %681 = vmatprep.mubr.f32.mxu0 %v469
      %682 = vmatmul.mubr.f32.gmra.mxu0 %v213
      %v683 = vpop.f32.mrf.mxu0
      %v684 = vadd.f32 %v426, %v683
      %v685 = vpop.f32.mrf.mxu0
      %v686 = vadd.f32 %v430, %v685
      %687 = vmatprep.mubr.f32.mxu0 %v472
      %688 = vmatmul.mubr.f32.gmra.mxu0 %v215
      %v689 = vpop.f32.mrf.mxu0
      %v690 = vadd.f32 %v426, %v689
      %v691 = vpop.f32.mrf.mxu0
      %v692 = vadd.f32 %v430, %v691
      %693 = vmatprep.mubr.f32.mxu0 %v475
      %694 = vmatmul.mubr.f32.gmra.mxu0 %v217
      %v695 = vpop.f32.mrf.mxu0
      %v696 = vadd.f32 %v426, %v695
      %v697 = vpop.f32.mrf.mxu0
      %v698 = vadd.f32 %v430, %v697
      %699 = vmatprep.mubr.f32.mxu0 %v478
      %700 = vmatmul.mubr.f32.gmra.mxu0 %v219
      %v701 = vpop.f32.mrf.mxu0
      %v702 = vadd.f32 %v426, %v701
      %v703 = vpop.f32.mrf.mxu0
      %v704 = vadd.f32 %v430, %v703
      %705 = vdwg.mxu0
      %706 = vmatprep.subr.mxu0 %v346
      %707 = vmatpush1.msra.mxu0 %v345
      %708 = vmatprep.subr.mxu0 %v338
      %709 = vmatpush1.msra.mxu0 %v337
      %710 = vmatprep.subr.mxu0 %v330
      %711 = vmatpush1.msra.mxu0 %v329
      %712 = vmatprep.subr.mxu0 %v322
      %713 = vmatpush1.msra.mxu0 %v321
      %714 = vmatprep.subr.mxu0 %v314
      %715 = vmatpush1.msra.mxu0 %v313
      %716 = vmatprep.subr.mxu0 %v306
      %717 = vmatpush1.msra.mxu0 %v305
      %718 = vmatprep.subr.mxu0 %v298
      %719 = vmatpush1.msra.mxu0 %v297
      %720 = vmatprep.subr.mxu0 %v290
      %721 = vmatpush1.msra.mxu0 %v289
      %722 = vmatprep.subr.mxu0 %v282
      %723 = vmatpush1.msra.mxu0 %v281
      %724 = vmatprep.subr.mxu0 %v274
      %725 = vmatpush1.msra.mxu0 %v273
      %726 = vmatprep.subr.mxu0 %v266
      %727 = vmatpush1.msra.mxu0 %v265
      %728 = vmatprep.subr.mxu0 %v258
      %729 = vmatpush1.msra.mxu0 %v257
      %730 = vmatprep.subr.mxu0 %v250
      %731 = vmatpush1.msra.mxu0 %v249
      %732 = vmatprep.subr.mxu0 %v242
      %733 = vmatpush1.msra.mxu0 %v241
      %734 = vmatprep.subr.mxu0 %v234
      %735 = vmatpush1.msra.mxu0 %v233
      %736 = vmatprep.subr.mxu0 %v226
      %737 = vmatpush1.msra.mxu0 %v225
      %738 = vmatprep.subr.mxu0 0.0
      %739 = vmatpush2.msra.mxu0 0.0
      %740 = vmatprep.subr.mxu0 0.0
      %741 = vmatpush2.msra.mxu0 0.0
      %742 = vmatprep.subr.mxu0 0.0
      %743 = vmatpush2.msra.mxu0 0.0
      %744 = vmatprep.subr.mxu0 0.0
      %745 = vmatpush2.msra.mxu0 0.0
      %746 = vmatprep.subr.mxu0 0.0
      %747 = vmatpush2.msra.mxu0 0.0
      %748 = vmatprep.subr.mxu0 0.0
      %749 = vmatpush2.msra.mxu0 0.0
      %750 = vmatprep.subr.mxu0 0.0
      %751 = vmatpush2.msra.mxu0 0.0
      %752 = vmatprep.subr.mxu0 0.0
      %753 = vmatpush2.msra.mxu0 0.0
      %754 = vmatprep.subr.mxu0 %v410
      %755 = vmatpush2.msra.mxu0 %v409
      %756 = vmatprep.subr.mxu0 %v402
      %757 = vmatpush2.msra.mxu0 %v401
      %758 = vmatprep.subr.mxu0 %v394
      %759 = vmatpush2.msra.mxu0 %v393
      %760 = vmatprep.subr.mxu0 %v386
      %761 = vmatpush2.msra.mxu0 %v385
      %762 = vmatprep.subr.mxu0 %v378
      %763 = vmatpush2.msra.mxu0 %v377
      %764 = vmatprep.subr.mxu0 %v370
      %765 = vmatpush2.msra.mxu0 %v369
      %766 = vmatprep.subr.mxu0 %v362
      %767 = vmatpush2.msra.mxu0 %v361
      %768 = vmatprep.subr.mxu0 %v354
      %769 = vmatpush2.msra.mxu0 %v353
      %770 = vmatprep.mubr.f32.mxu0 %v457
      %771 = vmatmul.mubr.f32.gmra.mxu0 %v205
      %v772 = vpop.f32.mrf.mxu0
      %v773 = vadd.f32 %v434, %v772
      %v774 = vpop.f32.mrf.mxu0
      %v775 = vadd.f32 %v438, %v774
      %776 = vmatprep.mubr.f32.mxu0 %v460
      %777 = vmatmul.mubr.f32.gmra.mxu0 %v207
      %v778 = vpop.f32.mrf.mxu0
      %v779 = vadd.f32 %v434, %v778
      %v780 = vpop.f32.mrf.mxu0
      %v781 = vadd.f32 %v438, %v780
      %782 = vmatprep.mubr.f32.mxu0 %v463
      %783 = vmatmul.mubr.f32.gmra.mxu0 %v209
      %v784 = vpop.f32.mrf.mxu0
      %v785 = vadd.f32 %v434, %v784
      %v786 = vpop.f32.mrf.mxu0
      %v787 = vadd.f32 %v438, %v786
      %788 = vmatprep.mubr.f32.mxu0 %v466
      %789 = vmatmul.mubr.f32.gmra.mxu0 %v211
      %v790 = vpop.f32.mrf.mxu0
      %v791 = vadd.f32 %v434, %v790
      %v792 = vpop.f32.mrf.mxu0
      %v793 = vadd.f32 %v438, %v792
      %794 = vmatprep.mubr.f32.mxu0 %v469
      %795 = vmatmul.mubr.f32.gmra.mxu0 %v213
      %v796 = vpop.f32.mrf.mxu0
      %v797 = vadd.f32 %v434, %v796
      %v798 = vpop.f32.mrf.mxu0
      %v799 = vadd.f32 %v438, %v798
      %800 = vmatprep.mubr.f32.mxu0 %v472
      %801 = vmatmul.mubr.f32.gmra.mxu0 %v215
      %v802 = vpop.f32.mrf.mxu0
      %v803 = vadd.f32 %v434, %v802
      %v804 = vpop.f32.mrf.mxu0
      %v805 = vadd.f32 %v438, %v804
      %806 = vmatprep.mubr.f32.mxu0 %v475
      %807 = vmatmul.mubr.f32.gmra.mxu0 %v217
      %v808 = vpop.f32.mrf.mxu0
      %v809 = vadd.f32 %v434, %v808
      %v810 = vpop.f32.mrf.mxu0
      %v811 = vadd.f32 %v438, %v810
      %812 = vmatprep.mubr.f32.mxu0 %v478
      %813 = vmatmul.mubr.f32.gmra.mxu0 %v219
      %v814 = vpop.f32.mrf.mxu0
      %v815 = vadd.f32 %v434, %v814
      %v816 = vpop.f32.mrf.mxu0
      %v817 = vadd.f32 %v438, %v816
      %818 = vdwg.mxu0
      %819 = vmatprep.subr.mxu0 %v348
      %820 = vmatpush1.msra.mxu0 %v347
      %821 = vmatprep.subr.mxu0 %v340
      %822 = vmatpush1.msra.mxu0 %v339
      %823 = vmatprep.subr.mxu0 %v332
      %824 = vmatpush1.msra.mxu0 %v331
      %825 = vmatprep.subr.mxu0 %v324
      %826 = vmatpush1.msra.mxu0 %v323
      %827 = vmatprep.subr.mxu0 %v316
      %828 = vmatpush1.msra.mxu0 %v315
      %829 = vmatprep.subr.mxu0 %v308
      %830 = vmatpush1.msra.mxu0 %v307
      %831 = vmatprep.subr.mxu0 %v300
      %832 = vmatpush1.msra.mxu0 %v299
      %833 = vmatprep.subr.mxu0 %v292
      %834 = vmatpush1.msra.mxu0 %v291
      %835 = vmatprep.subr.mxu0 %v284
      %836 = vmatpush1.msra.mxu0 %v283
      %837 = vmatprep.subr.mxu0 %v276
      %838 = vmatpush1.msra.mxu0 %v275
      %839 = vmatprep.subr.mxu0 %v268
      %840 = vmatpush1.msra.mxu0 %v267
      %841 = vmatprep.subr.mxu0 %v260
      %842 = vmatpush1.msra.mxu0 %v259
      %843 = vmatprep.subr.mxu0 %v252
      %844 = vmatpush1.msra.mxu0 %v251
      %845 = vmatprep.subr.mxu0 %v244
      %846 = vmatpush1.msra.mxu0 %v243
      %847 = vmatprep.subr.mxu0 %v236
      %848 = vmatpush1.msra.mxu0 %v235
      %849 = vmatprep.subr.mxu0 %v228
      %850 = vmatpush1.msra.mxu0 %v227
      %851 = vmatprep.subr.mxu0 0.0
      %852 = vmatpush2.msra.mxu0 0.0
      %853 = vmatprep.subr.mxu0 0.0
      %854 = vmatpush2.msra.mxu0 0.0
      %855 = vmatprep.subr.mxu0 0.0
      %856 = vmatpush2.msra.mxu0 0.0
      %857 = vmatprep.subr.mxu0 0.0
      %858 = vmatpush2.msra.mxu0 0.0
      %859 = vmatprep.subr.mxu0 0.0
      %860 = vmatpush2.msra.mxu0 0.0
      %861 = vmatprep.subr.mxu0 0.0
      %862 = vmatpush2.msra.mxu0 0.0
      %863 = vmatprep.subr.mxu0 0.0
      %864 = vmatpush2.msra.mxu0 0.0
      %865 = vmatprep.subr.mxu0 0.0
      %866 = vmatpush2.msra.mxu0 0.0
      %867 = vmatprep.subr.mxu0 %v412
      %868 = vmatpush2.msra.mxu0 %v411
      %869 = vmatprep.subr.mxu0 %v404
      %870 = vmatpush2.msra.mxu0 %v403
      %871 = vmatprep.subr.mxu0 %v396
      %872 = vmatpush2.msra.mxu0 %v395
      %873 = vmatprep.subr.mxu0 %v388
      %874 = vmatpush2.msra.mxu0 %v387
      %875 = vmatprep.subr.mxu0 %v380
      %876 = vmatpush2.msra.mxu0 %v379
      %877 = vmatprep.subr.mxu0 %v372
      %878 = vmatpush2.msra.mxu0 %v371
      %879 = vmatprep.subr.mxu0 %v364
      %880 = vmatpush2.msra.mxu0 %v363
      %881 = vmatprep.subr.mxu0 %v356
      %882 = vmatpush2.msra.mxu0 %v355
      %883 = vmatprep.mubr.f32.mxu0 %v457
      %884 = vmatmul.mubr.f32.gmra.mxu0 %v205
      %v885 = vpop.f32.mrf.mxu0
      %v886 = vadd.f32 %v442, %v885
      %v887 = vpop.f32.mrf.mxu0
      %v888 = vadd.f32 %v446, %v887
      %889 = vmatprep.mubr.f32.mxu0 %v460
      %890 = vmatmul.mubr.f32.gmra.mxu0 %v207
      %v891 = vpop.f32.mrf.mxu0
      %v892 = vadd.f32 %v442, %v891
      %v893 = vpop.f32.mrf.mxu0
      %v894 = vadd.f32 %v446, %v893
      %895 = vmatprep.mubr.f32.mxu0 %v463
      %896 = vmatmul.mubr.f32.gmra.mxu0 %v209
      %v897 = vpop.f32.mrf.mxu0
      %v898 = vadd.f32 %v442, %v897
      %v899 = vpop.f32.mrf.mxu0
      %v900 = vadd.f32 %v446, %v899
      %901 = vmatprep.mubr.f32.mxu0 %v466
      %902 = vmatmul.mubr.f32.gmra.mxu0 %v211
      %v903 = vpop.f32.mrf.mxu0
      %v904 = vadd.f32 %v442, %v903
      %v905 = vpop.f32.mrf.mxu0
      %v906 = vadd.f32 %v446, %v905
      %907 = vmatprep.mubr.f32.mxu0 %v469
      %908 = vmatmul.mubr.f32.gmra.mxu0 %v213
      %v909 = vpop.f32.mrf.mxu0
      %v910 = vadd.f32 %v442, %v909
      %v911 = vpop.f32.mrf.mxu0
      %v912 = vadd.f32 %v446, %v911
      %913 = vmatprep.mubr.f32.mxu0 %v472
      %914 = vmatmul.mubr.f32.gmra.mxu0 %v215
      %v915 = vpop.f32.mrf.mxu0
      %v916 = vadd.f32 %v442, %v915
      %v917 = vpop.f32.mrf.mxu0
      %v918 = vadd.f32 %v446, %v917
      %919 = vmatprep.mubr.f32.mxu0 %v475
      %920 = vmatmul.mubr.f32.gmra.mxu0 %v217
      %v921 = vpop.f32.mrf.mxu0
      %v922 = vadd.f32 %v442, %v921
      %v923 = vpop.f32.mrf.mxu0
      %v924 = vadd.f32 %v446, %v923
      %925 = vmatprep.mubr.f32.mxu0 %v478
      %926 = vmatmul.mubr.f32.gmra.mxu0 %v219
      %v927 = vpop.f32.mrf.mxu0
      %v928 = vadd.f32 %v442, %v927
      %v929 = vpop.f32.mrf.mxu0
      %v930 = vadd.f32 %v446, %v929
      %931 = vdwg.mxu0
      %v932 = vmul.f32 %v547, 0.2
      %v933 = vmul.f32 %v549, 0.2
      %v934 = vmul.f32 %v660, 0.2
      %v935 = vmul.f32 %v662, 0.2
      %v936 = vmul.f32 %v773, 0.2
      %v937 = vmul.f32 %v775, 0.2
      %v938 = vmul.f32 %v886, 0.2
      %v939 = vmul.f32 %v888, 0.2
      %v940 = vmul.f32 %v553, 0.2
      %v941 = vmul.f32 %v555, 0.2
      %v942 = vmul.f32 %v666, 0.2
      %v943 = vmul.f32 %v668, 0.2
      %v944 = vmul.f32 %v779, 0.2
      %v945 = vmul.f32 %v781, 0.2
      %v946 = vmul.f32 %v892, 0.2
      %v947 = vmul.f32 %v894, 0.2
      %v948 = vmul.f32 %v559, 0.2
      %v949 = vmul.f32 %v561, 0.2
      %v950 = vmul.f32 %v672, 0.2
      %v951 = vmul.f32 %v674, 0.2
      %v952 = vmul.f32 %v785, 0.2
      %v953 = vmul.f32 %v787, 0.2
      %v954 = vmul.f32 %v898, 0.2
      %v955 = vmul.f32 %v900, 0.2
      %v956 = vmul.f32 %v565, 0.2
      %v957 = vmul.f32 %v567, 0.2
      %v958 = vmul.f32 %v678, 0.2
      %v959 = vmul.f32 %v680, 0.2
      %v960 = vmul.f32 %v791, 0.2
      %v961 = vmul.f32 %v793, 0.2
      %v962 = vmul.f32 %v904, 0.2
      %v963 = vmul.f32 %v906, 0.2
      %v964 = vmul.f32 %v571, 0.2
      %v965 = vmul.f32 %v573, 0.2
      %v966 = vmul.f32 %v684, 0.2
      %v967 = vmul.f32 %v686, 0.2
      %v968 = vmul.f32 %v797, 0.2
      %v969 = vmul.f32 %v799, 0.2
      %v970 = vmul.f32 %v910, 0.2
      %v971 = vmul.f32 %v912, 0.2
      %v972 = vmul.f32 %v577, 0.2
      %v973 = vmul.f32 %v579, 0.2
      %v974 = vmul.f32 %v690, 0.2
      %v975 = vmul.f32 %v692, 0.2
      %v976 = vmul.f32 %v803, 0.2
      %v977 = vmul.f32 %v805, 0.2
      %v978 = vmul.f32 %v916, 0.2
      %v979 = vmul.f32 %v918, 0.2
      %v980 = vmul.f32 %v583, 0.2
      %v981 = vmul.f32 %v585, 0.2
      %v982 = vmul.f32 %v696, 0.2
      %v983 = vmul.f32 %v698, 0.2
      %v984 = vmul.f32 %v809, 0.2
      %v985 = vmul.f32 %v811, 0.2
      %v986 = vmul.f32 %v922, 0.2
      %v987 = vmul.f32 %v924, 0.2
      %v988 = vmul.f32 %v589, 0.2
      %v989 = vmul.f32 %v591, 0.2
      %v990 = vmul.f32 %v702, 0.2
      %v991 = vmul.f32 %v704, 0.2
      %v992 = vmul.f32 %v815, 0.2
      %v993 = vmul.f32 %v817, 0.2
      %v994 = vmul.f32 %v928, 0.2
      %v995 = vmul.f32 %v930, 0.2
      %v996 = vmax.f32 %v547, %v932
      %v997 = vmax.f32 %v549, %v933
      %v998 = vmax.f32 %v660, %v934
      %v999 = vmax.f32 %v662, %v935
      %v1000 = vmax.f32 %v773, %v936
      %v1001 = vmax.f32 %v775, %v937
      %v1002 = vmax.f32 %v886, %v938
      %v1003 = vmax.f32 %v888, %v939
      %v1004 = vmax.f32 %v553, %v940
      %v1005 = vmax.f32 %v555, %v941
      %v1006 = vmax.f32 %v666, %v942
      %v1007 = vmax.f32 %v668, %v943
      %v1008 = vmax.f32 %v779, %v944
      %v1009 = vmax.f32 %v781, %v945
      %v1010 = vmax.f32 %v892, %v946
      %v1011 = vmax.f32 %v894, %v947
      %v1012 = vmax.f32 %v559, %v948
      %v1013 = vmax.f32 %v561, %v949
      %v1014 = vmax.f32 %v672, %v950
      %v1015 = vmax.f32 %v674, %v951
      %v1016 = vmax.f32 %v785, %v952
      %v1017 = vmax.f32 %v787, %v953
      %v1018 = vmax.f32 %v898, %v954
      %v1019 = vmax.f32 %v900, %v955
      %v1020 = vmax.f32 %v565, %v956
      %v1021 = vmax.f32 %v567, %v957
      %v1022 = vmax.f32 %v678, %v958
      %v1023 = vmax.f32 %v680, %v959
      %v1024 = vmax.f32 %v791, %v960
      %v1025 = vmax.f32 %v793, %v961
      %v1026 = vmax.f32 %v904, %v962
      %v1027 = vmax.f32 %v906, %v963
      %v1028 = vmax.f32 %v571, %v964
      %v1029 = vmax.f32 %v573, %v965
      %v1030 = vmax.f32 %v684, %v966
      %v1031 = vmax.f32 %v686, %v967
      %v1032 = vmax.f32 %v797, %v968
      %v1033 = vmax.f32 %v799, %v969
      %v1034 = vmax.f32 %v910, %v970
      %v1035 = vmax.f32 %v912, %v971
      %v1036 = vmax.f32 %v577, %v972
      %v1037 = vmax.f32 %v579, %v973
      %v1038 = vmax.f32 %v690, %v974
      %v1039 = vmax.f32 %v692, %v975
      %v1040 = vmax.f32 %v803, %v976
      %v1041 = vmax.f32 %v805, %v977
      %v1042 = vmax.f32 %v916, %v978
      %v1043 = vmax.f32 %v918, %v979
      %v1044 = vmax.f32 %v583, %v980
      %v1045 = vmax.f32 %v585, %v981
      %v1046 = vmax.f32 %v696, %v982
      %v1047 = vmax.f32 %v698, %v983
      %v1048 = vmax.f32 %v809, %v984
      %v1049 = vmax.f32 %v811, %v985
      %v1050 = vmax.f32 %v922, %v986
      %v1051 = vmax.f32 %v924, %v987
      %v1052 = vmax.f32 %v589, %v988
      %v1053 = vmax.f32 %v591, %v989
      %v1054 = vmax.f32 %v702, %v990
      %v1055 = vmax.f32 %v704, %v991
      %v1056 = vmax.f32 %v815, %v992
      %v1057 = vmax.f32 %v817, %v993
      %v1058 = vmax.f32 %v928, %v994
      %v1059 = vmax.f32 %v930, %v995
      %v1060 = vld [vmem:[%s199] sm:$0xff]
      %v1061 = vmax.f32 %v996, %v1004
      %v1062 = vmax.f32 %v1061, %v1012
      %v1063 = vmax.f32 %v1062, %v1020
      %v1064 = vmax.f32 %v1063, %v1028
      %v1065 = vmax.f32 %v1064, %v1036
      %v1066 = vmax.f32 %v1065, %v1044
      %v1067 = vmax.f32 %v1066, %v1052
      %v1068 = vrot.slane %v1067, 4
      %v1069 = vmax.f32 %v1067, %v1068
      %v1070 = vrot.slane %v1069, 2
      %v1071 = vmax.f32 %v1069, %v1070
      %v1072 = vrot.slane %v1071, 1
      %v1073 = vmax.f32 %v1071, %v1072
      %v1074 = vmax.f32 %v997, %v1005
      %v1075 = vmax.f32 %v1074, %v1013
      %v1076 = vmax.f32 %v1075, %v1021
      %v1077 = vmax.f32 %v1076, %v1029
      %v1078 = vmax.f32 %v1077, %v1037
      %v1079 = vmax.f32 %v1078, %v1045
      %v1080 = vmax.f32 %v1079, %v1053
      %v1081 = vrot.slane %v1080, 4
      %v1082 = vmax.f32 %v1080, %v1081
      %v1083 = vrot.slane %v1082, 2
      %v1084 = vmax.f32 %v1082, %v1083
      %v1085 = vrot.slane %v1084, 1
      %v1086 = vmax.f32 %v1084, %v1085
      %v1087 = vmax.f32 %v998, %v1006
      %v1088 = vmax.f32 %v1087, %v1014
      %v1089 = vmax.f32 %v1088, %v1022
      %v1090 = vmax.f32 %v1089, %v1030
      %v1091 = vmax.f32 %v1090, %v1038
      %v1092 = vmax.f32 %v1091, %v1046
      %v1093 = vmax.f32 %v1092, %v1054
      %v1094 = vrot.slane %v1093, 4
      %v1095 = vmax.f32 %v1093, %v1094
      %v1096 = vrot.slane %v1095, 2
      %v1097 = vmax.f32 %v1095, %v1096
      %v1098 = vrot.slane %v1097, 1
      %v1099 = vmax.f32 %v1097, %v1098
      %v1100 = vmax.f32 %v999, %v1007
      %v1101 = vmax.f32 %v1100, %v1015
      %v1102 = vmax.f32 %v1101, %v1023
      %v1103 = vmax.f32 %v1102, %v1031
      %v1104 = vmax.f32 %v1103, %v1039
      %v1105 = vmax.f32 %v1104, %v1047
      %v1106 = vmax.f32 %v1105, %v1055
      %v1107 = vrot.slane %v1106, 4
      %v1108 = vmax.f32 %v1106, %v1107
      %v1109 = vrot.slane %v1108, 2
      %v1110 = vmax.f32 %v1108, %v1109
      %v1111 = vrot.slane %v1110, 1
      %v1112 = vmax.f32 %v1110, %v1111
      %v1113 = vmax.f32 %v1000, %v1008
      %v1114 = vmax.f32 %v1113, %v1016
      %v1115 = vmax.f32 %v1114, %v1024
      %v1116 = vmax.f32 %v1115, %v1032
      %v1117 = vmax.f32 %v1116, %v1040
      %v1118 = vmax.f32 %v1117, %v1048
      %v1119 = vmax.f32 %v1118, %v1056
      %v1120 = vrot.slane %v1119, 4
      %v1121 = vmax.f32 %v1119, %v1120
      %v1122 = vrot.slane %v1121, 2
      %v1123 = vmax.f32 %v1121, %v1122
      %v1124 = vrot.slane %v1123, 1
      %v1125 = vmax.f32 %v1123, %v1124
      %v1126 = vmax.f32 %v1001, %v1009
      %v1127 = vmax.f32 %v1126, %v1017
      %v1128 = vmax.f32 %v1127, %v1025
      %v1129 = vmax.f32 %v1128, %v1033
      %v1130 = vmax.f32 %v1129, %v1041
      %v1131 = vmax.f32 %v1130, %v1049
      %v1132 = vmax.f32 %v1131, %v1057
      %v1133 = vrot.slane %v1132, 4
      %v1134 = vmax.f32 %v1132, %v1133
      %v1135 = vrot.slane %v1134, 2
      %v1136 = vmax.f32 %v1134, %v1135
      %v1137 = vrot.slane %v1136, 1
      %v1138 = vmax.f32 %v1136, %v1137
      %v1139 = vmax.f32 %v1002, %v1010
      %v1140 = vmax.f32 %v1139, %v1018
      %v1141 = vmax.f32 %v1140, %v1026
      %v1142 = vmax.f32 %v1141, %v1034
      %v1143 = vmax.f32 %v1142, %v1042
      %v1144 = vmax.f32 %v1143, %v1050
      %v1145 = vmax.f32 %v1144, %v1058
      %v1146 = vrot.slane %v1145, 4
      %v1147 = vmax.f32 %v1145, %v1146
      %v1148 = vrot.slane %v1147, 2
      %v1149 = vmax.f32 %v1147, %v1148
      %v1150 = vrot.slane %v1149, 1
      %v1151 = vmax.f32 %v1149, %v1150
      %v1152 = vmax.f32 %v1003, %v1011
      %v1153 = vmax.f32 %v1152, %v1019
      %v1154 = vmax.f32 %v1153, %v1027
      %v1155 = vmax.f32 %v1154, %v1035
      %v1156 = vmax.f32 %v1155, %v1043
      %v1157 = vmax.f32 %v1156, %v1051
      %v1158 = vmax.f32 %v1157, %v1059
      %v1159 = vrot.slane %v1158, 4
      %v1160 = vmax.f32 %v1158, %v1159
      %v1161 = vrot.slane %v1160, 2
      %v1162 = vmax.f32 %v1160, %v1161
      %v1163 = vrot.slane %v1162, 1
      %v1164 = vmax.f32 %v1162, %v1163
      %v1173 = vcombine.low %v1073, %v1086
      %v1174 = vcombine.low %v1099, %v1112
      %v1175 = vcombine.low %v1125, %v1138
      %v1176 = vcombine.low %v1151, %v1164
      %v1178 = vunpack.c.l.s4 1966171168
      %v1179 = vunpack.c.0.s8 %v1178
      %v1180 = vlaneseq
      %v1181 = vshrl.u32 %v1180, 7
      %v1182 = vsub.s32 %v1179, %v1181
      %v1183 = vrot.slane %v1173, %v1182
      %v1185 = vunpack.c.l.s4 1966171168
      %v1186 = vunpack.c.0.s8 %v1185
      %v1187 = vlaneseq
      %v1188 = vshrl.u32 %v1187, 7
      %v1189 = vsub.s32 %v1186, %v1188
      %v1190 = vrot.slane %v1174, %v1189
      %v1192 = vunpack.c.l.s4 1966171168
      %v1193 = vunpack.c.0.s8 %v1192
      %v1194 = vlaneseq
      %v1195 = vshrl.u32 %v1194, 7
      %v1196 = vsub.s32 %v1193, %v1195
      %v1197 = vrot.slane %v1175, %v1196
      %v1199 = vunpack.c.l.s4 1966171168
      %v1200 = vunpack.c.0.s8 %v1199
      %v1201 = vlaneseq
      %v1202 = vshrl.u32 %v1201, 7
      %v1203 = vsub.s32 %v1200, %v1202
      %v1204 = vrot.slane %v1176, %v1203
      %v1205 = vcombine.low %v1183, %v1190
      %v1206 = vcombine.low %v1197, %v1204
      %v1208 = vunpack.c.l.s4 1966171168
      %v1209 = vunpack.c.0.s8 %v1208
      %v1210 = vlaneseq
      %v1211 = vshrl.u32 %v1210, 7
      %v1212 = vsub.s32 %v1209, %v1211
      %v1213 = vrot.slane %v1205, %v1212
      %v1215 = vunpack.c.l.s4 1966171168
      %v1216 = vunpack.c.0.s8 %v1215
      %v1217 = vlaneseq
      %v1218 = vshrl.u32 %v1217, 7
      %v1219 = vsub.s32 %v1216, %v1218
      %v1220 = vrot.slane %v1206, %v1219
      %v1221 = vcombine.low %v1213, %v1220
      %v1223 = vmax.f32 %v1060, %v1221
      %1224 = vst [vmem:[%s199] sm:$0xff] %v1223
      %p1225 = scmp.lt.s32.totalorder %s18, 1
      %s1226 = scalar_select %p1225, %s18, 1
      %s1227 = smul.addr %s1226, 8
      %s1228 = scalar_lea.vmem %s3, %s1227
      // Predicated region
      $region37: #{dgcnn_partseg_forward.8} parent=31 // pred_check
        %p1229 = pneg %p114
      $region38: #{dgcnn_partseg_forward.8} parent=31 // pred_check_branch
        %1231 = sbr.rel (%p1229) target = $region40
      $region39: #{dgcnn_partseg_forward.8} parent=31 // pred_region
        _
      $region40: #{dgcnn_partseg_forward.8} parent=31 // pred_fallthru
        _
    $region32: #{dgcnn_partseg_forward.8} parent=5 // pred_fallthru
      _
    %p1232 = scmp.le.s32.totalorder 2, %s9
    // Predicated region
    $region41: #{dgcnn_partseg_forward.8} parent=5 // pred_check
      %p1233 = pneg %p1232
    $region42: #{dgcnn_partseg_forward.8} parent=5 // pred_check_branch
      %1235 = sbr.rel (%p1233) target = $region44
    $region43: #{dgcnn_partseg_forward.8} parent=5 // pred_region
      %s1236 = ssub.s32 %s9, 2
      // Predicated region
      $region45: #{dgcnn_partseg_forward.8} parent=43 // pred_check
        %p1237 = pneg %p120
      $region46: #{dgcnn_partseg_forward.8} parent=43 // pred_check_branch
        %1239 = sbr.rel (%p1237) target = $region48
      $region47: #{dgcnn_partseg_forward.8} parent=43 // pred_region
        %p1240 = scmp.lt.s32.totalorder %s20, 1
        %s1241 = scalar_select %p1240, %s20, 1
        %s1242 = smul.addr %s1241, 8
        %s1243 = scalar_lea.vmem %s3, %s1242
      $region48: #{dgcnn_partseg_forward.8} parent=43 // pred_fallthru
        _
    $region44: #{dgcnn_partseg_forward.8} parent=5 // pred_fallthru
      _
  $region6: #{dgcnn_partseg_forward.8} parent=0 // loop_footer
    %s13 = sadd.s32 1, %s9
  $region7: #{dgcnn_partseg_forward.8} parent=0 // loop_footer_branch
    %8 = sbr.rel target = $region3
  $region8: #{dgcnn_partseg_forward.8} parent=0 // loop_exit
    _

// kernel: dgcnn_partseg_forward.9
$region0: #{dgcnn_partseg_forward.9}
  #allocation0 [shape = 'u32[]', space=smem, size = 0x4, offset = 0x4, fixed_abs, tag = 'smem constant byte address 0x4 - core index']
  #allocation1 [shape = 'u32[144,128]{1,0:T(1,128)}', space=vmem, size = 0x12000, scoped, tag = 'internal scratch']
  %s0 = inlined_call_operand.vmem [shape: f32[2,64,192], index: 0, kind: input, shape index: {}]
  %s1 = inlined_call_operand.vmem [shape: f32[2,1,256], index: 1, kind: input, shape index: {}]
  %s2 = inlined_call_operand.vmem [shape: f32[192,256], index: 2, kind: input, shape index: {}]
  %s3 = inlined_call_operand.vmem [shape: f32[256,256], index: 3, kind: input, shape index: {}]
  %s4 = inlined_call_operand.vmem [shape: f32[1,256], index: 4, kind: input, shape index: {}]
  %s5 = inlined_call_operand.vmem [shape: f32[256,128], index: 5, kind: input, shape index: {}]
  %s6 = inlined_call_operand.vmem [shape: f32[1,128], index: 6, kind: input, shape index: {}]
  %s7 = inlined_call_operand.vmem [shape: f32[128,128], index: 7, kind: input, shape index: {}]
  %s8 = inlined_call_operand.vmem [shape: f32[2,64,128], index: 8, kind: output, shape index: {}]
  %s9 = sld [smem:[#allocation0]]
  $region65: #{dgcnn_partseg_forward.9} parent=0
    _
  %s11 = ssub.s32 1, %s9
  %s12 = scalar_select 0, %s11, %s9
  loop: start=0, step=1, limit=4
  $region2: #{dgcnn_partseg_forward.9} parent=0 // loop_pre_header
    _
  $region3: #{dgcnn_partseg_forward.9} parent=0 // loop_header
    %s14 = sphi 0, %s18
    %p15 = scmp.ge.s32.totalorder %s14, 4
    %s21 = sphi 0, %s33
    %s22 = sphi 0, %s29
    %s23 = sphi 0, %s21
    %s24 = sphi 0, %s22
    %s25 = sphi 0, %s23
    %s26 = sphi 0, %s24
    %s38 = sphi 0, %s40
    %s41 = sphi 0, %s38
    %s42 = sphi 0, %s41
    %s58 = sphi 0, %s42
    %s64 = sphi 0, %s66
    %s67 = sphi 0, %s64
    %s68 = sphi 0, %s67
    %s84 = sphi 0, %s68
    %s88 = sphi 0, %s88
    %s90 = sphi 0, %s88
    %s91 = sphi 0, %s90
    %s105 = sphi 0, %s91
    %s109 = sphi 0, %s109
    %s111 = sphi 0, %s109
    %s112 = sphi 0, %s111
    %s126 = sphi 0, %s112
    %s130 = sphi 0, %s130
    %s132 = sphi 0, %s130
    %s133 = sphi 0, %s132
    %s147 = sphi 0, %s133
    %s151 = sphi 0, %s151
    %s153 = sphi 0, %s151
    %s154 = sphi 0, %s153
    %s168 = sphi 0, %s154
    %s172 = sphi 0, %s172
    %s174 = sphi 0, %s172
    %s175 = sphi 0, %s174
    %s189 = sphi 0, %s175
    %s193 = sphi 0, %s193
    %s195 = sphi 0, %s193
    %s196 = sphi 0, %s195
    %s210 = sphi 0, %s196
    %s218 = sphi 0, %s220
    %s221 = sphi 0, %s218
    %s222 = sphi 0, %s221
    %s238 = sphi 0, %s222
  $region4: #{dgcnn_partseg_forward.9} parent=0 // loop_header_branch
    %17 = sbr.rel (%p15) target = $region8
  $region5: #{dgcnn_partseg_forward.9} parent=0 // loop_body
    %s19 = ssub.s32 %s14, 1
    %s20 = ssub.s32 %s14, 2
    %s27 = sadd.s32 1, %s22
    %p28 = scmp.ge.s32.totalorder %s27, 1
    %s29 = scalar_select %p28, 0, %s27
    %s30 = sadd.s32 1, %s21
    %s31 = scalar_select %p28, %s30, %s21
    %p32 = scmp.ge.s32.totalorder %s31, 2
    %s33 = scalar_select %p32, 0, %s31
    %s34 = ssub.s32 %s21, %s33
    %s35 = ssub.s32 %s22, %s29
    %s36 = sor.u32 %s34, %s35
    %p37 = scmp.eq.s32.totalorder %s36, 0
    %s39 = sadd.s32 %s38, 1
    %s40 = scalar_select %p37, %s38, %s39
    %p43 = pneg %p37
    %p44 = scmp.eq.s32.totalorder %s14, 1
    %p45 = por %p43, %p44
    %p46 = scmp.ne.s32.totalorder %s38, %s41
    %p47 = scmp.eq.s32.totalorder %s14, 0
    %p48 = por %p46, %p47
    %p49 = scmp.ne.s32.totalorder %s38, %s41
    %p50 = scmp.eq.s32.totalorder %s19, 1
    %p51 = por %p49, %p50
    %p52 = scmp.ne.s32.totalorder %s41, %s42
    %p53 = scmp.eq.s32.totalorder %s19, 0
    %p54 = por %p52, %p53
    %p55 = scmp.ne.s32.totalorder %s41, %s42
    %p56 = scmp.eq.s32.totalorder %s20, 1
    %p57 = por %p55, %p56
    %p59 = scmp.ne.s32.totalorder %s42, %s58
    %p60 = scmp.eq.s32.totalorder %s20, 0
    %p61 = por %p59, %p60
    %s62 = ssub.s32 %s21, %s33
    %p63 = scmp.eq.s32.totalorder %s62, 0
    %s65 = sadd.s32 %s64, 1
    %s66 = scalar_select %p63, %s64, %s65
    %p69 = pneg %p63
    %p70 = scmp.eq.s32.totalorder %s14, 1
    %p71 = por %p69, %p70
    %p72 = scmp.ne.s32.totalorder %s64, %s67
    %p73 = scmp.eq.s32.totalorder %s14, 0
    %p74 = por %p72, %p73
    %p75 = scmp.ne.s32.totalorder %s64, %s67
    %p76 = scmp.eq.s32.totalorder %s19, 1
    %p77 = por %p75, %p76
    %p78 = scmp.ne.s32.totalorder %s67, %s68
    %p79 = scmp.eq.s32.totalorder %s19, 0
    %p80 = por %p78, %p79
    %p81 = scmp.ne.s32.totalorder %s67, %s68
    %p82 = scmp.eq.s32.totalorder %s20, 1
    %p83 = por %p81, %p82
    %p85 = scmp.ne.s32.totalorder %s68, %s84
    %p86 = scmp.eq.s32.totalorder %s20, 0
    %p87 = por %p85, %p86
    %s89 = sadd.s32 %s88, 1
    %p92 = scmp.eq.s32.totalorder %s14, 1
    %p93 = scmp.ne.s32.totalorder %s88, %s90
    %p94 = scmp.eq.s32.totalorder %s14, 0
    %p95 = por %p93, %p94
    %p96 = scmp.ne.s32.totalorder %s88, %s90
    %p97 = scmp.eq.s32.totalorder %s19, 1
    %p98 = por %p96, %p97
    %p99 = scmp.ne.s32.totalorder %s90, %s91
    %p100 = scmp.eq.s32.totalorder %s19, 0
    %p101 = por %p99, %p100
    %p102 = scmp.ne.s32.totalorder %s90, %s91
    %p103 = scmp.eq.s32.totalorder %s20, 1
    %p104 = por %p102, %p103
    %p106 = scmp.ne.s32.totalorder %s91, %s105
    %p107 = scmp.eq.s32.totalorder %s20, 0
    %p108 = por %p106, %p107
    %s110 = sadd.s32 %s109, 1
    %p113 = scmp.eq.s32.totalorder %s14, 1
    %p114 = scmp.ne.s32.totalorder %s109, %s111
    %p115 = scmp.eq.s32.totalorder %s14, 0
    %p116 = por %p114, %p115
    %p117 = scmp.ne.s32.totalorder %s109, %s111
    %p118 = scmp.eq.s32.totalorder %s19, 1
    %p119 = por %p117, %p118
    %p120 = scmp.ne.s32.totalorder %s111, %s112
    %p121 = scmp.eq.s32.totalorder %s19, 0
    %p122 = por %p120, %p121
    %p123 = scmp.ne.s32.totalorder %s111, %s112
    %p124 = scmp.eq.s32.totalorder %s20, 1
    %p125 = por %p123, %p124
    %p127 = scmp.ne.s32.totalorder %s112, %s126
    %p128 = scmp.eq.s32.totalorder %s20, 0
    %p129 = por %p127, %p128
    %s131 = sadd.s32 %s130, 1
    %p134 = scmp.eq.s32.totalorder %s14, 1
    %p135 = scmp.ne.s32.totalorder %s130, %s132
    %p136 = scmp.eq.s32.totalorder %s14, 0
    %p137 = por %p135, %p136
    %p138 = scmp.ne.s32.totalorder %s130, %s132
    %p139 = scmp.eq.s32.totalorder %s19, 1
    %p140 = por %p138, %p139
    %p141 = scmp.ne.s32.totalorder %s132, %s133
    %p142 = scmp.eq.s32.totalorder %s19, 0
    %p143 = por %p141, %p142
    %p144 = scmp.ne.s32.totalorder %s132, %s133
    %p145 = scmp.eq.s32.totalorder %s20, 1
    %p146 = por %p144, %p145
    %p148 = scmp.ne.s32.totalorder %s133, %s147
    %p149 = scmp.eq.s32.totalorder %s20, 0
    %p150 = por %p148, %p149
    %s152 = sadd.s32 %s151, 1
    %p155 = scmp.eq.s32.totalorder %s14, 1
    %p156 = scmp.ne.s32.totalorder %s151, %s153
    %p157 = scmp.eq.s32.totalorder %s14, 0
    %p158 = por %p156, %p157
    %p159 = scmp.ne.s32.totalorder %s151, %s153
    %p160 = scmp.eq.s32.totalorder %s19, 1
    %p161 = por %p159, %p160
    %p162 = scmp.ne.s32.totalorder %s153, %s154
    %p163 = scmp.eq.s32.totalorder %s19, 0
    %p164 = por %p162, %p163
    %p165 = scmp.ne.s32.totalorder %s153, %s154
    %p166 = scmp.eq.s32.totalorder %s20, 1
    %p167 = por %p165, %p166
    %p169 = scmp.ne.s32.totalorder %s154, %s168
    %p170 = scmp.eq.s32.totalorder %s20, 0
    %p171 = por %p169, %p170
    %s173 = sadd.s32 %s172, 1
    %p176 = scmp.eq.s32.totalorder %s14, 1
    %p177 = scmp.ne.s32.totalorder %s172, %s174
    %p178 = scmp.eq.s32.totalorder %s14, 0
    %p179 = por %p177, %p178
    %p180 = scmp.ne.s32.totalorder %s172, %s174
    %p181 = scmp.eq.s32.totalorder %s19, 1
    %p182 = por %p180, %p181
    %p183 = scmp.ne.s32.totalorder %s174, %s175
    %p184 = scmp.eq.s32.totalorder %s19, 0
    %p185 = por %p183, %p184
    %p186 = scmp.ne.s32.totalorder %s174, %s175
    %p187 = scmp.eq.s32.totalorder %s20, 1
    %p188 = por %p186, %p187
    %p190 = scmp.ne.s32.totalorder %s175, %s189
    %p191 = scmp.eq.s32.totalorder %s20, 0
    %p192 = por %p190, %p191
    %s194 = sadd.s32 %s193, 1
    %p197 = scmp.eq.s32.totalorder %s14, 1
    %p198 = scmp.ne.s32.totalorder %s193, %s195
    %p199 = scmp.eq.s32.totalorder %s14, 0
    %p200 = por %p198, %p199
    %p201 = scmp.ne.s32.totalorder %s193, %s195
    %p202 = scmp.eq.s32.totalorder %s19, 1
    %p203 = por %p201, %p202
    %p204 = scmp.ne.s32.totalorder %s195, %s196
    %p205 = scmp.eq.s32.totalorder %s19, 0
    %p206 = por %p204, %p205
    %p207 = scmp.ne.s32.totalorder %s195, %s196
    %p208 = scmp.eq.s32.totalorder %s20, 1
    %p209 = por %p207, %p208
    %p211 = scmp.ne.s32.totalorder %s196, %s210
    %p212 = scmp.eq.s32.totalorder %s20, 0
    %p213 = por %p211, %p212
    %s214 = ssub.s32 %s21, %s33
    %s215 = ssub.s32 %s22, %s29
    %s216 = sor.u32 %s214, %s215
    %p217 = scmp.eq.s32.totalorder %s216, 0
    %s219 = sadd.s32 %s218, 1
    %s220 = scalar_select %p217, %s218, %s219
    %p223 = pneg %p217
    %p224 = scmp.eq.s32.totalorder %s14, 1
    %p225 = por %p223, %p224
    %p226 = scmp.ne.s32.totalorder %s218, %s221
    %p227 = scmp.eq.s32.totalorder %s14, 0
    %p228 = por %p226, %p227
    %p229 = scmp.ne.s32.totalorder %s218, %s221
    %p230 = scmp.eq.s32.totalorder %s19, 1
    %p231 = por %p229, %p230
    %p232 = scmp.ne.s32.totalorder %s221, %s222
    %p233 = scmp.eq.s32.totalorder %s19, 0
    %p234 = por %p232, %p233
    %p235 = scmp.ne.s32.totalorder %s221, %s222
    %p236 = scmp.eq.s32.totalorder %s20, 1
    %p237 = por %p235, %p236
    %p239 = scmp.ne.s32.totalorder %s222, %s238
    %p240 = scmp.eq.s32.totalorder %s20, 0
    %p241 = por %p239, %p240
    %p242 = scmp.le.s32.totalorder 1, %s14
    %p243 = scmp.lt.s32.totalorder %s14, 3
    %p244 = pnand %p242, %p243
    %p245 = pneg %p244
    // Predicated region
    $region9: #{dgcnn_partseg_forward.9} parent=5 // pred_check
      _
    $region10: #{dgcnn_partseg_forward.9} parent=5 // pred_check_branch
      %247 = sbr.rel (%p244) target = $region12
    $region11: #{dgcnn_partseg_forward.9} parent=5 // pred_region
      %s248 = ssub.s32 %s14, 1
      // Predicated region
      $region13: #{dgcnn_partseg_forward.9} parent=11 // pred_check
        %p249 = pneg %p101
      $region14: #{dgcnn_partseg_forward.9} parent=11 // pred_check_branch
        %251 = sbr.rel (%p249) target = $region16
      $region15: #{dgcnn_partseg_forward.9} parent=11 // pred_region
        _
      $region16: #{dgcnn_partseg_forward.9} parent=11 // pred_fallthru
        _
      // Predicated region
      $region17: #{dgcnn_partseg_forward.9} parent=11 // pred_check
        %p252 = pneg %p122
      $region18: #{dgcnn_partseg_forward.9} parent=11 // pred_check_branch
        %254 = sbr.rel (%p252) target = $region20
      $region19: #{dgcnn_partseg_forward.9} parent=11 // pred_region
        _
      $region20: #{dgcnn_partseg_forward.9} parent=11 // pred_fallthru
        _
      // Predicated region
      $region21: #{dgcnn_partseg_forward.9} parent=11 // pred_check
        %p255 = pneg %p143
      $region22: #{dgcnn_partseg_forward.9} parent=11 // pred_check_branch
        %257 = sbr.rel (%p255) target = $region24
      $region23: #{dgcnn_partseg_forward.9} parent=11 // pred_region
        _
      $region24: #{dgcnn_partseg_forward.9} parent=11 // pred_fallthru
        _
      // Predicated region
      $region25: #{dgcnn_partseg_forward.9} parent=11 // pred_check
        %p258 = pneg %p164
      $region26: #{dgcnn_partseg_forward.9} parent=11 // pred_check_branch
        %260 = sbr.rel (%p258) target = $region28
      $region27: #{dgcnn_partseg_forward.9} parent=11 // pred_region
        _
      $region28: #{dgcnn_partseg_forward.9} parent=11 // pred_fallthru
        _
      // Predicated region
      $region29: #{dgcnn_partseg_forward.9} parent=11 // pred_check
        %p261 = pneg %p185
      $region30: #{dgcnn_partseg_forward.9} parent=11 // pred_check_branch
        %263 = sbr.rel (%p261) target = $region32
      $region31: #{dgcnn_partseg_forward.9} parent=11 // pred_region
        _
      $region32: #{dgcnn_partseg_forward.9} parent=11 // pred_fallthru
        _
      // Predicated region
      $region33: #{dgcnn_partseg_forward.9} parent=11 // pred_check
        %p264 = pneg %p206
      $region34: #{dgcnn_partseg_forward.9} parent=11 // pred_check_branch
        %266 = sbr.rel (%p264) target = $region36
      $region35: #{dgcnn_partseg_forward.9} parent=11 // pred_region
        _
      $region36: #{dgcnn_partseg_forward.9} parent=11 // pred_fallthru
        _
    $region12: #{dgcnn_partseg_forward.9} parent=5 // pred_fallthru
      _
    %p267 = scmp.lt.s32.totalorder %s14, 2
    // Predicated region
    $region37: #{dgcnn_partseg_forward.9} parent=5 // pred_check
      %p268 = pneg %p267
    $region38: #{dgcnn_partseg_forward.9} parent=5 // pred_check_branch
      %270 = sbr.rel (%p268) target = $region40
    $region39: #{dgcnn_partseg_forward.9} parent=5 // pred_region
      // Predicated region
      $region41: #{dgcnn_partseg_forward.9} parent=39 // pred_check
        %p271 = pneg %p48
      $region42: #{dgcnn_partseg_forward.9} parent=39 // pred_check_branch
        %273 = sbr.rel (%p271) target = $region44
      $region43: #{dgcnn_partseg_forward.9} parent=39 // pred_region
        %s274 = smul.u32 8, %s22
        %p275 = scmp.lt.s32.totalorder %s21, 1
        %s276 = scalar_select %p275, %s21, 1
        %p277 = scmp.lt.s32.totalorder %s274, 7
        %s278 = scalar_select %p277, %s274, 7
        %s279 = smul.addr %s278, 2
        %s280 = smul.addr %s276, 16
        %s281 = sadd.s32 %s279, %s280
        %s282 = smul.addr %s281, 8
        %s283 = scalar_lea.vmem %s0, %s282
        %s284 = smul.u32 8, %s22
      $region44: #{dgcnn_partseg_forward.9} parent=39 // pred_fallthru
        _
      // Predicated region
      $region45: #{dgcnn_partseg_forward.9} parent=39 // pred_check
        %p285 = pneg %p74
      $region46: #{dgcnn_partseg_forward.9} parent=39 // pred_check_branch
        %287 = sbr.rel (%p285) target = $region48
      $region47: #{dgcnn_partseg_forward.9} parent=39 // pred_region
        %p288 = scmp.lt.s32.totalorder %s21, 1
        %s289 = scalar_select %p288, %s21, 1
        %s290 = smul.addr %s289, 2
        %s291 = scalar_lea.vmem %s1, %s290
      $region48: #{dgcnn_partseg_forward.9} parent=39 // pred_fallthru
        _
    $region40: #{dgcnn_partseg_forward.9} parent=5 // pred_fallthru
      _
    %p292 = scmp.le.s32.totalorder 1, %s14
    %p293 = scmp.lt.s32.totalorder %s14, 3
    %p294 = pnand %p292, %p293
    %p295 = pneg %p294
    // Predicated region
    $region49: #{dgcnn_partseg_forward.9} parent=5 // pred_check
      _
    $region50: #{dgcnn_partseg_forward.9} parent=5 // pred_check_branch
      %297 = sbr.rel (%p294) target = $region52
    $region51: #{dgcnn_partseg_forward.9} parent=5 // pred_region
      %s298 = ssub.s32 %s14, 1
      %s299 = smul.u32 8, %s24
      %p300 = scmp.lt.s32.totalorder %s23, 1
      %s301 = scalar_select %p300, %s23, 1
      %p302 = scmp.lt.s32.totalorder %s299, 7
      %s303 = scalar_select %p302, %s299, 7
      %s304 = smul.addr %s303, 2
      %s305 = smul.addr %s301, 16
      %s306 = sadd.s32 %s304, %s305
      %s307 = smul.addr %s306, 8
      %s308 = scalar_lea.vmem %s0, %s307
      %p309 = pneg %p54
      %p310 = pneg %p51
      %p311 = scmp.lt.s32.totalorder %s23, 1
      %s312 = scalar_select %p311, %s23, 1
      %s313 = smul.addr %s312, 2
      %s314 = scalar_lea.vmem %s1, %s313
      %p315 = pneg %p80
      %p316 = pneg %p77
      %p317 = pneg %p101
      %p318 = pneg %p98
      %p319 = pneg %p122
      %p320 = pneg %p119
      %p321 = pneg %p143
      %p322 = pneg %p140
      %p323 = pneg %p164
      %p324 = pneg %p161
      %p325 = pneg %p185
      %p326 = pneg %p182
      %p327 = pneg %p206
      %p328 = pneg %p203
      %p329 = pneg %p234
      %p330 = pneg %p231
      %s331 = smul.u32 8, %s24
      %p332 = scmp.lt.s32.totalorder %s23, 1
      %s333 = scalar_select %p332, %s23, 1
      %p334 = scmp.lt.s32.totalorder %s331, 7
      %s335 = scalar_select %p334, %s331, 7
      %s336 = smul.addr %s333, 8
      %s337 = sadd.s32 %s335, %s336
      %s338 = smul.addr %s337, 8
      %s339 = scalar_lea.vmem %s8, %s338
      %s340 = smul.u32 8, %s24
      %p341 = scmp.lt.s32.totalorder %s23, 1
      %s342 = scalar_select %p341, %s23, 1
      %p343 = scmp.lt.s32.totalorder %s340, 7
      %s344 = scalar_select %p343, %s340, 7
      %s345 = smul.addr %s344, 2
      %s346 = smul.addr %s342, 16
      %s347 = sadd.s32 %s345, %s346
      %s348 = smul.addr %s347, 8
      %s349 = scalar_lea.vmem %s0, %s348
      %s350 = smul.u32 8, %s24
      %p351 = scmp.lt.s32.totalorder %s23, 1
      %s352 = scalar_select %p351, %s23, 1
      %s353 = smul.addr %s352, 2
      %s354 = scalar_lea.vmem %s1, %s353
      %s355 = smul.u32 8, %s24
      %p356 = scmp.lt.s32.totalorder %s23, 1
      %s357 = scalar_select %p356, %s23, 1
      %p358 = scmp.lt.s32.totalorder %s355, 7
      %s359 = scalar_select %p358, %s355, 7
      %s360 = smul.addr %s357, 8
      %s361 = sadd.s32 %s359, %s360
      %s362 = smul.addr %s361, 8
      %s363 = scalar_lea.vmem %s8, %s362
      %s364 = smul.u32 8, %s24
      %v365 = vld [vmem:[%s349] sm:$0xff]
      %v366 = vld [vmem:[%s349 + $0x8] sm:$0xff]
      %v367 = vld [vmem:[%s349 + $0x10] sm:$0xff]
      %v368 = vld [vmem:[%s349 + $0x18] sm:$0xff]
      %v369 = vld [vmem:[%s349 + $0x20] sm:$0xff]
      %v370 = vld [vmem:[%s349 + $0x28] sm:$0xff]
      %v371 = vld [vmem:[%s349 + $0x30] sm:$0xff]
      %v372 = vld [vmem:[%s349 + $0x38] sm:$0xff]
      %v373 = vld [vmem:[%s349 + $0x40] sm:$0xff]
      %v374 = vld [vmem:[%s349 + $0x48] sm:$0xff]
      %v375 = vld [vmem:[%s349 + $0x50] sm:$0xff]
      %v376 = vld [vmem:[%s349 + $0x58] sm:$0xff]
      %v377 = vld [vmem:[%s349 + $0x60] sm:$0xff]
      %v378 = vld [vmem:[%s349 + $0x68] sm:$0xff]
      %v379 = vld [vmem:[%s349 + $0x70] sm:$0xff]
      %v380 = vld [vmem:[%s349 + $0x78] sm:$0xff]
      %v381 = vld [vmem:[%s2] sm:$0xff]
      %v382 = vld [vmem:[%s2 + $0x8] sm:$0xff]
      %v383 = vld [vmem:[%s2 + $0x10] sm:$0xff]
      %v384 = vld [vmem:[%s2 + $0x18] sm:$0xff]
      %v385 = vld [vmem:[%s2 + $0x20] sm:$0xff]
      %v386 = vld [vmem:[%s2 + $0x28] sm:$0xff]
      %v387 = vld [vmem:[%s2 + $0x30] sm:$0xff]
      %v388 = vld [vmem:[%s2 + $0x38] sm:$0xff]
      %v389 = vld [vmem:[%s2 + $0x40] sm:$0xff]
      %v390 = vld [vmem:[%s2 + $0x48] sm:$0xff]
      %v391 = vld [vmem:[%s2 + $0x50] sm:$0xff]
      %v392 = vld [vmem:[%s2 + $0x58] sm:$0xff]
      %v393 = vld [vmem:[%s2 + $0x60] sm:$0xff]
      %v394 = vld [vmem:[%s2 + $0x68] sm:$0xff]
      %v395 = vld [vmem:[%s2 + $0x70] sm:$0xff]
      %v396 = vld [vmem:[%s2 + $0x78] sm:$0xff]
      %v397 = vld [vmem:[%s2 + $0x80] sm:$0xff]
      %v398 = vld [vmem:[%s2 + $0x88] sm:$0xff]
      %v399 = vld [vmem:[%s2 + $0x90] sm:$0xff]
      %v400 = vld [vmem:[%s2 + $0x98] sm:$0xff]
      %v401 = vld [vmem:[%s2 + $0xa0] sm:$0xff]
      %v402 = vld [vmem:[%s2 + $0xa8] sm:$0xff]
      %v403 = vld [vmem:[%s2 + $0xb0] sm:$0xff]
      %v404 = vld [vmem:[%s2 + $0xb8] sm:$0xff]
      %v405 = vld [vmem:[%s2 + $0xc0] sm:$0xff]
      %v406 = vld [vmem:[%s2 + $0xc8] sm:$0xff]
      %v407 = vld [vmem:[%s2 + $0xd0] sm:$0xff]
      %v408 = vld [vmem:[%s2 + $0xd8] sm:$0xff]
      %v409 = vld [vmem:[%s2 + $0xe0] sm:$0xff]
      %v410 = vld [vmem:[%s2 + $0xe8] sm:$0xff]
      %v411 = vld [vmem:[%s2 + $0xf0] sm:$0xff]
      %v412 = vld [vmem:[%s2 + $0xf8] sm:$0xff]
      %v413 = vld [vmem:[%s2 + $0x100] sm:$0xff]
      %v414 = vld [vmem:[%s2 + $0x108] sm:$0xff]
      %v415 = vld [vmem:[%s2 + $0x110] sm:$0xff]
      %v416 = vld [vmem:[%s2 + $0x118] sm:$0xff]
      %v417 = vld [vmem:[%s2 + $0x120] sm:$0xff]
      %v418 = vld [vmem:[%s2 + $0x128] sm:$0xff]
      %v419 = vld [vmem:[%s2 + $0x130] sm:$0xff]
      %v420 = vld [vmem:[%s2 + $0x138] sm:$0xff]
      %v421 = vld [vmem:[%s2 + $0x140] sm:$0xff]
      %v422 = vld [vmem:[%s2 + $0x148] sm:$0xff]
      %v423 = vld [vmem:[%s2 + $0x150] sm:$0xff]
      %v424 = vld [vmem:[%s2 + $0x158] sm:$0xff]
      %v425 = vld [vmem:[%s2 + $0x160] sm:$0xff]
      %v426 = vld [vmem:[%s2 + $0x168] sm:$0xff]
      %v427 = vld [vmem:[%s2 + $0x170] sm:$0xff]
      %v428 = vld [vmem:[%s2 + $0x178] sm:$0xff]
      %v429 = vld [vmem:[%s354] sm:$0x3]
      %v431 = vlaneseq
      %v432 = vshrl.u32 %v431, 7
      %v433 = vsub.s32 0, %v432
      %v434 = vrot.slane %v429, %v433
      %v435 = vlaneseq
      %v436 = vshrl.u32 %v435, 7
      %v437 = vsub.s32 1, %v436
      %v438 = vrot.slane %v429, %v437
      %vm441 = vcmask 523264
      %v443 = vsel %vm441, %v366, 0
      %v446 = vsel %vm441, %v368, 0
      %v449 = vsel %vm441, %v370, 0
      %v452 = vsel %vm441, %v372, 0
      %v455 = vsel %vm441, %v374, 0
      %v458 = vsel %vm441, %v376, 0
      %v461 = vsel %vm441, %v378, 0
      %v464 = vsel %vm441, %v380, 0
      %466 = vmatprep.subr.mxu0 %v412
      %467 = vmatpush1.msra.mxu0 %v411
      %468 = vmatprep.subr.mxu0 %v410
      %469 = vmatpush1.msra.mxu0 %v409
      %470 = vmatprep.subr.mxu0 %v408
      %471 = vmatpush1.msra.mxu0 %v407
      %472 = vmatprep.subr.mxu0 %v406
      %473 = vmatpush1.msra.mxu0 %v405
      %474 = vmatprep.subr.mxu0 %v404
      %475 = vmatpush1.msra.mxu0 %v403
      %476 = vmatprep.subr.mxu0 %v402
      %477 = vmatpush1.msra.mxu0 %v401
      %478 = vmatprep.subr.mxu0 %v400
      %479 = vmatpush1.msra.mxu0 %v399
      %480 = vmatprep.subr.mxu0 %v398
      %481 = vmatpush1.msra.mxu0 %v397
      %482 = vmatprep.subr.mxu0 %v396
      %483 = vmatpush1.msra.mxu0 %v395
      %484 = vmatprep.subr.mxu0 %v394
      %485 = vmatpush1.msra.mxu0 %v393
      %486 = vmatprep.subr.mxu0 %v392
      %487 = vmatpush1.msra.mxu0 %v391
      %488 = vmatprep.subr.mxu0 %v390
      %489 = vmatpush1.msra.mxu0 %v389
      %490 = vmatprep.subr.mxu0 %v388
      %491 = vmatpush1.msra.mxu0 %v387
      %492 = vmatprep.subr.mxu0 %v386
      %493 = vmatpush1.msra.mxu0 %v385
      %494 = vmatprep.subr.mxu0 %v384
      %495 = vmatpush1.msra.mxu0 %v383
      %496 = vmatprep.subr.mxu0 %v382
      %497 = vmatpush1.msra.mxu0 %v381
      %498 = vmatprep.subr.mxu0 0.0
      %499 = vmatpush2.msra.mxu0 0.0
      %500 = vmatprep.subr.mxu0 0.0
      %501 = vmatpush2.msra.mxu0 0.0
      %502 = vmatprep.subr.mxu0 0.0
      %503 = vmatpush2.msra.mxu0 0.0
      %504 = vmatprep.subr.mxu0 0.0
      %505 = vmatpush2.msra.mxu0 0.0
      %506 = vmatprep.subr.mxu0 0.0
      %507 = vmatpush2.msra.mxu0 0.0
      %508 = vmatprep.subr.mxu0 0.0
      %509 = vmatpush2.msra.mxu0 0.0
      %510 = vmatprep.subr.mxu0 0.0
      %511 = vmatpush2.msra.mxu0 0.0
      %512 = vmatprep.subr.mxu0 0.0
      %513 = vmatpush2.msra.mxu0 0.0
      %514 = vmatprep.subr.mxu0 %v428
      %515 = vmatpush2.msra.mxu0 %v427
      %516 = vmatprep.subr.mxu0 %v426
      %517 = vmatpush2.msra.mxu0 %v425
      %518 = vmatprep.subr.mxu0 %v424
      %519 = vmatpush2.msra.mxu0 %v423
      %520 = vmatprep.subr.mxu0 %v422
      %521 = vmatpush2.msra.mxu0 %v421
      %522 = vmatprep.subr.mxu0 %v420
      %523 = vmatpush2.msra.mxu0 %v419
      %524 = vmatprep.subr.mxu0 %v418
      %525 = vmatpush2.msra.mxu0 %v417
      %526 = vmatprep.subr.mxu0 %v416
      %527 = vmatpush2.msra.mxu0 %v415
      %528 = vmatprep.subr.mxu0 %v414
      %529 = vmatpush2.msra.mxu0 %v413
      %530 = vmatprep.mubr.f32.mxu0 %v443
      %531 = vmatmul.mubr.f32.gmra.mxu0 %v365
      %v532 = vpop.f32.mrf.mxu0
      %v533 = vadd.f32 %v434, %v532
      %v534 = vpop.f32.mrf.mxu0
      %v535 = vadd.f32 %v438, %v534
      %536 = vmatprep.mubr.f32.mxu0 %v446
      %537 = vmatmul.mubr.f32.gmra.mxu0 %v367
      %v538 = vpop.f32.mrf.mxu0
      %v539 = vadd.f32 %v434, %v538
      %v540 = vpop.f32.mrf.mxu0
      %v541 = vadd.f32 %v438, %v540
      %542 = vmatprep.mubr.f32.mxu0 %v449
      %543 = vmatmul.mubr.f32.gmra.mxu0 %v369
      %v544 = vpop.f32.mrf.mxu0
      %v545 = vadd.f32 %v434, %v544
      %v546 = vpop.f32.mrf.mxu0
      %v547 = vadd.f32 %v438, %v546
      %548 = vmatprep.mubr.f32.mxu0 %v452
      %549 = vmatmul.mubr.f32.gmra.mxu0 %v371
      %v550 = vpop.f32.mrf.mxu0
      %v551 = vadd.f32 %v434, %v550
      %v552 = vpop.f32.mrf.mxu0
      %v553 = vadd.f32 %v438, %v552
      %554 = vmatprep.mubr.f32.mxu0 %v455
      %555 = vmatmul.mubr.f32.gmra.mxu0 %v373
      %v556 = vpop.f32.mrf.mxu0
      %v557 = vadd.f32 %v434, %v556
      %v558 = vpop.f32.mrf.mxu0
      %v559 = vadd.f32 %v438, %v558
      %560 = vmatprep.mubr.f32.mxu0 %v458
      %561 = vmatmul.mubr.f32.gmra.mxu0 %v375
      %v562 = vpop.f32.mrf.mxu0
      %v563 = vadd.f32 %v434, %v562
      %v564 = vpop.f32.mrf.mxu0
      %v565 = vadd.f32 %v438, %v564
      %566 = vmatprep.mubr.f32.mxu0 %v461
      %567 = vmatmul.mubr.f32.gmra.mxu0 %v377
      %v568 = vpop.f32.mrf.mxu0
      %v569 = vadd.f32 %v434, %v568
      %v570 = vpop.f32.mrf.mxu0
      %v571 = vadd.f32 %v438, %v570
      %572 = vmatprep.mubr.f32.mxu0 %v464
      %573 = vmatmul.mubr.f32.gmra.mxu0 %v379
      %v574 = vpop.f32.mrf.mxu0
      %v575 = vadd.f32 %v434, %v574
      %v576 = vpop.f32.mrf.mxu0
      %v577 = vadd.f32 %v438, %v576
      %578 = vdwg.mxu0
      %v579 = vmul.f32 %v533, 0.2
      %v580 = vmul.f32 %v535, 0.2
      %v581 = vmul.f32 %v539, 0.2
      %v582 = vmul.f32 %v541, 0.2
      %v583 = vmul.f32 %v545, 0.2
      %v584 = vmul.f32 %v547, 0.2
      %v585 = vmul.f32 %v551, 0.2
      %v586 = vmul.f32 %v553, 0.2
      %v587 = vmul.f32 %v557, 0.2
      %v588 = vmul.f32 %v559, 0.2
      %v589 = vmul.f32 %v563, 0.2
      %v590 = vmul.f32 %v565, 0.2
      %v591 = vmul.f32 %v569, 0.2
      %v592 = vmul.f32 %v571, 0.2
      %v593 = vmul.f32 %v575, 0.2
      %v594 = vmul.f32 %v577, 0.2
      %v595 = vmax.f32 %v533, %v579
      %v596 = vmax.f32 %v535, %v580
      %v597 = vmax.f32 %v539, %v581
      %v598 = vmax.f32 %v541, %v582
      %v599 = vmax.f32 %v545, %v583
      %v600 = vmax.f32 %v547, %v584
      %v601 = vmax.f32 %v551, %v585
      %v602 = vmax.f32 %v553, %v586
      %v603 = vmax.f32 %v557, %v587
      %v604 = vmax.f32 %v559, %v588
      %v605 = vmax.f32 %v563, %v589
      %v606 = vmax.f32 %v565, %v590
      %v607 = vmax.f32 %v569, %v591
      %v608 = vmax.f32 %v571, %v592
      %v609 = vmax.f32 %v575, %v593
      %v610 = vmax.f32 %v577, %v594
      %v611 = vld [vmem:[%s3] sm:$0xff]
      %v612 = vld [vmem:[%s3 + $0x8] sm:$0xff]
      %v613 = vld [vmem:[%s3 + $0x10] sm:$0xff]
      %v614 = vld [vmem:[%s3 + $0x18] sm:$0xff]
      %v615 = vld [vmem:[%s3 + $0x20] sm:$0xff]
      %v616 = vld [vmem:[%s3 + $0x28] sm:$0xff]
      %v617 = vld [vmem:[%s3 + $0x30] sm:$0xff]
      %v618 = vld [vmem:[%s3 + $0x38] sm:$0xff]
      %v619 = vld [vmem:[%s3 + $0x40] sm:$0xff]
      %v620 = vld [vmem:[%s3 + $0x48] sm:$0xff]
      %v621 = vld [vmem:[%s3 + $0x50] sm:$0xff]
      %v622 = vld [vmem:[%s3 + $0x58] sm:$0xff]
      %v623 = vld [vmem:[%s3 + $0x60] sm:$0xff]
      %v624 = vld [vmem:[%s3 + $0x68] sm:$0xff]
      %v625 = vld [vmem:[%s3 + $0x70] sm:$0xff]
      %v626 = vld [vmem:[%s3 + $0x78] sm:$0xff]
      %v627 = vld [vmem:[%s3 + $0x80] sm:$0xff]
      %v628 = vld [vmem:[%s3 + $0x88] sm:$0xff]
      %v629 = vld [vmem:[%s3 + $0x90] sm:$0xff]
      %v630 = vld [vmem:[%s3 + $0x98] sm:$0xff]
      %v631 = vld [vmem:[%s3 + $0xa0] sm:$0xff]
      %v632 = vld [vmem:[%s3 + $0xa8] sm:$0xff]
      %v633 = vld [vmem:[%s3 + $0xb0] sm:$0xff]
      %v634 = vld [vmem:[%s3 + $0xb8] sm:$0xff]
      %v635 = vld [vmem:[%s3 + $0xc0] sm:$0xff]
      %v636 = vld [vmem:[%s3 + $0xc8] sm:$0xff]
      %v637 = vld [vmem:[%s3 + $0xd0] sm:$0xff]
      %v638 = vld [vmem:[%s3 + $0xd8] sm:$0xff]
      %v639 = vld [vmem:[%s3 + $0xe0] sm:$0xff]
      %v640 = vld [vmem:[%s3 + $0xe8] sm:$0xff]
      %v641 = vld [vmem:[%s3 + $0xf0] sm:$0xff]
      %v642 = vld [vmem:[%s3 + $0xf8] sm:$0xff]
      %v643 = vld [vmem:[%s3 + $0x100] sm:$0xff]
      %v644 = vld [vmem:[%s3 + $0x108] sm:$0xff]
      %v645 = vld [vmem:[%s3 + $0x110] sm:$0xff]
      %v646 = vld [vmem:[%s3 + $0x118] sm:$0xff]
      %v647 = vld [vmem:[%s3 + $0x120] sm:$0xff]
      %v648 = vld [vmem:[%s3 + $0x128] sm:$0xff]
      %v649 = vld [vmem:[%s3 + $0x130] sm:$0xff]
      %v650 = vld [vmem:[%s3 + $0x138] sm:$0xff]
      %v651 = vld [vmem:[%s3 + $0x140] sm:$0xff]
      %v652 = vld [vmem:[%s3 + $0x148] sm:$0xff]
      %v653 = vld [vmem:[%s3 + $0x150] sm:$0xff]
      %v654 = vld [vmem:[%s3 + $0x158] sm:$0xff]
      %v655 = vld [vmem:[%s3 + $0x160] sm:$0xff]
      %v656 = vld [vmem:[%s3 + $0x168] sm:$0xff]
      %v657 = vld [vmem:[%s3 + $0x170] sm:$0xff]
      %v658 = vld [vmem:[%s3 + $0x178] sm:$0xff]
      %v659 = vld [vmem:[%s3 + $0x180] sm:$0xff]
      %v660 = vld [vmem:[%s3 + $0x188] sm:$0xff]
      %v661 = vld [vmem:[%s3 + $0x190] sm:$0xff]
      %v662 = vld [vmem:[%s3 + $0x198] sm:$0xff]
      %v663 = vld [vmem:[%s3 + $0x1a0] sm:$0xff]
      %v664 = vld [vmem:[%s3 + $0x1a8] sm:$0xff]
      %v665 = vld [vmem:[%s3 + $0x1b0] sm:$0xff]
      %v666 = vld [vmem:[%s3 + $0x1b8] sm:$0xff]
      %v667 = vld [vmem:[%s3 + $0x1c0] sm:$0xff]
      %v668 = vld [vmem:[%s3 + $0x1c8] sm:$0xff]
      %v669 = vld [vmem:[%s3 + $0x1d0] sm:$0xff]
      %v670 = vld [vmem:[%s3 + $0x1d8] sm:$0xff]
      %v671 = vld [vmem:[%s3 + $0x1e0] sm:$0xff]
      %v672 = vld [vmem:[%s3 + $0x1e8] sm:$0xff]
      %v673 = vld [vmem:[%s3 + $0x1f0] sm:$0xff]
      %v674 = vld [vmem:[%s3 + $0x1f8] sm:$0xff]
      %v675 = vld [vmem:[%s4] sm:$0x3]
      %v677 = vlaneseq
      %v678 = vshrl.u32 %v677, 7
      %v679 = vsub.s32 0, %v678
      %v680 = vrot.slane %v675, %v679
      %v681 = vlaneseq
      %v682 = vshrl.u32 %v681, 7
      %v683 = vsub.s32 1, %v682
      %v684 = vrot.slane %v675, %v683
      %687 = vmatprep.subr.mxu0 %v642
      %688 = vmatpush1.msra.mxu0 %v641
      %689 = vmatprep.subr.mxu0 %v640
      %690 = vmatpush1.msra.mxu0 %v639
      %691 = vmatprep.subr.mxu0 %v638
      %692 = vmatpush1.msra.mxu0 %v637
      %693 = vmatprep.subr.mxu0 %v636
      %694 = vmatpush1.msra.mxu0 %v635
      %695 = vmatprep.subr.mxu0 %v634
      %696 = vmatpush1.msra.mxu0 %v633
      %697 = vmatprep.subr.mxu0 %v632
      %698 = vmatpush1.msra.mxu0 %v631
      %699 = vmatprep.subr.mxu0 %v630
      %700 = vmatpush1.msra.mxu0 %v629
      %701 = vmatprep.subr.mxu0 %v628
      %702 = vmatpush1.msra.mxu0 %v627
      %703 = vmatprep.subr.mxu0 %v626
      %704 = vmatpush1.msra.mxu0 %v625
      %705 = vmatprep.subr.mxu0 %v624
      %706 = vmatpush1.msra.mxu0 %v623
      %707 = vmatprep.subr.mxu0 %v622
      %708 = vmatpush1.msra.mxu0 %v621
      %709 = vmatprep.subr.mxu0 %v620
      %710 = vmatpush1.msra.mxu0 %v619
      %711 = vmatprep.subr.mxu0 %v618
      %712 = vmatpush1.msra.mxu0 %v617
      %713 = vmatprep.subr.mxu0 %v616
      %714 = vmatpush1.msra.mxu0 %v615
      %715 = vmatprep.subr.mxu0 %v614
      %716 = vmatpush1.msra.mxu0 %v613
      %717 = vmatprep.subr.mxu0 %v612
      %718 = vmatpush1.msra.mxu0 %v611
      %719 = vmatprep.subr.mxu0 %v674
      %720 = vmatpush2.msra.mxu0 %v673
      %721 = vmatprep.subr.mxu0 %v672
      %722 = vmatpush2.msra.mxu0 %v671
      %723 = vmatprep.subr.mxu0 %v670
      %724 = vmatpush2.msra.mxu0 %v669
      %725 = vmatprep.subr.mxu0 %v668
      %726 = vmatpush2.msra.mxu0 %v667
      %727 = vmatprep.subr.mxu0 %v666
      %728 = vmatpush2.msra.mxu0 %v665
      %729 = vmatprep.subr.mxu0 %v664
      %730 = vmatpush2.msra.mxu0 %v663
      %731 = vmatprep.subr.mxu0 %v662
      %732 = vmatpush2.msra.mxu0 %v661
      %733 = vmatprep.subr.mxu0 %v660
      %734 = vmatpush2.msra.mxu0 %v659
      %735 = vmatprep.subr.mxu0 %v658
      %736 = vmatpush2.msra.mxu0 %v657
      %737 = vmatprep.subr.mxu0 %v656
      %738 = vmatpush2.msra.mxu0 %v655
      %739 = vmatprep.subr.mxu0 %v654
      %740 = vmatpush2.msra.mxu0 %v653
      %741 = vmatprep.subr.mxu0 %v652
      %742 = vmatpush2.msra.mxu0 %v651
      %743 = vmatprep.subr.mxu0 %v650
      %744 = vmatpush2.msra.mxu0 %v649
      %745 = vmatprep.subr.mxu0 %v648
      %746 = vmatpush2.msra.mxu0 %v647
      %747 = vmatprep.subr.mxu0 %v646
      %748 = vmatpush2.msra.mxu0 %v645
      %749 = vmatprep.subr.mxu0 %v644
      %750 = vmatpush2.msra.mxu0 %v643
      %751 = vmatprep.mubr.f32.mxu0 %v596
      %752 = vmatmul.mubr.f32.gmra.mxu0 %v595
      %v753 = vpop.f32.mrf.mxu0
      %v754 = vadd.f32 %v680, %v753
      %v755 = vpop.f32.mrf.mxu0
      %v756 = vadd.f32 %v684, %v755
      %757 = vmatprep.mubr.f32.mxu0 %v598
      %758 = vmatmul.mubr.f32.gmra.mxu0 %v597
      %v759 = vpop.f32.mrf.mxu0
      %v760 = vadd.f32 %v680, %v759
      %v761 = vpop.f32.mrf.mxu0
      %v762 = vadd.f32 %v684, %v761
      %763 = vmatprep.mubr.f32.mxu0 %v600
      %764 = vmatmul.mubr.f32.gmra.mxu0 %v599
      %v765 = vpop.f32.mrf.mxu0
      %v766 = vadd.f32 %v680, %v765
      %v767 = vpop.f32.mrf.mxu0
      %v768 = vadd.f32 %v684, %v767
      %769 = vmatprep.mubr.f32.mxu0 %v602
      %770 = vmatmul.mubr.f32.gmra.mxu0 %v601
      %v771 = vpop.f32.mrf.mxu0
      %v772 = vadd.f32 %v680, %v771
      %v773 = vpop.f32.mrf.mxu0
      %v774 = vadd.f32 %v684, %v773
      %775 = vmatprep.mubr.f32.mxu0 %v604
      %776 = vmatmul.mubr.f32.gmra.mxu0 %v603
      %v777 = vpop.f32.mrf.mxu0
      %v778 = vadd.f32 %v680, %v777
      %v779 = vpop.f32.mrf.mxu0
      %v780 = vadd.f32 %v684, %v779
      %781 = vmatprep.mubr.f32.mxu0 %v606
      %782 = vmatmul.mubr.f32.gmra.mxu0 %v605
      %v783 = vpop.f32.mrf.mxu0
      %v784 = vadd.f32 %v680, %v783
      %v785 = vpop.f32.mrf.mxu0
      %v786 = vadd.f32 %v684, %v785
      %787 = vmatprep.mubr.f32.mxu0 %v608
      %788 = vmatmul.mubr.f32.gmra.mxu0 %v607
      %v789 = vpop.f32.mrf.mxu0
      %v790 = vadd.f32 %v680, %v789
      %v791 = vpop.f32.mrf.mxu0
      %v792 = vadd.f32 %v684, %v791
      %793 = vmatprep.mubr.f32.mxu0 %v610
      %794 = vmatmul.mubr.f32.gmra.mxu0 %v609
      %v795 = vpop.f32.mrf.mxu0
      %v796 = vadd.f32 %v680, %v795
      %v797 = vpop.f32.mrf.mxu0
      %v798 = vadd.f32 %v684, %v797
      %799 = vdwg.mxu0
      %v800 = vmul.f32 %v754, 0.2
      %v801 = vmul.f32 %v756, 0.2
      %v802 = vmul.f32 %v760, 0.2
      %v803 = vmul.f32 %v762, 0.2
      %v804 = vmul.f32 %v766, 0.2
      %v805 = vmul.f32 %v768, 0.2
      %v806 = vmul.f32 %v772, 0.2
      %v807 = vmul.f32 %v774, 0.2
      %v808 = vmul.f32 %v778, 0.2
      %v809 = vmul.f32 %v780, 0.2
      %v810 = vmul.f32 %v784, 0.2
      %v811 = vmul.f32 %v786, 0.2
      %v812 = vmul.f32 %v790, 0.2
      %v813 = vmul.f32 %v792, 0.2
      %v814 = vmul.f32 %v796, 0.2
      %v815 = vmul.f32 %v798, 0.2
      %v816 = vmax.f32 %v754, %v800
      %v817 = vmax.f32 %v756, %v801
      %v818 = vmax.f32 %v760, %v802
      %v819 = vmax.f32 %v762, %v803
      %v820 = vmax.f32 %v766, %v804
      %v821 = vmax.f32 %v768, %v805
      %v822 = vmax.f32 %v772, %v806
      %v823 = vmax.f32 %v774, %v807
      %v824 = vmax.f32 %v778, %v808
      %v825 = vmax.f32 %v780, %v809
      %v826 = vmax.f32 %v784, %v810
      %v827 = vmax.f32 %v786, %v811
      %v828 = vmax.f32 %v790, %v812
      %v829 = vmax.f32 %v792, %v813
      %v830 = vmax.f32 %v796, %v814
      %v831 = vmax.f32 %v798, %v815
      %v832 = vld [vmem:[%s5] sm:$0xff]
      %v833 = vld [vmem:[%s5 + $0x8] sm:$0xff]
      %v834 = vld [vmem:[%s5 + $0x10] sm:$0xff]
      %v835 = vld [vmem:[%s5 + $0x18] sm:$0xff]
      %v836 = vld [vmem:[%s5 + $0x20] sm:$0xff]
      %v837 = vld [vmem:[%s5 + $0x28] sm:$0xff]
      %v838 = vld [vmem:[%s5 + $0x30] sm:$0xff]
      %v839 = vld [vmem:[%s5 + $0x38] sm:$0xff]
      %v840 = vld [vmem:[%s5 + $0x40] sm:$0xff]
      %v841 = vld [vmem:[%s5 + $0x48] sm:$0xff]
      %v842 = vld [vmem:[%s5 + $0x50] sm:$0xff]
      %v843 = vld [vmem:[%s5 + $0x58] sm:$0xff]
      %v844 = vld [vmem:[%s5 + $0x60] sm:$0xff]
      %v845 = vld [vmem:[%s5 + $0x68] sm:$0xff]
      %v846 = vld [vmem:[%s5 + $0x70] sm:$0xff]
      %v847 = vld [vmem:[%s5 + $0x78] sm:$0xff]
      %v848 = vld [vmem:[%s5 + $0x80] sm:$0xff]
      %v849 = vld [vmem:[%s5 + $0x88] sm:$0xff]
      %v850 = vld [vmem:[%s5 + $0x90] sm:$0xff]
      %v851 = vld [vmem:[%s5 + $0x98] sm:$0xff]
      %v852 = vld [vmem:[%s5 + $0xa0] sm:$0xff]
      %v853 = vld [vmem:[%s5 + $0xa8] sm:$0xff]
      %v854 = vld [vmem:[%s5 + $0xb0] sm:$0xff]
      %v855 = vld [vmem:[%s5 + $0xb8] sm:$0xff]
      %v856 = vld [vmem:[%s5 + $0xc0] sm:$0xff]
      %v857 = vld [vmem:[%s5 + $0xc8] sm:$0xff]
      %v858 = vld [vmem:[%s5 + $0xd0] sm:$0xff]
      %v859 = vld [vmem:[%s5 + $0xd8] sm:$0xff]
      %v860 = vld [vmem:[%s5 + $0xe0] sm:$0xff]
      %v861 = vld [vmem:[%s5 + $0xe8] sm:$0xff]
      %v862 = vld [vmem:[%s5 + $0xf0] sm:$0xff]
      %v863 = vld [vmem:[%s5 + $0xf8] sm:$0xff]
      %v864 = vld [vmem:[%s6] sm:$0x1]
      %v866 = vlaneseq
      %v867 = vshrl.u32 %v866, 7
      %v868 = vsub.s32 0, %v867
      %v869 = vrot.slane %v864, %v868
      %871 = vmatprep.subr.mxu0 0.0
      %872 = vmatpush1.msra.mxu0 %v847
      %873 = vmatprep.subr.mxu0 0.0
      %874 = vmatpush1.msra.mxu0 %v846
      %875 = vmatprep.subr.mxu0 0.0
      %876 = vmatpush1.msra.mxu0 %v845
      %877 = vmatprep.subr.mxu0 0.0
      %878 = vmatpush1.msra.mxu0 %v844
      %879 = vmatprep.subr.mxu0 0.0
      %880 = vmatpush1.msra.mxu0 %v843
      %881 = vmatprep.subr.mxu0 0.0
      %882 = vmatpush1.msra.mxu0 %v842
      %883 = vmatprep.subr.mxu0 0.0
      %884 = vmatpush1.msra.mxu0 %v841
      %885 = vmatprep.subr.mxu0 0.0
      %886 = vmatpush1.msra.mxu0 %v840
      %887 = vmatprep.subr.mxu0 0.0
      %888 = vmatpush1.msra.mxu0 %v839
      %889 = vmatprep.subr.mxu0 0.0
      %890 = vmatpush1.msra.mxu0 %v838
      %891 = vmatprep.subr.mxu0 0.0
      %892 = vmatpush1.msra.mxu0 %v837
      %893 = vmatprep.subr.mxu0 0.0
      %894 = vmatpush1.msra.mxu0 %v836
      %895 = vmatprep.subr.mxu0 0.0
      %896 = vmatpush1.msra.mxu0 %v835
      %897 = vmatprep.subr.mxu0 0.0
      %898 = vmatpush1.msra.mxu0 %v834
      %899 = vmatprep.subr.mxu0 0.0
      %900 = vmatpush1.msra.mxu0 %v833
      %901 = vmatprep.subr.mxu0 0.0
      %902 = vmatpush1.msra.mxu0 %v832
      %903 = vmatprep.subr.mxu0 0.0
      %904 = vmatpush2.msra.mxu0 %v863
      %905 = vmatprep.subr.mxu0 0.0
      %906 = vmatpush2.msra.mxu0 %v862
      %907 = vmatprep.subr.mxu0 0.0
      %908 = vmatpush2.msra.mxu0 %v861
      %909 = vmatprep.subr.mxu0 0.0
      %910 = vmatpush2.msra.mxu0 %v860
      %911 = vmatprep.subr.mxu0 0.0
      %912 = vmatpush2.msra.mxu0 %v859
      %913 = vmatprep.subr.mxu0 0.0
      %914 = vmatpush2.msra.mxu0 %v858
      %915 = vmatprep.subr.mxu0 0.0
      %916 = vmatpush2.msra.mxu0 %v857
      %917 = vmatprep.subr.mxu0 0.0
      %918 = vmatpush2.msra.mxu0 %v856
      %919 = vmatprep.subr.mxu0 0.0
      %920 = vmatpush2.msra.mxu0 %v855
      %921 = vmatprep.subr.mxu0 0.0
      %922 = vmatpush2.msra.mxu0 %v854
      %923 = vmatprep.subr.mxu0 0.0
      %924 = vmatpush2.msra.mxu0 %v853
      %925 = vmatprep.subr.mxu0 0.0
      %926 = vmatpush2.msra.mxu0 %v852
      %927 = vmatprep.subr.mxu0 0.0
      %928 = vmatpush2.msra.mxu0 %v851
      %929 = vmatprep.subr.mxu0 0.0
      %930 = vmatpush2.msra.mxu0 %v850
      %931 = vmatprep.subr.mxu0 0.0
      %932 = vmatpush2.msra.mxu0 %v849
      %933 = vmatprep.subr.mxu0 0.0
      %934 = vmatpush2.msra.mxu0 %v848
      %935 = vmatprep.mubr.f32.mxu0 %v817
      %936 = vmatmul.mubr.f32.gmra.mxu0 %v816
      %v937 = vpop.f32.mrf.mxu0
      %v938 = vadd.f32 %v869, %v937
      %v939 = vpop.f32.mrf.mxu0
      %940 = vmatprep.mubr.f32.mxu0 %v819
      %941 = vmatmul.mubr.f32.gmra.mxu0 %v818
      %v942 = vpop.f32.mrf.mxu0
      %v943 = vadd.f32 %v869, %v942
      %v944 = vpop.f32.mrf.mxu0
      %945 = vmatprep.mubr.f32.mxu0 %v821
      %946 = vmatmul.mubr.f32.gmra.mxu0 %v820
      %v947 = vpop.f32.mrf.mxu0
      %v948 = vadd.f32 %v869, %v947
      %v949 = vpop.f32.mrf.mxu0
      %950 = vmatprep.mubr.f32.mxu0 %v823
      %951 = vmatmul.mubr.f32.gmra.mxu0 %v822
      %v952 = vpop.f32.mrf.mxu0
      %v953 = vadd.f32 %v869, %v952
      %v954 = vpop.f32.mrf.mxu0
      %955 = vmatprep.mubr.f32.mxu0 %v825
      %956 = vmatmul.mubr.f32.gmra.mxu0 %v824
      %v957 = vpop.f32.mrf.mxu0
      %v958 = vadd.f32 %v869, %v957
      %v959 = vpop.f32.mrf.mxu0
      %960 = vmatprep.mubr.f32.mxu0 %v827
      %961 = vmatmul.mubr.f32.gmra.mxu0 %v826
      %v962 = vpop.f32.mrf.mxu0
      %v963 = vadd.f32 %v869, %v962
      %v964 = vpop.f32.mrf.mxu0
      %965 = vmatprep.mubr.f32.mxu0 %v829
      %966 = vmatmul.mubr.f32.gmra.mxu0 %v828
      %v967 = vpop.f32.mrf.mxu0
      %v968 = vadd.f32 %v869, %v967
      %v969 = vpop.f32.mrf.mxu0
      %970 = vmatprep.mubr.f32.mxu0 %v831
      %971 = vmatmul.mubr.f32.gmra.mxu0 %v830
      %v972 = vpop.f32.mrf.mxu0
      %v973 = vadd.f32 %v869, %v972
      %v974 = vpop.f32.mrf.mxu0
      %975 = vdwg.mxu0
      %v976 = vmul.f32 %v938, 0.2
      %v977 = vmul.f32 %v943, 0.2
      %v978 = vmul.f32 %v948, 0.2
      %v979 = vmul.f32 %v953, 0.2
      %v980 = vmul.f32 %v958, 0.2
      %v981 = vmul.f32 %v963, 0.2
      %v982 = vmul.f32 %v968, 0.2
      %v983 = vmul.f32 %v973, 0.2
      %v984 = vmax.f32 %v938, %v976
      %v985 = vmax.f32 %v943, %v977
      %v986 = vmax.f32 %v948, %v978
      %v987 = vmax.f32 %v953, %v979
      %v988 = vmax.f32 %v958, %v980
      %v989 = vmax.f32 %v963, %v981
      %v990 = vmax.f32 %v968, %v982
      %v991 = vmax.f32 %v973, %v983
      %v992 = vld [vmem:[%s7] sm:$0xff]
      %v993 = vld [vmem:[%s7 + $0x8] sm:$0xff]
      %v994 = vld [vmem:[%s7 + $0x10] sm:$0xff]
      %v995 = vld [vmem:[%s7 + $0x18] sm:$0xff]
      %v996 = vld [vmem:[%s7 + $0x20] sm:$0xff]
      %v997 = vld [vmem:[%s7 + $0x28] sm:$0xff]
      %v998 = vld [vmem:[%s7 + $0x30] sm:$0xff]
      %v999 = vld [vmem:[%s7 + $0x38] sm:$0xff]
      %v1000 = vld [vmem:[%s7 + $0x40] sm:$0xff]
      %v1001 = vld [vmem:[%s7 + $0x48] sm:$0xff]
      %v1002 = vld [vmem:[%s7 + $0x50] sm:$0xff]
      %v1003 = vld [vmem:[%s7 + $0x58] sm:$0xff]
      %v1004 = vld [vmem:[%s7 + $0x60] sm:$0xff]
      %v1005 = vld [vmem:[%s7 + $0x68] sm:$0xff]
      %v1006 = vld [vmem:[%s7 + $0x70] sm:$0xff]
      %v1007 = vld [vmem:[%s7 + $0x78] sm:$0xff]
      %1008 = vmatprep.subr.mxu0 0.0
      %1009 = vmatpush1.msra.mxu0 %v1007
      %1010 = vmatprep.subr.mxu0 0.0
      %1011 = vmatpush1.msra.mxu0 %v1006
      %1012 = vmatprep.subr.mxu0 0.0
      %1013 = vmatpush1.msra.mxu0 %v1005
      %1014 = vmatprep.subr.mxu0 0.0
      %1015 = vmatpush1.msra.mxu0 %v1004
      %1016 = vmatprep.subr.mxu0 0.0
      %1017 = vmatpush1.msra.mxu0 %v1003
      %1018 = vmatprep.subr.mxu0 0.0
      %1019 = vmatpush1.msra.mxu0 %v1002
      %1020 = vmatprep.subr.mxu0 0.0
      %1021 = vmatpush1.msra.mxu0 %v1001
      %1022 = vmatprep.subr.mxu0 0.0
      %1023 = vmatpush1.msra.mxu0 %v1000
      %1024 = vmatprep.subr.mxu0 0.0
      %1025 = vmatpush1.msra.mxu0 %v999
      %1026 = vmatprep.subr.mxu0 0.0
      %1027 = vmatpush1.msra.mxu0 %v998
      %1028 = vmatprep.subr.mxu0 0.0
      %1029 = vmatpush1.msra.mxu0 %v997
      %1030 = vmatprep.subr.mxu0 0.0
      %1031 = vmatpush1.msra.mxu0 %v996
      %1032 = vmatprep.subr.mxu0 0.0
      %1033 = vmatpush1.msra.mxu0 %v995
      %1034 = vmatprep.subr.mxu0 0.0
      %1035 = vmatpush1.msra.mxu0 %v994
      %1036 = vmatprep.subr.mxu0 0.0
      %1037 = vmatpush1.msra.mxu0 %v993
      %1038 = vmatprep.subr.mxu0 0.0
      %1039 = vmatpush1.msra.mxu0 %v992
      %1040 = vmatprep.subr.mxu0 0.0
      %1041 = vmatpush2.msra.mxu0 0.0
      %1042 = vmatprep.subr.mxu0 0.0
      %1043 = vmatpush2.msra.mxu0 0.0
      %1044 = vmatprep.subr.mxu0 0.0
      %1045 = vmatpush2.msra.mxu0 0.0
      %1046 = vmatprep.subr.mxu0 0.0
      %1047 = vmatpush2.msra.mxu0 0.0
      %1048 = vmatprep.subr.mxu0 0.0
      %1049 = vmatpush2.msra.mxu0 0.0
      %1050 = vmatprep.subr.mxu0 0.0
      %1051 = vmatpush2.msra.mxu0 0.0
      %1052 = vmatprep.subr.mxu0 0.0
      %1053 = vmatpush2.msra.mxu0 0.0
      %1054 = vmatprep.subr.mxu0 0.0
      %1055 = vmatpush2.msra.mxu0 0.0
      %1056 = vmatprep.subr.mxu0 0.0
      %1057 = vmatpush2.msra.mxu0 0.0
      %1058 = vmatprep.subr.mxu0 0.0
      %1059 = vmatpush2.msra.mxu0 0.0
      %1060 = vmatprep.subr.mxu0 0.0
      %1061 = vmatpush2.msra.mxu0 0.0
      %1062 = vmatprep.subr.mxu0 0.0
      %1063 = vmatpush2.msra.mxu0 0.0
      %1064 = vmatprep.subr.mxu0 0.0
      %1065 = vmatpush2.msra.mxu0 0.0
      %1066 = vmatprep.subr.mxu0 0.0
      %1067 = vmatpush2.msra.mxu0 0.0
      %1068 = vmatprep.subr.mxu0 0.0
      %1069 = vmatpush2.msra.mxu0 0.0
      %1070 = vmatprep.subr.mxu0 0.0
      %1071 = vmatpush2.msra.mxu0 0.0
      %1072 = vmatprep.mubr.f32.mxu0 0.0
      %1073 = vmatmul.mubr.f32.gmra.mxu0 %v984
      %v1074 = vpop.f32.mrf.mxu0
      %v1075 = vadd.f32 0.0, %v1074
      %v1076 = vpop.f32.mrf.mxu0
      %1077 = vmatprep.mubr.f32.mxu0 0.0
      %1078 = vmatmul.mubr.f32.gmra.mxu0 %v985
      %v1079 = vpop.f32.mrf.mxu0
      %v1080 = vadd.f32 0.0, %v1079
      %v1081 = vpop.f32.mrf.mxu0
      %1082 = vmatprep.mubr.f32.mxu0 0.0
      %1083 = vmatmul.mubr.f32.gmra.mxu0 %v986
      %v1084 = vpop.f32.mrf.mxu0
      %v1085 = vadd.f32 0.0, %v1084
      %v1086 = vpop.f32.mrf.mxu0
      %1087 = vmatprep.mubr.f32.mxu0 0.0
      %1088 = vmatmul.mubr.f32.gmra.mxu0 %v987
      %v1089 = vpop.f32.mrf.mxu0
      %v1090 = vadd.f32 0.0, %v1089
      %v1091 = vpop.f32.mrf.mxu0
      %1092 = vmatprep.mubr.f32.mxu0 0.0
      %1093 = vmatmul.mubr.f32.gmra.mxu0 %v988
      %v1094 = vpop.f32.mrf.mxu0
      %v1095 = vadd.f32 0.0, %v1094
      %v1096 = vpop.f32.mrf.mxu0
      %1097 = vmatprep.mubr.f32.mxu0 0.0
      %1098 = vmatmul.mubr.f32.gmra.mxu0 %v989
      %v1099 = vpop.f32.mrf.mxu0
      %v1100 = vadd.f32 0.0, %v1099
      %v1101 = vpop.f32.mrf.mxu0
      %1102 = vmatprep.mubr.f32.mxu0 0.0
      %1103 = vmatmul.mubr.f32.gmra.mxu0 %v990
      %v1104 = vpop.f32.mrf.mxu0
      %v1105 = vadd.f32 0.0, %v1104
      %v1106 = vpop.f32.mrf.mxu0
      %1107 = vmatprep.mubr.f32.mxu0 0.0
      %1108 = vmatmul.mubr.f32.gmra.mxu0 %v991
      %v1109 = vpop.f32.mrf.mxu0
      %v1110 = vadd.f32 0.0, %v1109
      %v1111 = vpop.f32.mrf.mxu0
      %1112 = vdwg.mxu0
      %1113 = vst [vmem:[%s363] sm:$0xff] %v1075
      %1114 = vst [vmem:[%s363 + $0x8] sm:$0xff] %v1080
      %1115 = vst [vmem:[%s363 + $0x10] sm:$0xff] %v1085
      %1116 = vst [vmem:[%s363 + $0x18] sm:$0xff] %v1090
      %1117 = vst [vmem:[%s363 + $0x20] sm:$0xff] %v1095
      %1118 = vst [vmem:[%s363 + $0x28] sm:$0xff] %v1100
      %1119 = vst [vmem:[%s363 + $0x30] sm:$0xff] %v1105
      %1120 = vst [vmem:[%s363 + $0x38] sm:$0xff] %v1110
      %s1121 = smul.u32 8, %s24
      %p1122 = scmp.lt.s32.totalorder %s23, 1
      %s1123 = scalar_select %p1122, %s23, 1
      %p1124 = scmp.lt.s32.totalorder %s1121, 7
      %s1125 = scalar_select %p1124, %s1121, 7
      %s1126 = smul.addr %s1123, 8
      %s1127 = sadd.s32 %s1125, %s1126
      %s1128 = smul.addr %s1127, 8
      %s1129 = scalar_lea.vmem %s8, %s1128
      // Predicated region
      $region53: #{dgcnn_partseg_forward.9} parent=51 // pred_check
        %p1130 = pneg %p231
      $region54: #{dgcnn_partseg_forward.9} parent=51 // pred_check_branch
        %1132 = sbr.rel (%p1130) target = $region56
      $region55: #{dgcnn_partseg_forward.9} parent=51 // pred_region
        %s1133 = smul.u32 8, %s24
      $region56: #{dgcnn_partseg_forward.9} parent=51 // pred_fallthru
        _
    $region52: #{dgcnn_partseg_forward.9} parent=5 // pred_fallthru
      _
    %p1134 = scmp.le.s32.totalorder 2, %s14
    // Predicated region
    $region57: #{dgcnn_partseg_forward.9} parent=5 // pred_check
      %p1135 = pneg %p1134
    $region58: #{dgcnn_partseg_forward.9} parent=5 // pred_check_branch
      %1137 = sbr.rel (%p1135) target = $region60
    $region59: #{dgcnn_partseg_forward.9} parent=5 // pred_region
      %s1138 = ssub.s32 %s14, 2
      // Predicated region
      $region61: #{dgcnn_partseg_forward.9} parent=59 // pred_check
        %p1139 = pneg %p237
      $region62: #{dgcnn_partseg_forward.9} parent=59 // pred_check_branch
        %1141 = sbr.rel (%p1139) target = $region64
      $region63: #{dgcnn_partseg_forward.9} parent=59 // pred_region
        %s1142 = smul.u32 8, %s26
        %p1143 = scmp.lt.s32.totalorder %s25, 1
        %s1144 = scalar_select %p1143, %s25, 1
        %p1145 = scmp.lt.s32.totalorder %s1142, 7
        %s1146 = scalar_select %p1145, %s1142, 7
        %s1147 = smul.addr %s1144, 8
        %s1148 = sadd.s32 %s1146, %s1147
        %s1149 = smul.addr %s1148, 8
        %s1150 = scalar_lea.vmem %s8, %s1149
      $region64: #{dgcnn_partseg_forward.9} parent=59 // pred_fallthru
        _
    $region60: #{dgcnn_partseg_forward.9} parent=5 // pred_fallthru
      _
  $region6: #{dgcnn_partseg_forward.9} parent=0 // loop_footer
    %s18 = sadd.s32 1, %s14
  $region7: #{dgcnn_partseg_forward.9} parent=0 // loop_footer_branch
    %13 = sbr.rel target = $region3
  $region8: #{dgcnn_partseg_forward.9} parent=0 // loop_exit
    _

</llo_original>
